<compile_context>
chip_gen: v7x
topology: tpu7x:2x2x1
jax: 0.10.0
libtpu: 0.0.40
codegen_flags: <defaults>
</compile_context>

<pallas_src>
import functools
import math

import jax
import jax.numpy as jnp
import numpy as np
from jax.experimental import pallas as pl
from jax.experimental.pallas import tpu as pltpu

_LN_EPS = 1e-5


# ---------------------------------------------------------------------------
# small helpers
# ---------------------------------------------------------------------------
def _round_up(n, m):
    return ((n + m - 1) // m) * m


def _largest_divisor_leq(n, cap):
    cap = max(1, min(cap, n))
    for d in range(cap, 0, -1):
        if n % d == 0:
            return d
    return 1


def _pick_hidden_tile(hidden, target):
    if hidden <= max(target, 128):
        return hidden
    d = (min(target, hidden) // 128) * 128
    while d >= 128:
        if hidden % d == 0:
            return d
        d -= 128
    return hidden


def _pick_vmem_limit():
    """~3/4 of physical VMEM, capped at 100 MiB (v5e/v6e -> 96 MiB, v7x -> 48 MiB)."""
    cap = 64 * 1024 * 1024
    try:
        info = pltpu.get_tpu_info()
        cap = int(getattr(info, "vmem_capacity_bytes", cap))
    except Exception:
        pass
    return int(min(cap - cap // 4, 100 * 1024 * 1024))


# ---------------------------------------------------------------------------
# layout helpers (JAX level — pure reshapes/permutes, no heavy compute)
# ---------------------------------------------------------------------------
def _window_partition(x, window_size):
    B, H, W, C = x.shape
    x = x.reshape(B, H // window_size, window_size, W // window_size, window_size, C)
    x = jnp.transpose(x, (0, 1, 3, 2, 4, 5))
    return x.reshape(-1, window_size, window_size, C)


def _window_reverse(windows, window_size, H, W):
    B = windows.shape[0] // (H * W // window_size // window_size)
    x = windows.reshape(B, H // window_size, W // window_size, window_size, window_size, -1)
    x = jnp.transpose(x, (0, 1, 3, 2, 4, 5))
    return x.reshape(B, H, W, -1)


def _relative_position_index_np(window_size):
    ws = window_size
    coords = np.stack(np.meshgrid(np.arange(ws), np.arange(ws), indexing="ij"))
    coords_flat = coords.reshape(2, -1)
    rel = coords_flat[:, :, None] - coords_flat[:, None, :]
    rel = rel.transpose(1, 2, 0).astype(np.int64)
    rel[:, :, 0] += ws - 1
    rel[:, :, 1] += ws - 1
    rel[:, :, 0] *= 2 * ws - 1
    return rel.sum(-1)  # (N, N)


def _attn_mask_np(H, W, window_size, shift_size):
    img_mask = np.zeros((1, H, W, 1), dtype=np.float32)
    h_slices = (slice(0, -window_size), slice(-window_size, -shift_size),
                slice(-shift_size, None))
    w_slices = (slice(0, -window_size), slice(-window_size, -shift_size),
                slice(-shift_size, None))
    cnt = 0
    for h in h_slices:
        for w in w_slices:
            img_mask[:, h, w, :] = cnt
            cnt += 1
    mw = img_mask.reshape(1, H // window_size, window_size, W // window_size, window_size, 1)
    mw = mw.transpose(0, 1, 3, 2, 4, 5).reshape(-1, window_size * window_size)
    am = mw[:, None, :] - mw[:, :, None]
    return np.where(am != 0, -100.0, 0.0).astype(np.float32)  # (nW, N, N)


# ---------------------------------------------------------------------------
# Kernel A: norm1 + QKV + windowed multi-head cross-attention + proj + residual
# ---------------------------------------------------------------------------
def _window_attention_kernel(x_ref, x2_ref, g1_ref, b1_ref, wq_ref, bq_ref,
                             wkv_ref, bkv_ref, rpb_ref, wp_ref, bp_ref,
                             *rest, num_heads, scale, compute_dtype, has_mask):
    if has_mask:
        mask_ref, o_ref = rest
    else:
        mask_ref, o_ref = None, rest[0]

    f32 = jnp.float32
    wb, N, C = x_ref.shape
    hd = C // num_heads
    M2 = wb * N

    def layernorm(t):
        mu = jnp.mean(t, axis=-1, keepdims=True)
        var = jnp.mean(jnp.square(t - mu), axis=-1, keepdims=True)
        return (t - mu) * jax.lax.rsqrt(var + _LN_EPS) * g1_ref[...] + b1_ref[...]

    x_raw = x_ref[...].astype(f32).reshape(M2, C)              # shortcut (window layout)
    xq = layernorm(x_raw)                                       # norm1(x)
    xkv = layernorm(x2_ref[...].astype(f32).reshape(M2, C))     # norm1(x2)

    # QKV projections (bf16 MXU inputs, f32 accumulation, f32 bias add)
    q = (jnp.dot(xq.astype(compute_dtype), wq_ref[...],
                 preferred_element_type=f32) + bq_ref[...]) * scale
    kv = jnp.dot(xkv.astype(compute_dtype), wkv_ref[...],
                 preferred_element_type=f32) + bkv_ref[...]

    q3 = q.reshape(wb, N, C)
    k3 = kv[:, :C].reshape(wb, N, C)
    v3 = kv[:, C:].reshape(wb, N, C)

    def split_heads(t):
        # (wb, N, C) -> (num_heads * wb, N, hd); batch index = h * wb + w
        return jnp.concatenate(
            [t[:, :, h * hd:(h + 1) * hd] for h in range(num_heads)], axis=0)

    qh = split_heads(q3).astype(compute_dtype)
    kh = split_heads(k3).astype(compute_dtype)
    vh = split_heads(v3).astype(compute_dtype)

    # one batched MXU matmul over all (head, window) pairs
    s = jnp.einsum("bnd,bmd->bnm", qh, kh, preferred_element_type=f32)  # (H*wb, N, N)
    s = s.reshape(num_heads, wb, N, N) + rpb_ref[...][:, None, :, :]
    if has_mask:
        s = s + mask_ref[...][None, :, :, :]
    s = s.reshape(num_heads * wb, N, N)

    # softmax (reciprocal on the EUP)
    s = s - jnp.max(s, axis=-1, keepdims=True)
    p = jnp.exp(s)
    p = p * pl.reciprocal(jnp.sum(p, axis=-1, keepdims=True), approx=True)

    out = jnp.einsum("bnm,bmd->bnd", p.astype(compute_dtype), vh,
                     preferred_element_type=f32)                 # (H*wb, N, hd)

    # merge heads back to the channel dim (one lane concat) -> single K=C proj matmul
    merged = jnp.concatenate(
        [out[h * wb:(h + 1) * wb] for h in range(num_heads)], axis=-1)   # (wb, N, C)
    proj = jnp.dot(merged.reshape(M2, C).astype(compute_dtype), wp_ref[...],
                   preferred_element_type=f32) + bp_ref[...]

    # fused residual: output = window_partition(shift(shortcut)) + attn
    o_ref[...] = (x_raw + proj).reshape(wb, N, C).astype(o_ref.dtype)


# ---------------------------------------------------------------------------
# Kernel B: norm2 + MLP (fc1 -> exact GELU -> fc2, hidden-dim tiled) + residual
# ---------------------------------------------------------------------------
def _mlp_residual_kernel(xr_ref, g_ref, b_ref, w1_ref, bias1_ref, w2_ref,
                         bias2_ref, o_ref, acc_ref, *, compute_dtype):
    f32 = jnp.float32
    j = pl.program_id(1)

    xr = xr_ref[...].astype(f32)                         # residual stream (resident)
    mu = jnp.mean(xr, axis=-1, keepdims=True)
    var = jnp.mean(jnp.square(xr - mu), axis=-1, keepdims=True)
    xn = (xr - mu) * jax.lax.rsqrt(var + _LN_EPS) * g_ref[...] + b_ref[...]

    h = jnp.dot(xn.astype(compute_dtype), w1_ref[...],
                preferred_element_type=f32) + bias1_ref[...]
    # exact GELU (matches torch.nn.GELU default)
    h = 0.5 * h * (1.0 + jax.lax.erf(h * (1.0 / math.sqrt(2.0))))
    part = jnp.dot(h.astype(compute_dtype), w2_ref[...], preferred_element_type=f32)

    @pl.when(j == 0)
    def _():
        acc_ref[...] = jnp.zeros_like(acc_ref)

    acc_ref[...] += part

    @pl.when(j == pl.num_programs(1) - 1)
    def _():
        o_ref[...] = (xr + acc_ref[...] + bias2_ref[...]).astype(o_ref.dtype)


# ---------------------------------------------------------------------------
# Full block forward
# ---------------------------------------------------------------------------
@functools.partial(
    jax.jit,
    static_argnames=("x_size", "window_size", "shift_size", "num_heads",
                     "wb", "tile_m", "hidden_tile", "compute_dtype"))
def swin_block_pallas(x, x2, params, *, x_size, window_size, shift_size,
                      num_heads, wb=32, tile_m=512, hidden_tile=1024,
                      compute_dtype=jnp.bfloat16):
    """x, x2: (B, H*W, C) -> (B, H*W, C)."""
    f32 = jnp.float32
    H, W = x_size
    B, L, C = x.shape
    assert L == H * W and H % window_size == 0 and W % window_size == 0
    N = window_size * window_size
    head_dim = C // num_heads
    scale = head_dim ** (-0.5)
    hidden = params["w_fc1"].shape[1]
    vmem_limit = _pick_vmem_limit()

    # -- parameter prep: (in, out) weight layout, MXU operands cast to compute_dtype
    wq = params["w_qkv"][:, :C].astype(compute_dtype)
    wkv = params["w_qkv"][:, C:].astype(compute_dtype)
    bq = params["b_qkv"][:C].reshape(1, C).astype(f32)
    bkv = params["b_qkv"][C:].reshape(1, 2 * C).astype(f32)
    wp = params["w_proj"].astype(compute_dtype)
    bp = params["b_proj"].reshape(1, C).astype(f32)
    w1 = params["w_fc1"].astype(compute_dtype)
    bf1 = params["b_fc1"].reshape(1, hidden).astype(f32)
    w2 = params["w_fc2"].astype(compute_dtype)
    bf2 = params["b_fc2"].reshape(1, C).astype(f32)
    g1 = params["g1"].reshape(1, C).astype(f32)
    b1 = params["b1"].reshape(1, C).astype(f32)
    g2 = params["g2"].reshape(1, C).astype(f32)
    b2 = params["b2"].reshape(1, C).astype(f32)

    rel_idx = _relative_position_index_np(window_size)
    rel_bias = params["rpb_table"][rel_idx.reshape(-1)].reshape(N, N, num_heads)
    rel_bias = jnp.transpose(rel_bias, (2, 0, 1)).astype(f32)        # (heads, N, N)

    # -- cyclic shift + window partition (layout plumbing; norm1 is fused into Kernel A)
    xi = x.reshape(B, H, W, C)
    x2i = x2.reshape(B, H, W, C)
    if shift_size > 0:
        xi = jnp.roll(xi, shift=(-shift_size, -shift_size), axis=(1, 2))
        x2i = jnp.roll(x2i, shift=(-shift_size, -shift_size), axis=(1, 2))
    xw = _window_partition(xi, window_size).reshape(-1, N, C)
    x2w = _window_partition(x2i, window_size).reshape(-1, N, C)
    B_ = xw.shape[0]
    nW = (H // window_size) * (W // window_size)

    has_mask = shift_size > 0
    # windows per grid step: a divisor of nW (shifted, so the (nW,N,N) mask can be
    # block-indexed) / of B_ (unshifted); capped so the grid keeps >= 2 steps.
    wb_cap = max(1, min(wb, max(1, B_ // 2)))
    wb_eff = _largest_divisor_leq(nW if has_mask else B_, wb_cap)
    n_steps = B_ // wb_eff

    const2 = lambda i: (0, 0)
    const3 = lambda i: (0, 0, 0)
    tiled3 = lambda i: (i, 0, 0)

    in_specs = [
        pl.BlockSpec((wb_eff, N, C), tiled3),        # x windows (shortcut)
        pl.BlockSpec((wb_eff, N, C), tiled3),        # x2 windows
        pl.BlockSpec((1, C), const2),                # norm1 gamma
        pl.BlockSpec((1, C), const2),                # norm1 beta
        pl.BlockSpec((C, C), const2),                # W_q
        pl.BlockSpec((1, C), const2),                # b_q
        pl.BlockSpec((C, 2 * C), const2),            # W_kv
        pl.BlockSpec((1, 2 * C), const2),            # b_kv
        pl.BlockSpec((num_heads, N, N), const3),     # relative position bias
        pl.BlockSpec((C, C), const2),                # W_proj
        pl.BlockSpec((1, C), const2),                # b_proj
    ]
    inputs = [xw, x2w, g1, b1, wq, bq, wkv, bkv, rel_bias, wp, bp]
    if has_mask:
        mask = jnp.asarray(_attn_mask_np(H, W, window_size, shift_size))   # (nW, N, N)
        mask_blocks = nW // wb_eff
        in_specs.append(pl.BlockSpec((wb_eff, N, N),
                                     lambda i: (i % mask_blocks, 0, 0)))
        inputs.append(mask)

    attn_kernel = functools.partial(
        _window_attention_kernel, num_heads=num_heads, scale=scale,
        compute_dtype=compute_dtype, has_mask=has_mask)

    attn_res_windows = pl.pallas_call(
        attn_kernel,
        out_shape=jax.ShapeDtypeStruct((B_, N, C), x.dtype),
        grid_spec=pltpu.PrefetchScalarGridSpec(
            num_scalar_prefetch=0,
            grid=(n_steps,),
            in_specs=in_specs,
            out_specs=pl.BlockSpec((wb_eff, N, C), tiled3),
        ),
        compiler_params=pltpu.CompilerParams(
            dimension_semantics=("parallel",),
            vmem_limit_bytes=vmem_limit),
    )(*inputs)

    # -- window reverse + reverse shift (output already carries the shortcut residual)
    # TODO(synk): the cyclic-shift wrap cannot be expressed in a rectangular out_spec
    #             index_map, so this single layout pass stays in XLA.
    xr = _window_reverse(attn_res_windows.reshape(-1, window_size, window_size, C),
                         window_size, H, W)
    if shift_size > 0:
        xr = jnp.roll(xr, shift=(shift_size, shift_size), axis=(1, 2))
    xr2d = xr.reshape(B * L, C)

    # -- norm2 + MLP + residual, tiled over flattened tokens (+ hidden-dim chunks)
    M = B * L
    tm = _round_up(min(tile_m, _round_up(M, 8)), 8)
    Mp = _round_up(M, tm)
    if Mp != M:
        xr2d = jnp.pad(xr2d, ((0, Mp - M), (0, 0)))

    th = _pick_hidden_tile(hidden, hidden_tile)
    nj = hidden // th

    mlp_kernel = functools.partial(_mlp_residual_kernel, compute_dtype=compute_dtype)

    out2d = pl.pallas_call(
        mlp_kernel,
        out_shape=jax.ShapeDtypeStruct((Mp, C), x.dtype),
        grid_spec=pltpu.PrefetchScalarGridSpec(
            num_scalar_prefetch=0,
            grid=(Mp // tm, nj),
            in_specs=[
                pl.BlockSpec((tm, C), lambda i, j: (i, 0)),     # residual stream
                pl.BlockSpec((1, C), lambda i, j: (0, 0)),      # norm2 gamma
                pl.BlockSpec((1, C), lambda i, j: (0, 0)),      # norm2 beta
                pl.BlockSpec((C, th), lambda i, j: (0, j)),     # fc1 weight chunk
                pl.BlockSpec((1, th), lambda i, j: (0, j)),     # fc1 bias chunk
                pl.BlockSpec((th, C), lambda i, j: (j, 0)),     # fc2 weight chunk
                pl.BlockSpec((1, C), lambda i, j: (0, 0)),      # fc2 bias
            ],
            out_specs=pl.BlockSpec((tm, C), lambda i, j: (i, 0)),
            scratch_shapes=[pltpu.VMEM((tm, C), jnp.float32)],
        ),
        compiler_params=pltpu.CompilerParams(
            dimension_semantics=("parallel", "arbitrary"),
            vmem_limit_bytes=vmem_limit),
    )(xr2d, g2, b2, w1, bf1, w2, bf2)

    return out2d[:M].reshape(B, L, C)


# ---------------------------------------------------------------------------
# Pure-JAX reference (mirrors the PyTorch forward, f32)
# ---------------------------------------------------------------------------
def _layernorm_ref(t, g, b):
    mu = jnp.mean(t, axis=-1, keepdims=True)
    var = jnp.mean(jnp.square(t - mu), axis=-1, keepdims=True)
    return (t - mu) * jax.lax.rsqrt(var + _LN_EPS) * g + b


def swin_block_reference(x, x2, params, *, x_size, window_size, shift_size, num_heads):
    H, W = x_size
    B, L, C = x.shape
    N = window_size * window_size
    hd = C // num_heads
    scale = hd ** (-0.5)

    rel_idx = _relative_position_index_np(window_size)
    rel_bias = params["rpb_table"][rel_idx.reshape(-1)].reshape(N, N, num_heads)
    rel_bias = jnp.transpose(rel_bias, (2, 0, 1))

    shortcut = x
    xn = _layernorm_ref(x, params["g1"], params["b1"]).reshape(B, H, W, C)
    x2n = _layernorm_ref(x2, params["g1"], params["b1"]).reshape(B, H, W, C)
    if shift_size > 0:
        xn = jnp.roll(xn, shift=(-shift_size, -shift_size), axis=(1, 2))
        x2n = jnp.roll(x2n, shift=(-shift_size, -shift_size), axis=(1, 2))
    xw = _window_partition(xn, window_size).reshape(-1, N, C)
    x2w = _window_partition(x2n, window_size).reshape(-1, N, C)
    B_ = xw.shape[0]

    qkv_q = xw @ params["w_qkv"] + params["b_qkv"]
    qkv_kv = x2w @ params["w_qkv"] + params["b_qkv"]
    q = qkv_q[..., :C].reshape(B_, N, num_heads, hd).transpose(0, 2, 1, 3)
    k = qkv_kv[..., C:2 * C].reshape(B_, N, num_heads, hd).transpose(0, 2, 1, 3)
    v = qkv_kv[..., 2 * C:].reshape(B_, N, num_heads, hd).transpose(0, 2, 1, 3)

    attn = (q * scale) @ jnp.swapaxes(k, -1, -2) + rel_bias[None]
    if shift_size > 0:
        mask = jnp.asarray(_attn_mask_np(H, W, window_size, shift_size))
        nW = mask.shape[0]
        attn = attn.reshape(B_ // nW, nW, num_heads, N, N) + mask[None, :, None]
        attn = attn.reshape(B_, num_heads, N, N)
    attn = jax.nn.softmax(attn, axis=-1)

    out = (attn @ v).transpose(0, 2, 1, 3).reshape(B_, N, C)
    out = out @ params["w_proj"] + params["b_proj"]
    out = _window_reverse(out.reshape(-1, window_size, window_size, C), window_size, H, W)
    if shift_size > 0:
        out = jnp.roll(out, shift=(shift_size, shift_size), axis=(1, 2))
    x = shortcut + out.reshape(B, L, C)

    xn2 = _layernorm_ref(x, params["g2"], params["b2"])
    h = xn2 @ params["w_fc1"] + params["b_fc1"]
    h = 0.5 * h * (1.0 + jax.lax.erf(h * (1.0 / math.sqrt(2.0))))
    return x + (h @ params["w_fc2"] + params["b_fc2"])


if __name__ == "__main__":
    key = jax.random.PRNGKey(0)
    f32 = jnp.float32

    # Small but representative configuration.
    B = 2
    H = W = 8
    C = 32
    num_heads = 4
    mlp_ratio = 4.0
    L = H * W
    hidden = int(C * mlp_ratio)

    keys = jax.random.split(key, 8)
    x = jax.random.normal(keys[0], (B, L, C), dtype=f32)
    x2 = jax.random.normal(keys[1], (B, L, C), dtype=f32)

    def make_params(ks, window_size):
        table_len = (2 * window_size - 1) ** 2
        bnd_c = 1.0 / math.sqrt(C)
        bnd_h = 1.0 / math.sqrt(hidden)
        k = jax.random.split(ks, 9)
        return {
            "g1": jnp.ones((C,), f32),
            "b1": jnp.zeros((C,), f32),
            "g2": jnp.ones((C,), f32),
            "b2": jnp.zeros((C,), f32),
            "rpb_table": 0.02 * jax.random.truncated_normal(
                k[0], -2.0, 2.0, (table_len, num_heads), dtype=f32),
            # Linear weights stored as (in, out) == PyTorch weight.T
            "w_qkv": jax.random.uniform(k[1], (C, 3 * C), minval=-bnd_c, maxval=bnd_c, dtype=f32),
            "b_qkv": jax.random.uniform(k[2], (3 * C,), minval=-bnd_c, maxval=bnd_c, dtype=f32),
            "w_proj": jax.random.uniform(k[3], (C, C), minval=-bnd_c, maxval=bnd_c, dtype=f32),
            "b_proj": jax.random.uniform(k[4], (C,), minval=-bnd_c, maxval=bnd_c, dtype=f32),
            "w_fc1": jax.random.uniform(k[5], (C, hidden), minval=-bnd_c, maxval=bnd_c, dtype=f32),
            "b_fc1": jax.random.uniform(k[6], (hidden,), minval=-bnd_c, maxval=bnd_c, dtype=f32),
            "w_fc2": jax.random.uniform(k[7], (hidden, C), minval=-bnd_h, maxval=bnd_h, dtype=f32),
            "b_fc2": jax.random.uniform(k[8], (C,), minval=-bnd_h, maxval=bnd_h, dtype=f32),
        }

    # ---- config 1: shifted windows (exercises the SW-MSA mask path) ----
    window_size, shift_size = 4, 2
    if min((H, W)) <= window_size:          # mirror SwinTransformerBlock.__init__
        shift_size, window_size = 0, min((H, W))
    assert 0 <= shift_size < window_size
    params = make_params(keys[2], window_size)

    ref = swin_block_reference(x, x2, params, x_size=(H, W), window_size=window_size,
                               shift_size=shift_size, num_heads=num_heads)
    ref = jax.block_until_ready(ref)

    out_f32 = swin_block_pallas(x, x2, params, x_size=(H, W), window_size=window_size,
                                shift_size=shift_size, num_heads=num_heads,
                                compute_dtype=jnp.float32)
    out_f32 = jax.block_until_ready(out_f32)
    assert out_f32.shape == (B, L, C)
    assert jnp.allclose(out_f32, ref, atol=3e-2, rtol=3e-2), "f32 shifted kernel mismatch"

    out_bf16 = swin_block_pallas(x, x2, params, x_size=(H, W), window_size=window_size,
                                 shift_size=shift_size, num_heads=num_heads)
    out_bf16 = jax.block_until_ready(out_bf16)
    assert out_bf16.shape == (B, L, C)
    assert jnp.allclose(out_bf16, ref, atol=1e-1, rtol=1e-1), "bf16 shifted kernel mismatch"

    # ---- config 2: non-shifted windows (exercises the no-mask specialization) ----
    window_size2, shift_size2 = 8, 4
    if min((H, W)) <= window_size2:
        shift_size2, window_size2 = 0, min((H, W))
    params2 = make_params(keys[3], window_size2)
    ref2 = jax.block_until_ready(
        swin_block_reference(x, x2, params2, x_size=(H, W), window_size=window_size2,
                             shift_size=shift_size2, num_heads=num_heads))
    out2 = swin_block_pallas(x, x2, params2, x_size=(H, W), window_size=window_size2,
                             shift_size=shift_size2, num_heads=num_heads,
                             compute_dtype=jnp.float32)
    out2 = jax.block_until_ready(out2)
    assert jnp.allclose(out2, ref2, atol=3e-2, rtol=3e-2), "f32 non-shifted kernel mismatch"

    print("KERNEL_OK")
</pallas_src>

<mosaic_0001>
module attributes {stable_mosaic.version = 11 : i64} {
  func.func @_window_attention_kernel(%arg0: i32, %arg1: memref<4x16x32xf32, #tpu.memory_space<vmem>>, %arg2: memref<4x16x32xf32, #tpu.memory_space<vmem>>, %arg3: memref<1x32xf32, #tpu.memory_space<vmem>>, %arg4: memref<1x32xf32, #tpu.memory_space<vmem>>, %arg5: memref<32x32xf32, #tpu.memory_space<vmem>>, %arg6: memref<1x32xf32, #tpu.memory_space<vmem>>, %arg7: memref<32x64xf32, #tpu.memory_space<vmem>>, %arg8: memref<1x64xf32, #tpu.memory_space<vmem>>, %arg9: memref<4x16x16xf32, #tpu.memory_space<vmem>>, %arg10: memref<32x32xf32, #tpu.memory_space<vmem>>, %arg11: memref<1x32xf32, #tpu.memory_space<vmem>>, %arg12: memref<4x16x16xf32, #tpu.memory_space<vmem>>, %arg13: memref<4x16x32xf32, #tpu.memory_space<vmem>>) attributes {dimension_semantics = [#tpu.dimension_semantics<parallel>], iteration_bounds = array<i64: 2>, scalar_prefetch = 0 : i64, scratch_operands = 0 : i64, tpu.core_type = #tpu.core_type<tc>, window_params = [{transform_indices = @transform_0, window_bounds = array<i64: 4, 16, 32>}, {transform_indices = @transform_1, window_bounds = array<i64: 4, 16, 32>}, {pipeline_mode = #tpu.pipeline_mode<synchronous>, transform_indices = @transform_2, window_bounds = array<i64: 1, 32>}, {pipeline_mode = #tpu.pipeline_mode<synchronous>, transform_indices = @transform_3, window_bounds = array<i64: 1, 32>}, {pipeline_mode = #tpu.pipeline_mode<synchronous>, transform_indices = @transform_4, window_bounds = array<i64: 32, 32>}, {pipeline_mode = #tpu.pipeline_mode<synchronous>, transform_indices = @transform_5, window_bounds = array<i64: 1, 32>}, {pipeline_mode = #tpu.pipeline_mode<synchronous>, transform_indices = @transform_6, window_bounds = array<i64: 32, 64>}, {pipeline_mode = #tpu.pipeline_mode<synchronous>, transform_indices = @transform_7, window_bounds = array<i64: 1, 64>}, {pipeline_mode = #tpu.pipeline_mode<synchronous>, transform_indices = @transform_8, window_bounds = array<i64: 4, 16, 16>}, {pipeline_mode = #tpu.pipeline_mode<synchronous>, transform_indices = @transform_9, window_bounds = array<i64: 32, 32>}, {pipeline_mode = #tpu.pipeline_mode<synchronous>, transform_indices = @transform_10, window_bounds = array<i64: 1, 32>}, {transform_indices = @transform_11, window_bounds = array<i64: 4, 16, 16>}, {transform_indices = @transform_12, window_bounds = array<i64: 4, 16, 32>}]} {
    %c0 = arith.constant 0 : index
    %c0_0 = arith.constant 0 : index
    %c0_1 = arith.constant 0 : index
    %0 = vector.load %arg1[%c0, %c0_0, %c0_1] : memref<4x16x32xf32, #tpu.memory_space<vmem>>, vector<4x16x32xf32>
    %1 = vector.shape_cast %0 : vector<4x16x32xf32> to vector<64x32xf32>
    %cst = arith.constant dense<0.000000e+00> : vector<64xf32>
    %2 = vector.multi_reduction <add>, %1, %cst [1] : vector<64x32xf32> to vector<64xf32>
    %3 = vector.shape_cast %2 : vector<64xf32> to vector<64x1xf32>
    %cst_2 = arith.constant 3.200000e+01 : f32
    %4 = vector.broadcast %cst_2 : f32 to vector<64x1xf32>
    %5 = arith.divf %3, %4 : vector<64x1xf32>
    %6 = vector.broadcast %5 : vector<64x1xf32> to vector<64x32xf32>
    %7 = arith.subf %1, %6 : vector<64x32xf32>
    %8 = arith.mulf %7, %7 : vector<64x32xf32>
    %cst_3 = arith.constant dense<0.000000e+00> : vector<64xf32>
    %9 = vector.multi_reduction <add>, %8, %cst_3 [1] : vector<64x32xf32> to vector<64xf32>
    %10 = vector.shape_cast %9 : vector<64xf32> to vector<64x1xf32>
    %cst_4 = arith.constant 3.200000e+01 : f32
    %11 = vector.broadcast %cst_4 : f32 to vector<64x1xf32>
    %12 = arith.divf %10, %11 : vector<64x1xf32>
    %13 = vector.broadcast %5 : vector<64x1xf32> to vector<64x32xf32>
    %14 = arith.subf %1, %13 : vector<64x32xf32>
    %cst_5 = arith.constant 9.99999974E-6 : f32
    %15 = vector.broadcast %cst_5 : f32 to vector<64x1xf32>
    %16 = arith.addf %12, %15 : vector<64x1xf32>
    %17 = math.rsqrt %16 : vector<64x1xf32>
    %18 = vector.broadcast %17 : vector<64x1xf32> to vector<64x32xf32>
    %19 = arith.mulf %14, %18 : vector<64x32xf32>
    %c0_6 = arith.constant 0 : index
    %c0_7 = arith.constant 0 : index
    %20 = vector.load %arg3[%c0_6, %c0_7] : memref<1x32xf32, #tpu.memory_space<vmem>>, vector<1x32xf32>
    %21 = vector.broadcast %20 : vector<1x32xf32> to vector<64x32xf32>
    %22 = arith.mulf %19, %21 : vector<64x32xf32>
    %c0_8 = arith.constant 0 : index
    %c0_9 = arith.constant 0 : index
    %23 = vector.load %arg4[%c0_8, %c0_9] : memref<1x32xf32, #tpu.memory_space<vmem>>, vector<1x32xf32>
    %24 = vector.broadcast %23 : vector<1x32xf32> to vector<64x32xf32>
    %25 = arith.addf %22, %24 : vector<64x32xf32>
    %c0_10 = arith.constant 0 : index
    %c0_11 = arith.constant 0 : index
    %c0_12 = arith.constant 0 : index
    %26 = vector.load %arg2[%c0_10, %c0_11, %c0_12] : memref<4x16x32xf32, #tpu.memory_space<vmem>>, vector<4x16x32xf32>
    %27 = vector.shape_cast %26 : vector<4x16x32xf32> to vector<64x32xf32>
    %cst_13 = arith.constant dense<0.000000e+00> : vector<64xf32>
    %28 = vector.multi_reduction <add>, %27, %cst_13 [1] : vector<64x32xf32> to vector<64xf32>
    %29 = vector.shape_cast %28 : vector<64xf32> to vector<64x1xf32>
    %cst_14 = arith.constant 3.200000e+01 : f32
    %30 = vector.broadcast %cst_14 : f32 to vector<64x1xf32>
    %31 = arith.divf %29, %30 : vector<64x1xf32>
    %32 = vector.broadcast %31 : vector<64x1xf32> to vector<64x32xf32>
    %33 = arith.subf %27, %32 : vector<64x32xf32>
    %34 = arith.mulf %33, %33 : vector<64x32xf32>
    %cst_15 = arith.constant dense<0.000000e+00> : vector<64xf32>
    %35 = vector.multi_reduction <add>, %34, %cst_15 [1] : vector<64x32xf32> to vector<64xf32>
    %36 = vector.shape_cast %35 : vector<64xf32> to vector<64x1xf32>
    %cst_16 = arith.constant 3.200000e+01 : f32
    %37 = vector.broadcast %cst_16 : f32 to vector<64x1xf32>
    %38 = arith.divf %36, %37 : vector<64x1xf32>
    %39 = vector.broadcast %31 : vector<64x1xf32> to vector<64x32xf32>
    %40 = arith.subf %27, %39 : vector<64x32xf32>
    %cst_17 = arith.constant 9.99999974E-6 : f32
    %41 = vector.broadcast %cst_17 : f32 to vector<64x1xf32>
    %42 = arith.addf %38, %41 : vector<64x1xf32>
    %43 = math.rsqrt %42 : vector<64x1xf32>
    %44 = vector.broadcast %43 : vector<64x1xf32> to vector<64x32xf32>
    %45 = arith.mulf %40, %44 : vector<64x32xf32>
    %c0_18 = arith.constant 0 : index
    %c0_19 = arith.constant 0 : index
    %46 = vector.load %arg3[%c0_18, %c0_19] : memref<1x32xf32, #tpu.memory_space<vmem>>, vector<1x32xf32>
    %47 = vector.broadcast %46 : vector<1x32xf32> to vector<64x32xf32>
    %48 = arith.mulf %45, %47 : vector<64x32xf32>
    %c0_20 = arith.constant 0 : index
    %c0_21 = arith.constant 0 : index
    %49 = vector.load %arg4[%c0_20, %c0_21] : memref<1x32xf32, #tpu.memory_space<vmem>>, vector<1x32xf32>
    %50 = vector.broadcast %49 : vector<1x32xf32> to vector<64x32xf32>
    %51 = arith.addf %48, %50 : vector<64x32xf32>
    %c0_22 = arith.constant 0 : index
    %c0_23 = arith.constant 0 : index
    %52 = vector.load %arg5[%c0_22, %c0_23] : memref<32x32xf32, #tpu.memory_space<vmem>>, vector<32x32xf32>
    %cst_24 = arith.constant dense<0.000000e+00> : vector<64x32xf32>
    %53 = tpu.matmul %25, %52, %cst_24 {dimension_numbers = #tpu.dot_dimension_numbers<[1], [0], [0], [1], [0, 0, 1, 1], [], []>} : vector<64x32xf32>, vector<32x32xf32>, vector<64x32xf32> -> vector<64x32xf32>
    %c0_25 = arith.constant 0 : index
    %c0_26 = arith.constant 0 : index
    %54 = vector.load %arg6[%c0_25, %c0_26] : memref<1x32xf32, #tpu.memory_space<vmem>>, vector<1x32xf32>
    %55 = vector.broadcast %54 : vector<1x32xf32> to vector<64x32xf32>
    %56 = arith.addf %53, %55 : vector<64x32xf32>
    %cst_27 = arith.constant 0.353553385 : f32
    %57 = vector.broadcast %cst_27 : f32 to vector<64x32xf32>
    %58 = arith.mulf %56, %57 : vector<64x32xf32>
    %c0_28 = arith.constant 0 : index
    %c0_29 = arith.constant 0 : index
    %59 = vector.load %arg7[%c0_28, %c0_29] : memref<32x64xf32, #tpu.memory_space<vmem>>, vector<32x64xf32>
    %cst_30 = arith.constant dense<0.000000e+00> : vector<64x64xf32>
    %60 = tpu.matmul %51, %59, %cst_30 {dimension_numbers = #tpu.dot_dimension_numbers<[1], [0], [0], [1], [0, 0, 1, 1], [], []>} : vector<64x32xf32>, vector<32x64xf32>, vector<64x64xf32> -> vector<64x64xf32>
    %c0_31 = arith.constant 0 : index
    %c0_32 = arith.constant 0 : index
    %61 = vector.load %arg8[%c0_31, %c0_32] : memref<1x64xf32, #tpu.memory_space<vmem>>, vector<1x64xf32>
    %62 = vector.broadcast %61 : vector<1x64xf32> to vector<64x64xf32>
    %63 = arith.addf %60, %62 : vector<64x64xf32>
    %64 = vector.shape_cast %58 : vector<64x32xf32> to vector<4x16x32xf32>
    %65 = vector.extract_strided_slice %63 {offsets = [0, 0], sizes = [64, 32], strides = [1, 1]} : vector<64x64xf32> to vector<64x32xf32>
    %66 = vector.shape_cast %65 : vector<64x32xf32> to vector<4x16x32xf32>
    %67 = vector.extract_strided_slice %63 {offsets = [0, 32], sizes = [64, 32], strides = [1, 1]} : vector<64x64xf32> to vector<64x32xf32>
    %68 = vector.shape_cast %67 : vector<64x32xf32> to vector<4x16x32xf32>
    %69 = vector.extract_strided_slice %64 {offsets = [0, 0, 0], sizes = [4, 16, 8], strides = [1, 1, 1]} : vector<4x16x32xf32> to vector<4x16x8xf32>
    %70 = vector.extract_strided_slice %64 {offsets = [0, 0, 8], sizes = [4, 16, 8], strides = [1, 1, 1]} : vector<4x16x32xf32> to vector<4x16x8xf32>
    %71 = vector.extract_strided_slice %64 {offsets = [0, 0, 16], sizes = [4, 16, 8], strides = [1, 1, 1]} : vector<4x16x32xf32> to vector<4x16x8xf32>
    %72 = vector.extract_strided_slice %64 {offsets = [0, 0, 24], sizes = [4, 16, 8], strides = [1, 1, 1]} : vector<4x16x32xf32> to vector<4x16x8xf32>
    %73 = tpu.concatenate %69, %70, %71, %72 in 0 : vector<4x16x8xf32>, vector<4x16x8xf32>, vector<4x16x8xf32>, vector<4x16x8xf32> -> vector<16x16x8xf32>
    %74 = vector.extract_strided_slice %66 {offsets = [0, 0, 0], sizes = [4, 16, 8], strides = [1, 1, 1]} : vector<4x16x32xf32> to vector<4x16x8xf32>
    %75 = vector.extract_strided_slice %66 {offsets = [0, 0, 8], sizes = [4, 16, 8], strides = [1, 1, 1]} : vector<4x16x32xf32> to vector<4x16x8xf32>
    %76 = vector.extract_strided_slice %66 {offsets = [0, 0, 16], sizes = [4, 16, 8], strides = [1, 1, 1]} : vector<4x16x32xf32> to vector<4x16x8xf32>
    %77 = vector.extract_strided_slice %66 {offsets = [0, 0, 24], sizes = [4, 16, 8], strides = [1, 1, 1]} : vector<4x16x32xf32> to vector<4x16x8xf32>
    %78 = tpu.concatenate %74, %75, %76, %77 in 0 : vector<4x16x8xf32>, vector<4x16x8xf32>, vector<4x16x8xf32>, vector<4x16x8xf32> -> vector<16x16x8xf32>
    %79 = vector.extract_strided_slice %68 {offsets = [0, 0, 0], sizes = [4, 16, 8], strides = [1, 1, 1]} : vector<4x16x32xf32> to vector<4x16x8xf32>
    %80 = vector.extract_strided_slice %68 {offsets = [0, 0, 8], sizes = [4, 16, 8], strides = [1, 1, 1]} : vector<4x16x32xf32> to vector<4x16x8xf32>
    %81 = vector.extract_strided_slice %68 {offsets = [0, 0, 16], sizes = [4, 16, 8], strides = [1, 1, 1]} : vector<4x16x32xf32> to vector<4x16x8xf32>
    %82 = vector.extract_strided_slice %68 {offsets = [0, 0, 24], sizes = [4, 16, 8], strides = [1, 1, 1]} : vector<4x16x32xf32> to vector<4x16x8xf32>
    %83 = tpu.concatenate %79, %80, %81, %82 in 0 : vector<4x16x8xf32>, vector<4x16x8xf32>, vector<4x16x8xf32>, vector<4x16x8xf32> -> vector<16x16x8xf32>
    "tpu.trace_start"() <{level = 10 : i32, message = "bnd,bmd->bnm"}> : () -> ()
    %cst_33 = arith.constant dense<0.000000e+00> : vector<16x16x16xf32>
    %84 = tpu.matmul %73, %78, %cst_33 {dimension_numbers = #tpu.dot_dimension_numbers<[2], [2], [1], [1], [0, 0, 0, 1, 1, 1], [0], [0]>} : vector<16x16x8xf32>, vector<16x16x8xf32>, vector<16x16x16xf32> -> vector<16x16x16xf32>
    "tpu.trace_stop"() : () -> ()
    %85 = vector.shape_cast %84 : vector<16x16x16xf32> to vector<4x4x16x16xf32>
    %c0_34 = arith.constant 0 : index
    %c0_35 = arith.constant 0 : index
    %c0_36 = arith.constant 0 : index
    %86 = vector.load %arg9[%c0_34, %c0_35, %c0_36] : memref<4x16x16xf32, #tpu.memory_space<vmem>>, vector<4x16x16xf32>
    %87 = vector.shape_cast %86 : vector<4x16x16xf32> to vector<4x1x16x16xf32>
    %88 = vector.broadcast %87 : vector<4x1x16x16xf32> to vector<4x4x16x16xf32>
    %89 = arith.addf %85, %88 : vector<4x4x16x16xf32>
    %c0_37 = arith.constant 0 : index
    %c0_38 = arith.constant 0 : index
    %c0_39 = arith.constant 0 : index
    %90 = vector.load %arg12[%c0_37, %c0_38, %c0_39] : memref<4x16x16xf32, #tpu.memory_space<vmem>>, vector<4x16x16xf32>
    %91 = vector.shape_cast %90 : vector<4x16x16xf32> to vector<1x4x16x16xf32>
    %92 = vector.broadcast %91 : vector<1x4x16x16xf32> to vector<4x4x16x16xf32>
    %93 = arith.addf %89, %92 : vector<4x4x16x16xf32>
    %94 = vector.shape_cast %93 : vector<4x4x16x16xf32> to vector<16x16x16xf32>
    %cst_40 = arith.constant dense<0xFF800000> : vector<16x16xf32>
    %95 = vector.multi_reduction <maximumf>, %94, %cst_40 [2] : vector<16x16x16xf32> to vector<16x16xf32>
    %96 = vector.shape_cast %95 : vector<16x16xf32> to vector<16x16x1xf32>
    %97 = vector.broadcast %96 : vector<16x16x1xf32> to vector<16x16x16xf32>
    %98 = arith.subf %94, %97 : vector<16x16x16xf32>
    %99 = math.exp %98 : vector<16x16x16xf32>
    %cst_41 = arith.constant dense<0.000000e+00> : vector<16x16xf32>
    %100 = vector.multi_reduction <add>, %99, %cst_41 [2] : vector<16x16x16xf32> to vector<16x16xf32>
    %101 = vector.shape_cast %100 : vector<16x16xf32> to vector<16x16x1xf32>
    %102 = tpu.reciprocal %101 {approx = true} : vector<16x16x1xf32> -> vector<16x16x1xf32>
    %103 = vector.broadcast %102 : vector<16x16x1xf32> to vector<16x16x16xf32>
    %104 = arith.mulf %99, %103 : vector<16x16x16xf32>
    "tpu.trace_start"() <{level = 10 : i32, message = "bnm,bmd->bnd"}> : () -> ()
    %cst_42 = arith.constant dense<0.000000e+00> : vector<16x16x8xf32>
    %105 = tpu.matmul %104, %83, %cst_42 {dimension_numbers = #tpu.dot_dimension_numbers<[2], [1], [1], [2], [0, 0, 0, 1, 1, 2], [0], [0]>} : vector<16x16x16xf32>, vector<16x16x8xf32>, vector<16x16x8xf32> -> vector<16x16x8xf32>
    "tpu.trace_stop"() : () -> ()
    %106 = vector.extract_strided_slice %105 {offsets = [0, 0, 0], sizes = [4, 16, 8], strides = [1, 1, 1]} : vector<16x16x8xf32> to vector<4x16x8xf32>
    %107 = vector.extract_strided_slice %105 {offsets = [4, 0, 0], sizes = [4, 16, 8], strides = [1, 1, 1]} : vector<16x16x8xf32> to vector<4x16x8xf32>
    %108 = vector.extract_strided_slice %105 {offsets = [8, 0, 0], sizes = [4, 16, 8], strides = [1, 1, 1]} : vector<16x16x8xf32> to vector<4x16x8xf32>
    %109 = vector.extract_strided_slice %105 {offsets = [12, 0, 0], sizes = [4, 16, 8], strides = [1, 1, 1]} : vector<16x16x8xf32> to vector<4x16x8xf32>
    %110 = tpu.concatenate %106, %107, %108, %109 in 2 : vector<4x16x8xf32>, vector<4x16x8xf32>, vector<4x16x8xf32>, vector<4x16x8xf32> -> vector<4x16x32xf32>
    %111 = vector.shape_cast %110 : vector<4x16x32xf32> to vector<64x32xf32>
    %c0_43 = arith.constant 0 : index
    %c0_44 = arith.constant 0 : index
    %112 = vector.load %arg10[%c0_43, %c0_44] : memref<32x32xf32, #tpu.memory_space<vmem>>, vector<32x32xf32>
    %cst_45 = arith.constant dense<0.000000e+00> : vector<64x32xf32>
    %113 = tpu.matmul %111, %112, %cst_45 {dimension_numbers = #tpu.dot_dimension_numbers<[1], [0], [0], [1], [0, 0, 1, 1], [], []>} : vector<64x32xf32>, vector<32x32xf32>, vector<64x32xf32> -> vector<64x32xf32>
    %c0_46 = arith.constant 0 : index
    %c0_47 = arith.constant 0 : index
    %114 = vector.load %arg11[%c0_46, %c0_47] : memref<1x32xf32, #tpu.memory_space<vmem>>, vector<1x32xf32>
    %115 = vector.broadcast %114 : vector<1x32xf32> to vector<64x32xf32>
    %116 = arith.addf %113, %115 : vector<64x32xf32>
    %117 = arith.addf %1, %116 : vector<64x32xf32>
    %118 = vector.shape_cast %117 : vector<64x32xf32> to vector<4x16x32xf32>
    %c0_48 = arith.constant 0 : index
    %c0_49 = arith.constant 0 : index
    %c0_50 = arith.constant 0 : index
    %119 = vector.load %arg13[%c0_48, %c0_49, %c0_50] : memref<4x16x32xf32, #tpu.memory_space<vmem>>, vector<4x16x32xf32>
    tpu.vector_store %arg13[%c0_48, %c0_49, %c0_50], %118 {strides = array<i32>} : memref<4x16x32xf32, #tpu.memory_space<vmem>>, vector<4x16x32xf32>,
    return
  }
  func.func @transform_0(%arg0: i32) -> (i32, i32, i32) {
    %c0_i32 = arith.constant 0 : i32
    %c0_i32_0 = arith.constant 0 : i32
    %c0_i32_1 = arith.constant 0 : i32
    return %arg0, %c0_i32, %c0_i32_0 : i32, i32, i32
  }
  func.func @transform_1(%arg0: i32) -> (i32, i32, i32) {
    %c0_i32 = arith.constant 0 : i32
    %c0_i32_0 = arith.constant 0 : i32
    %c0_i32_1 = arith.constant 0 : i32
    return %arg0, %c0_i32, %c0_i32_0 : i32, i32, i32
  }
  func.func @transform_2(%arg0: i32) -> (i32, i32) {
    %c0_i32 = arith.constant 0 : i32
    %c0_i32_0 = arith.constant 0 : i32
    %c0_i32_1 = arith.constant 0 : i32
    return %c0_i32, %c0_i32_0 : i32, i32
  }
  func.func @transform_3(%arg0: i32) -> (i32, i32) {
    %c0_i32 = arith.constant 0 : i32
    %c0_i32_0 = arith.constant 0 : i32
    %c0_i32_1 = arith.constant 0 : i32
    return %c0_i32, %c0_i32_0 : i32, i32
  }
  func.func @transform_4(%arg0: i32) -> (i32, i32) {
    %c0_i32 = arith.constant 0 : i32
    %c0_i32_0 = arith.constant 0 : i32
    %c0_i32_1 = arith.constant 0 : i32
    return %c0_i32, %c0_i32_0 : i32, i32
  }
  func.func @transform_5(%arg0: i32) -> (i32, i32) {
    %c0_i32 = arith.constant 0 : i32
    %c0_i32_0 = arith.constant 0 : i32
    %c0_i32_1 = arith.constant 0 : i32
    return %c0_i32, %c0_i32_0 : i32, i32
  }
  func.func @transform_6(%arg0: i32) -> (i32, i32) {
    %c0_i32 = arith.constant 0 : i32
    %c0_i32_0 = arith.constant 0 : i32
    %c0_i32_1 = arith.constant 0 : i32
    return %c0_i32, %c0_i32_0 : i32, i32
  }
  func.func @transform_7(%arg0: i32) -> (i32, i32) {
    %c0_i32 = arith.constant 0 : i32
    %c0_i32_0 = arith.constant 0 : i32
    %c0_i32_1 = arith.constant 0 : i32
    return %c0_i32, %c0_i32_0 : i32, i32
  }
  func.func @transform_8(%arg0: i32) -> (i32, i32, i32) {
    %c0_i32 = arith.constant 0 : i32
    %c0_i32_0 = arith.constant 0 : i32
    %c0_i32_1 = arith.constant 0 : i32
    %c0_i32_2 = arith.constant 0 : i32
    return %c0_i32, %c0_i32_0, %c0_i32_1 : i32, i32, i32
  }
  func.func @transform_9(%arg0: i32) -> (i32, i32) {
    %c0_i32 = arith.constant 0 : i32
    %c0_i32_0 = arith.constant 0 : i32
    %c0_i32_1 = arith.constant 0 : i32
    return %c0_i32, %c0_i32_0 : i32, i32
  }
  func.func @transform_10(%arg0: i32) -> (i32, i32) {
    %c0_i32 = arith.constant 0 : i32
    %c0_i32_0 = arith.constant 0 : i32
    %c0_i32_1 = arith.constant 0 : i32
    return %c0_i32, %c0_i32_0 : i32, i32
  }
  func.func @transform_11(%arg0: i32) -> (i32, i32, i32) {
    %c1_i32 = arith.constant 1 : i32
    %c0_i32 = arith.constant 0 : i32
    %0 = arith.cmpi eq, %c1_i32, %c0_i32 : i32
    %c1_i32_0 = arith.constant 1 : i32
    %1 = arith.select %0, %c1_i32_0, %c1_i32 : i32
    %2 = arith.remsi %arg0, %1 : i32
    %c0_i32_1 = arith.constant 0 : i32
    %3 = arith.cmpi ne, %2, %c0_i32_1 : i32
    %c0_i32_2 = arith.constant 0 : i32
    %4 = arith.cmpi slt, %2, %c0_i32_2 : i32
    %c0_i32_3 = arith.constant 0 : i32
    %5 = arith.cmpi slt, %1, %c0_i32_3 : i32
    %6 = arith.xori %4, %5 : i1
    %7 = arith.andi %6, %3 : i1
    %8 = arith.addi %2, %1 : i32
    %9 = arith.select %7, %8, %2 : i32
    %c0_i32_4 = arith.constant 0 : i32
    %c0_i32_5 = arith.constant 0 : i32
    %c0_i32_6 = arith.constant 0 : i32
    return %9, %c0_i32_4, %c0_i32_5 : i32, i32, i32
  }
  func.func @transform_12(%arg0: i32) -> (i32, i32, i32) {
    %c0_i32 = arith.constant 0 : i32
    %c0_i32_0 = arith.constant 0 : i32
    %c0_i32_1 = arith.constant 0 : i32
    return %arg0, %c0_i32, %c0_i32_0 : i32, i32, i32
  }
}

module attributes {stable_mosaic.version = 11 : i64} {
  func.func @_mlp_residual_kernel(%arg0: i32, %arg1: i32, %arg2: memref<128x32xf32, #tpu.memory_space<vmem>>, %arg3: memref<1x32xf32, #tpu.memory_space<vmem>>, %arg4: memref<1x32xf32, #tpu.memory_space<vmem>>, %arg5: memref<32x128xf32, #tpu.memory_space<vmem>>, %arg6: memref<1x128xf32, #tpu.memory_space<vmem>>, %arg7: memref<128x32xf32, #tpu.memory_space<vmem>>, %arg8: memref<1x32xf32, #tpu.memory_space<vmem>>, %arg9: memref<128x32xf32, #tpu.memory_space<vmem>>, %arg10: memref<128x32xf32, #tpu.memory_space<vmem>>) attributes {dimension_semantics = [#tpu.dimension_semantics<parallel>, #tpu.dimension_semantics<arbitrary>], iteration_bounds = array<i64: 1, 1>, scalar_prefetch = 0 : i64, scratch_operands = 1 : i64, tpu.core_type = #tpu.core_type<tc>, window_params = [{transform_indices = @transform_0, window_bounds = array<i64: 128, 32>}, {pipeline_mode = #tpu.pipeline_mode<synchronous>, transform_indices = @transform_1, window_bounds = array<i64: 1, 32>}, {pipeline_mode = #tpu.pipeline_mode<synchronous>, transform_indices = @transform_2, window_bounds = array<i64: 1, 32>}, {transform_indices = @transform_3, window_bounds = array<i64: 32, 128>}, {transform_indices = @transform_4, window_bounds = array<i64: 1, 128>}, {transform_indices = @transform_5, window_bounds = array<i64: 128, 32>}, {pipeline_mode = #tpu.pipeline_mode<synchronous>, transform_indices = @transform_6, window_bounds = array<i64: 1, 32>}, {transform_indices = @transform_7, window_bounds = array<i64: 128, 32>}]} {
    %c0 = arith.constant 0 : index
    %c0_0 = arith.constant 0 : index
    %0 = vector.load %arg2[%c0, %c0_0] : memref<128x32xf32, #tpu.memory_space<vmem>>, vector<128x32xf32>
    %cst = arith.constant dense<0.000000e+00> : vector<128xf32>
    %1 = vector.multi_reduction <add>, %0, %cst [1] : vector<128x32xf32> to vector<128xf32>
    %2 = vector.shape_cast %1 : vector<128xf32> to vector<128x1xf32>
    %cst_1 = arith.constant 3.200000e+01 : f32
    %3 = vector.broadcast %cst_1 : f32 to vector<128x1xf32>
    %4 = arith.divf %2, %3 : vector<128x1xf32>
    %5 = vector.broadcast %4 : vector<128x1xf32> to vector<128x32xf32>
    %6 = arith.subf %0, %5 : vector<128x32xf32>
    %7 = arith.mulf %6, %6 : vector<128x32xf32>
    %cst_2 = arith.constant dense<0.000000e+00> : vector<128xf32>
    %8 = vector.multi_reduction <add>, %7, %cst_2 [1] : vector<128x32xf32> to vector<128xf32>
    %9 = vector.shape_cast %8 : vector<128xf32> to vector<128x1xf32>
    %cst_3 = arith.constant 3.200000e+01 : f32
    %10 = vector.broadcast %cst_3 : f32 to vector<128x1xf32>
    %11 = arith.divf %9, %10 : vector<128x1xf32>
    %12 = vector.broadcast %4 : vector<128x1xf32> to vector<128x32xf32>
    %13 = arith.subf %0, %12 : vector<128x32xf32>
    %cst_4 = arith.constant 9.99999974E-6 : f32
    %14 = vector.broadcast %cst_4 : f32 to vector<128x1xf32>
    %15 = arith.addf %11, %14 : vector<128x1xf32>
    %16 = math.rsqrt %15 : vector<128x1xf32>
    %17 = vector.broadcast %16 : vector<128x1xf32> to vector<128x32xf32>
    %18 = arith.mulf %13, %17 : vector<128x32xf32>
    %c0_5 = arith.constant 0 : index
    %c0_6 = arith.constant 0 : index
    %19 = vector.load %arg3[%c0_5, %c0_6] : memref<1x32xf32, #tpu.memory_space<vmem>>, vector<1x32xf32>
    %20 = vector.broadcast %19 : vector<1x32xf32> to vector<128x32xf32>
    %21 = arith.mulf %18, %20 : vector<128x32xf32>
    %c0_7 = arith.constant 0 : index
    %c0_8 = arith.constant 0 : index
    %22 = vector.load %arg4[%c0_7, %c0_8] : memref<1x32xf32, #tpu.memory_space<vmem>>, vector<1x32xf32>
    %23 = vector.broadcast %22 : vector<1x32xf32> to vector<128x32xf32>
    %24 = arith.addf %21, %23 : vector<128x32xf32>
    %c0_9 = arith.constant 0 : index
    %c0_10 = arith.constant 0 : index
    %25 = vector.load %arg5[%c0_9, %c0_10] : memref<32x128xf32, #tpu.memory_space<vmem>>, vector<32x128xf32>
    %cst_11 = arith.constant dense<0.000000e+00> : vector<128x128xf32>
    %26 = tpu.matmul %24, %25, %cst_11 {dimension_numbers = #tpu.dot_dimension_numbers<[1], [0], [0], [1], [0, 0, 1, 1], [], []>} : vector<128x32xf32>, vector<32x128xf32>, vector<128x128xf32> -> vector<128x128xf32>
    %c0_12 = arith.constant 0 : index
    %c0_13 = arith.constant 0 : index
    %27 = vector.load %arg6[%c0_12, %c0_13] : memref<1x128xf32, #tpu.memory_space<vmem>>, vector<1x128xf32>
    %28 = vector.broadcast %27 : vector<1x128xf32> to vector<128x128xf32>
    %29 = arith.addf %26, %28 : vector<128x128xf32>
    %cst_14 = arith.constant 5.000000e-01 : f32
    %30 = vector.broadcast %cst_14 : f32 to vector<128x128xf32>
    %31 = arith.mulf %30, %29 : vector<128x128xf32>
    %cst_15 = arith.constant 0.707106769 : f32
    %32 = vector.broadcast %cst_15 : f32 to vector<128x128xf32>
    %33 = arith.mulf %29, %32 : vector<128x128xf32>
    %34 = math.erf %33 : vector<128x128xf32>
    %cst_16 = arith.constant 1.000000e+00 : f32
    %35 = vector.broadcast %cst_16 : f32 to vector<128x128xf32>
    %36 = arith.addf %35, %34 : vector<128x128xf32>
    %37 = arith.mulf %31, %36 : vector<128x128xf32>
    %c0_17 = arith.constant 0 : index
    %c0_18 = arith.constant 0 : index
    %38 = vector.load %arg7[%c0_17, %c0_18] : memref<128x32xf32, #tpu.memory_space<vmem>>, vector<128x32xf32>
    %cst_19 = arith.constant dense<0.000000e+00> : vector<128x32xf32>
    %39 = tpu.matmul %37, %38, %cst_19 {dimension_numbers = #tpu.dot_dimension_numbers<[1], [0], [0], [1], [0, 0, 1, 1], [], []>} : vector<128x128xf32>, vector<128x32xf32>, vector<128x32xf32> -> vector<128x32xf32>
    %c0_i32 = arith.constant 0 : i32
    %40 = arith.cmpi eq, %arg1, %c0_i32 : i32
    %41 = arith.extui %40 : i1 to i32
    %c0_i32_20 = arith.constant 0 : i32
    %42 = arith.cmpi ne, %41, %c0_i32_20 : i32
    scf.if %42 {
      %cst_27 = arith.constant 0.000000e+00 : f32
      %49 = vector.broadcast %cst_27 : f32 to vector<128x32xf32>
      %c0_28 = arith.constant 0 : index
      %c0_29 = arith.constant 0 : index
      %50 = vector.load %arg10[%c0_28, %c0_29] : memref<128x32xf32, #tpu.memory_space<vmem>>, vector<128x32xf32>
      tpu.vector_store %arg10[%c0_28, %c0_29], %49 {strides = array<i32>} : memref<128x32xf32, #tpu.memory_space<vmem>>, vector<128x32xf32>,
    } else {
    }
    %c0_21 = arith.constant 0 : index
    %c0_22 = arith.constant 0 : index
    %43 = vector.load %arg10[%c0_21, %c0_22] : memref<128x32xf32, #tpu.memory_space<vmem>>, vector<128x32xf32>
    %44 = arith.addf %43, %39 : vector<128x32xf32>
    %c0_23 = arith.constant 0 : index
    %c0_24 = arith.constant 0 : index
    %45 = vector.load %arg10[%c0_23, %c0_24] : memref<128x32xf32, #tpu.memory_space<vmem>>, vector<128x32xf32>
    tpu.vector_store %arg10[%c0_23, %c0_24], %44 {strides = array<i32>} : memref<128x32xf32, #tpu.memory_space<vmem>>, vector<128x32xf32>,
    %c0_i32_25 = arith.constant 0 : i32
    %46 = arith.cmpi eq, %arg1, %c0_i32_25 : i32
    %47 = arith.extui %46 : i1 to i32
    %c0_i32_26 = arith.constant 0 : i32
    %48 = arith.cmpi ne, %47, %c0_i32_26 : i32
    scf.if %48 {
      %c0_27 = arith.constant 0 : index
      %c0_28 = arith.constant 0 : index
      %49 = vector.load %arg10[%c0_27, %c0_28] : memref<128x32xf32, #tpu.memory_space<vmem>>, vector<128x32xf32>
      %50 = arith.addf %0, %49 : vector<128x32xf32>
      %c0_29 = arith.constant 0 : index
      %c0_30 = arith.constant 0 : index
      %51 = vector.load %arg8[%c0_29, %c0_30] : memref<1x32xf32, #tpu.memory_space<vmem>>, vector<1x32xf32>
      %52 = vector.broadcast %51 : vector<1x32xf32> to vector<128x32xf32>
      %53 = arith.addf %50, %52 : vector<128x32xf32>
      %c0_31 = arith.constant 0 : index
      %c0_32 = arith.constant 0 : index
      %54 = vector.load %arg9[%c0_31, %c0_32] : memref<128x32xf32, #tpu.memory_space<vmem>>, vector<128x32xf32>
      tpu.vector_store %arg9[%c0_31, %c0_32], %53 {strides = array<i32>} : memref<128x32xf32, #tpu.memory_space<vmem>>, vector<128x32xf32>,
    } else {
    }
    return
  }
  func.func @transform_0(%arg0: i32, %arg1: i32) -> (i32, i32) {
    %c0_i32 = arith.constant 0 : i32
    %c0_i32_0 = arith.constant 0 : i32
    return %arg0, %c0_i32 : i32, i32
  }
  func.func @transform_1(%arg0: i32, %arg1: i32) -> (i32, i32) {
    %c0_i32 = arith.constant 0 : i32
    %c0_i32_0 = arith.constant 0 : i32
    %c0_i32_1 = arith.constant 0 : i32
    return %c0_i32, %c0_i32_0 : i32, i32
  }
  func.func @transform_2(%arg0: i32, %arg1: i32) -> (i32, i32) {
    %c0_i32 = arith.constant 0 : i32
    %c0_i32_0 = arith.constant 0 : i32
    %c0_i32_1 = arith.constant 0 : i32
    return %c0_i32, %c0_i32_0 : i32, i32
  }
  func.func @transform_3(%arg0: i32, %arg1: i32) -> (i32, i32) {
    %c0_i32 = arith.constant 0 : i32
    %c0_i32_0 = arith.constant 0 : i32
    return %c0_i32, %arg1 : i32, i32
  }
  func.func @transform_4(%arg0: i32, %arg1: i32) -> (i32, i32) {
    %c0_i32 = arith.constant 0 : i32
    %c0_i32_0 = arith.constant 0 : i32
    return %c0_i32, %arg1 : i32, i32
  }
  func.func @transform_5(%arg0: i32, %arg1: i32) -> (i32, i32) {
    %c0_i32 = arith.constant 0 : i32
    %c0_i32_0 = arith.constant 0 : i32
    return %arg1, %c0_i32 : i32, i32
  }
  func.func @transform_6(%arg0: i32, %arg1: i32) -> (i32, i32) {
    %c0_i32 = arith.constant 0 : i32
    %c0_i32_0 = arith.constant 0 : i32
    %c0_i32_1 = arith.constant 0 : i32
    return %c0_i32, %c0_i32_0 : i32, i32
  }
  func.func @transform_7(%arg0: i32, %arg1: i32) -> (i32, i32) {
    %c0_i32 = arith.constant 0 : i32
    %c0_i32_0 = arith.constant 0 : i32
    return %arg0, %c0_i32 : i32, i32
  }
}

</mosaic_0001>

<llo_original>
// kernel: swin_block_pallas.3
$region0: #{swin_block_pallas.3}
  #allocation0 [shape = 'u32[]', space=smem, size = 0x4, offset = 0x4, fixed_abs, tag = 'smem constant byte address 0x4 - core index']
  #allocation1 [shape = 'u32[144,128]{1,0:T(1,128)}', space=vmem, size = 0x12000, scoped, tag = 'internal scratch']
  #allocation2 [shape = 'f32[128,32]{1,0:T(8,128)}', space=vmem, size = 0x10000, scoped, tag = 'scratch operand']
  %s0 = inlined_call_operand.vmem [shape: f32[128,32], index: 0, kind: input, shape index: {}]
  %s1 = inlined_call_operand.vmem [shape: f32[1,32], index: 1, kind: input, shape index: {}]
  %s2 = inlined_call_operand.vmem [shape: f32[1,32], index: 2, kind: input, shape index: {}]
  %s3 = inlined_call_operand.vmem [shape: f32[32,128], index: 3, kind: input, shape index: {}]
  %s4 = inlined_call_operand.vmem [shape: f32[1,128], index: 4, kind: input, shape index: {}]
  %s5 = inlined_call_operand.vmem [shape: f32[128,32], index: 5, kind: input, shape index: {}]
  %s6 = inlined_call_operand.vmem [shape: f32[1,32], index: 6, kind: input, shape index: {}]
  %s7 = inlined_call_operand.vmem [shape: f32[128,32], index: 7, kind: output, shape index: {}]
  %s8 = sld [smem:[#allocation0]]
  $region46: #{swin_block_pallas.3} parent=0
    _
  %s10 = ssub.s32 1, %s8
  %s11 = scalar_select 0, %s10, %s8
  // Predicated region
  $region2: #{swin_block_pallas.3} parent=0 // pred_check
    _
  $region3: #{swin_block_pallas.3} parent=0 // pred_check_branch
    %13 = sbr.rel (0) target = $region5
  $region4: #{swin_block_pallas.3} parent=0 // pred_region
    _
  $region5: #{swin_block_pallas.3} parent=0 // pred_fallthru
    _
  // Predicated region
  $region6: #{swin_block_pallas.3} parent=0 // pred_check
    _
  $region7: #{swin_block_pallas.3} parent=0 // pred_check_branch
    %15 = sbr.rel (0) target = $region9
  $region8: #{swin_block_pallas.3} parent=0 // pred_region
    _
  $region9: #{swin_block_pallas.3} parent=0 // pred_fallthru
    _
  // Predicated region
  $region10: #{swin_block_pallas.3} parent=0 // pred_check
    _
  $region11: #{swin_block_pallas.3} parent=0 // pred_check_branch
    %17 = sbr.rel (0) target = $region13
  $region12: #{swin_block_pallas.3} parent=0 // pred_region
    _
  $region13: #{swin_block_pallas.3} parent=0 // pred_fallthru
    _
  // Predicated region
  $region14: #{swin_block_pallas.3} parent=0 // pred_check
    _
  $region15: #{swin_block_pallas.3} parent=0 // pred_check_branch
    %19 = sbr.rel (0) target = $region17
  $region16: #{swin_block_pallas.3} parent=0 // pred_region
    _
  $region17: #{swin_block_pallas.3} parent=0 // pred_fallthru
    _
  // Predicated region
  $region18: #{swin_block_pallas.3} parent=0 // pred_check
    _
  $region19: #{swin_block_pallas.3} parent=0 // pred_check_branch
    %21 = sbr.rel (0) target = $region21
  $region20: #{swin_block_pallas.3} parent=0 // pred_region
    _
  $region21: #{swin_block_pallas.3} parent=0 // pred_fallthru
    _
  // Predicated region
  $region22: #{swin_block_pallas.3} parent=0 // pred_check
    _
  $region23: #{swin_block_pallas.3} parent=0 // pred_check_branch
    %23 = sbr.rel (0) target = $region25
  $region24: #{swin_block_pallas.3} parent=0 // pred_region
    _
  $region25: #{swin_block_pallas.3} parent=0 // pred_fallthru
    _
  // Predicated region
  $region26: #{swin_block_pallas.3} parent=0 // pred_check
    _
  $region27: #{swin_block_pallas.3} parent=0 // pred_check_branch
    %25 = sbr.rel (0) target = $region29
  $region28: #{swin_block_pallas.3} parent=0 // pred_region
    _
  $region29: #{swin_block_pallas.3} parent=0 // pred_fallthru
    _
  %v26 = vld [vmem:[%s0] sm:$0xff]
  %v27 = vld [vmem:[%s0 + $0x8] sm:$0xff]
  %v28 = vld [vmem:[%s0 + $0x10] sm:$0xff]
  %v29 = vld [vmem:[%s0 + $0x18] sm:$0xff]
  %v30 = vld [vmem:[%s0 + $0x20] sm:$0xff]
  %v31 = vld [vmem:[%s0 + $0x28] sm:$0xff]
  %v32 = vld [vmem:[%s0 + $0x30] sm:$0xff]
  %v33 = vld [vmem:[%s0 + $0x38] sm:$0xff]
  %v34 = vld [vmem:[%s0 + $0x40] sm:$0xff]
  %v35 = vld [vmem:[%s0 + $0x48] sm:$0xff]
  %v36 = vld [vmem:[%s0 + $0x50] sm:$0xff]
  %v37 = vld [vmem:[%s0 + $0x58] sm:$0xff]
  %v38 = vld [vmem:[%s0 + $0x60] sm:$0xff]
  %v39 = vld [vmem:[%s0 + $0x68] sm:$0xff]
  %v40 = vld [vmem:[%s0 + $0x70] sm:$0xff]
  %v41 = vld [vmem:[%s0 + $0x78] sm:$0xff]
  %vm42 = vcmask 261120
  %v43 = vsel %vm42, %v26, 0.0
  %44 = vadd.xlane.f32.xlu0 %v43
  %v45 = vpop.xlane.xlu0 %44
  %v46 = vsel %vm42, %v27, 0.0
  %47 = vadd.xlane.f32.xlu0 %v46
  %v48 = vpop.xlane.xlu0 %47
  %v49 = vsel %vm42, %v28, 0.0
  %50 = vadd.xlane.f32.xlu0 %v49
  %v51 = vpop.xlane.xlu0 %50
  %v52 = vsel %vm42, %v29, 0.0
  %53 = vadd.xlane.f32.xlu0 %v52
  %v54 = vpop.xlane.xlu0 %53
  %v55 = vsel %vm42, %v30, 0.0
  %56 = vadd.xlane.f32.xlu0 %v55
  %v57 = vpop.xlane.xlu0 %56
  %v58 = vsel %vm42, %v31, 0.0
  %59 = vadd.xlane.f32.xlu0 %v58
  %v60 = vpop.xlane.xlu0 %59
  %v61 = vsel %vm42, %v32, 0.0
  %62 = vadd.xlane.f32.xlu0 %v61
  %v63 = vpop.xlane.xlu0 %62
  %v64 = vsel %vm42, %v33, 0.0
  %65 = vadd.xlane.f32.xlu0 %v64
  %v66 = vpop.xlane.xlu0 %65
  %v67 = vsel %vm42, %v34, 0.0
  %68 = vadd.xlane.f32.xlu0 %v67
  %v69 = vpop.xlane.xlu0 %68
  %v70 = vsel %vm42, %v35, 0.0
  %71 = vadd.xlane.f32.xlu0 %v70
  %v72 = vpop.xlane.xlu0 %71
  %v73 = vsel %vm42, %v36, 0.0
  %74 = vadd.xlane.f32.xlu0 %v73
  %v75 = vpop.xlane.xlu0 %74
  %v76 = vsel %vm42, %v37, 0.0
  %77 = vadd.xlane.f32.xlu0 %v76
  %v78 = vpop.xlane.xlu0 %77
  %v79 = vsel %vm42, %v38, 0.0
  %80 = vadd.xlane.f32.xlu0 %v79
  %v81 = vpop.xlane.xlu0 %80
  %v82 = vsel %vm42, %v39, 0.0
  %83 = vadd.xlane.f32.xlu0 %v82
  %v84 = vpop.xlane.xlu0 %83
  %v85 = vsel %vm42, %v40, 0.0
  %86 = vadd.xlane.f32.xlu0 %v85
  %v87 = vpop.xlane.xlu0 %86
  %v88 = vsel %vm42, %v41, 0.0
  %89 = vadd.xlane.f32.xlu0 %v88
  %v90 = vpop.xlane.xlu0 %89
  %v91 = vrcp.pop 32.0
  %v92 = vmul.f32 %v45, %v91
  %v93 = vmul.f32 %v48, %v91
  %v94 = vmul.f32 %v51, %v91
  %v95 = vmul.f32 %v54, %v91
  %v96 = vmul.f32 %v57, %v91
  %v97 = vmul.f32 %v60, %v91
  %v98 = vmul.f32 %v63, %v91
  %v99 = vmul.f32 %v66, %v91
  %v100 = vmul.f32 %v69, %v91
  %v101 = vmul.f32 %v72, %v91
  %v102 = vmul.f32 %v75, %v91
  %v103 = vmul.f32 %v78, %v91
  %v104 = vmul.f32 %v81, %v91
  %v105 = vmul.f32 %v84, %v91
  %v106 = vmul.f32 %v87, %v91
  %v107 = vmul.f32 %v90, %v91
  %v108 = vsub.f32 %v26, %v92
  %v109 = vsub.f32 %v27, %v93
  %v110 = vsub.f32 %v28, %v94
  %v111 = vsub.f32 %v29, %v95
  %v112 = vsub.f32 %v30, %v96
  %v113 = vsub.f32 %v31, %v97
  %v114 = vsub.f32 %v32, %v98
  %v115 = vsub.f32 %v33, %v99
  %v116 = vsub.f32 %v34, %v100
  %v117 = vsub.f32 %v35, %v101
  %v118 = vsub.f32 %v36, %v102
  %v119 = vsub.f32 %v37, %v103
  %v120 = vsub.f32 %v38, %v104
  %v121 = vsub.f32 %v39, %v105
  %v122 = vsub.f32 %v40, %v106
  %v123 = vsub.f32 %v41, %v107
  %v124 = vmul.f32 %v108, %v108
  %v125 = vmul.f32 %v109, %v109
  %v126 = vmul.f32 %v110, %v110
  %v127 = vmul.f32 %v111, %v111
  %v128 = vmul.f32 %v112, %v112
  %v129 = vmul.f32 %v113, %v113
  %v130 = vmul.f32 %v114, %v114
  %v131 = vmul.f32 %v115, %v115
  %v132 = vmul.f32 %v116, %v116
  %v133 = vmul.f32 %v117, %v117
  %v134 = vmul.f32 %v118, %v118
  %v135 = vmul.f32 %v119, %v119
  %v136 = vmul.f32 %v120, %v120
  %v137 = vmul.f32 %v121, %v121
  %v138 = vmul.f32 %v122, %v122
  %v139 = vmul.f32 %v123, %v123
  %v140 = vsel %vm42, %v124, 0.0
  %141 = vadd.xlane.f32.xlu0 %v140
  %v142 = vpop.xlane.xlu0 %141
  %v143 = vsel %vm42, %v125, 0.0
  %144 = vadd.xlane.f32.xlu0 %v143
  %v145 = vpop.xlane.xlu0 %144
  %v146 = vsel %vm42, %v126, 0.0
  %147 = vadd.xlane.f32.xlu0 %v146
  %v148 = vpop.xlane.xlu0 %147
  %v149 = vsel %vm42, %v127, 0.0
  %150 = vadd.xlane.f32.xlu0 %v149
  %v151 = vpop.xlane.xlu0 %150
  %v152 = vsel %vm42, %v128, 0.0
  %153 = vadd.xlane.f32.xlu0 %v152
  %v154 = vpop.xlane.xlu0 %153
  %v155 = vsel %vm42, %v129, 0.0
  %156 = vadd.xlane.f32.xlu0 %v155
  %v157 = vpop.xlane.xlu0 %156
  %v158 = vsel %vm42, %v130, 0.0
  %159 = vadd.xlane.f32.xlu0 %v158
  %v160 = vpop.xlane.xlu0 %159
  %v161 = vsel %vm42, %v131, 0.0
  %162 = vadd.xlane.f32.xlu0 %v161
  %v163 = vpop.xlane.xlu0 %162
  %v164 = vsel %vm42, %v132, 0.0
  %165 = vadd.xlane.f32.xlu0 %v164
  %v166 = vpop.xlane.xlu0 %165
  %v167 = vsel %vm42, %v133, 0.0
  %168 = vadd.xlane.f32.xlu0 %v167
  %v169 = vpop.xlane.xlu0 %168
  %v170 = vsel %vm42, %v134, 0.0
  %171 = vadd.xlane.f32.xlu0 %v170
  %v172 = vpop.xlane.xlu0 %171
  %v173 = vsel %vm42, %v135, 0.0
  %174 = vadd.xlane.f32.xlu0 %v173
  %v175 = vpop.xlane.xlu0 %174
  %v176 = vsel %vm42, %v136, 0.0
  %177 = vadd.xlane.f32.xlu0 %v176
  %v178 = vpop.xlane.xlu0 %177
  %v179 = vsel %vm42, %v137, 0.0
  %180 = vadd.xlane.f32.xlu0 %v179
  %v181 = vpop.xlane.xlu0 %180
  %v182 = vsel %vm42, %v138, 0.0
  %183 = vadd.xlane.f32.xlu0 %v182
  %v184 = vpop.xlane.xlu0 %183
  %v185 = vsel %vm42, %v139, 0.0
  %186 = vadd.xlane.f32.xlu0 %v185
  %v187 = vpop.xlane.xlu0 %186
  %v188 = vmul.f32 %v142, %v91
  %v189 = vmul.f32 %v145, %v91
  %v190 = vmul.f32 %v148, %v91
  %v191 = vmul.f32 %v151, %v91
  %v192 = vmul.f32 %v154, %v91
  %v193 = vmul.f32 %v157, %v91
  %v194 = vmul.f32 %v160, %v91
  %v195 = vmul.f32 %v163, %v91
  %v196 = vmul.f32 %v166, %v91
  %v197 = vmul.f32 %v169, %v91
  %v198 = vmul.f32 %v172, %v91
  %v199 = vmul.f32 %v175, %v91
  %v200 = vmul.f32 %v178, %v91
  %v201 = vmul.f32 %v181, %v91
  %v202 = vmul.f32 %v184, %v91
  %v203 = vmul.f32 %v187, %v91
  %v204 = vadd.f32 %v188, 1e-05
  %v205 = vadd.f32 %v189, 1e-05
  %v206 = vadd.f32 %v190, 1e-05
  %v207 = vadd.f32 %v191, 1e-05
  %v208 = vadd.f32 %v192, 1e-05
  %v209 = vadd.f32 %v193, 1e-05
  %v210 = vadd.f32 %v194, 1e-05
  %v211 = vadd.f32 %v195, 1e-05
  %v212 = vadd.f32 %v196, 1e-05
  %v213 = vadd.f32 %v197, 1e-05
  %v214 = vadd.f32 %v198, 1e-05
  %v215 = vadd.f32 %v199, 1e-05
  %v216 = vadd.f32 %v200, 1e-05
  %v217 = vadd.f32 %v201, 1e-05
  %v218 = vadd.f32 %v202, 1e-05
  %v219 = vadd.f32 %v203, 1e-05
  %v220 = vrsqrt.pop %v204
  %v221 = vrsqrt.pop %v205
  %v222 = vrsqrt.pop %v206
  %v223 = vrsqrt.pop %v207
  %v224 = vrsqrt.pop %v208
  %v225 = vrsqrt.pop %v209
  %v226 = vrsqrt.pop %v210
  %v227 = vrsqrt.pop %v211
  %v228 = vrsqrt.pop %v212
  %v229 = vrsqrt.pop %v213
  %v230 = vrsqrt.pop %v214
  %v231 = vrsqrt.pop %v215
  %v232 = vrsqrt.pop %v216
  %v233 = vrsqrt.pop %v217
  %v234 = vrsqrt.pop %v218
  %v235 = vrsqrt.pop %v219
  %v236 = vmul.f32 %v108, %v220
  %v237 = vmul.f32 %v109, %v221
  %v238 = vmul.f32 %v110, %v222
  %v239 = vmul.f32 %v111, %v223
  %v240 = vmul.f32 %v112, %v224
  %v241 = vmul.f32 %v113, %v225
  %v242 = vmul.f32 %v114, %v226
  %v243 = vmul.f32 %v115, %v227
  %v244 = vmul.f32 %v116, %v228
  %v245 = vmul.f32 %v117, %v229
  %v246 = vmul.f32 %v118, %v230
  %v247 = vmul.f32 %v119, %v231
  %v248 = vmul.f32 %v120, %v232
  %v249 = vmul.f32 %v121, %v233
  %v250 = vmul.f32 %v122, %v234
  %v251 = vmul.f32 %v123, %v235
  %v252 = vld [vmem:[%s1] sm:$0x1]
  %v254 = vlaneseq
  %v255 = vshrl.u32 %v254, 7
  %v256 = vsub.s32 0, %v255
  %v257 = vrot.slane %v252, %v256
  %v259 = vmul.f32 %v236, %v257
  %v260 = vmul.f32 %v237, %v257
  %v261 = vmul.f32 %v238, %v257
  %v262 = vmul.f32 %v239, %v257
  %v263 = vmul.f32 %v240, %v257
  %v264 = vmul.f32 %v241, %v257
  %v265 = vmul.f32 %v242, %v257
  %v266 = vmul.f32 %v243, %v257
  %v267 = vmul.f32 %v244, %v257
  %v268 = vmul.f32 %v245, %v257
  %v269 = vmul.f32 %v246, %v257
  %v270 = vmul.f32 %v247, %v257
  %v271 = vmul.f32 %v248, %v257
  %v272 = vmul.f32 %v249, %v257
  %v273 = vmul.f32 %v250, %v257
  %v274 = vmul.f32 %v251, %v257
  %v275 = vld [vmem:[%s2] sm:$0x1]
  %v277 = vlaneseq
  %v278 = vshrl.u32 %v277, 7
  %v279 = vsub.s32 0, %v278
  %v280 = vrot.slane %v275, %v279
  %v282 = vadd.f32 %v259, %v280
  %v283 = vadd.f32 %v260, %v280
  %v284 = vadd.f32 %v261, %v280
  %v285 = vadd.f32 %v262, %v280
  %v286 = vadd.f32 %v263, %v280
  %v287 = vadd.f32 %v264, %v280
  %v288 = vadd.f32 %v265, %v280
  %v289 = vadd.f32 %v266, %v280
  %v290 = vadd.f32 %v267, %v280
  %v291 = vadd.f32 %v268, %v280
  %v292 = vadd.f32 %v269, %v280
  %v293 = vadd.f32 %v270, %v280
  %v294 = vadd.f32 %v271, %v280
  %v295 = vadd.f32 %v272, %v280
  %v296 = vadd.f32 %v273, %v280
  %v297 = vadd.f32 %v274, %v280
  %v298 = vld [vmem:[%s3] sm:$0xff]
  %v299 = vld [vmem:[%s3 + $0x8] sm:$0xff]
  %v300 = vld [vmem:[%s3 + $0x10] sm:$0xff]
  %v301 = vld [vmem:[%s3 + $0x18] sm:$0xff]
  %v302 = vld [vmem:[%s4] sm:$0x1]
  %v304 = vlaneseq
  %v305 = vshrl.u32 %v304, 7
  %v306 = vsub.s32 0, %v305
  %v307 = vrot.slane %v302, %v306
  %v310 = vsel %vm42, %v282, 0
  %v313 = vsel %vm42, %v283, 0
  %v316 = vsel %vm42, %v284, 0
  %v319 = vsel %vm42, %v285, 0
  %v322 = vsel %vm42, %v286, 0
  %v325 = vsel %vm42, %v287, 0
  %v328 = vsel %vm42, %v288, 0
  %v331 = vsel %vm42, %v289, 0
  %v334 = vsel %vm42, %v290, 0
  %v337 = vsel %vm42, %v291, 0
  %v340 = vsel %vm42, %v292, 0
  %v343 = vsel %vm42, %v293, 0
  %v346 = vsel %vm42, %v294, 0
  %v349 = vsel %vm42, %v295, 0
  %v352 = vsel %vm42, %v296, 0
  %v355 = vsel %vm42, %v297, 0
  %357 = vmatprep.subr.mxu0 0.0
  %358 = vmatpush1.msra.mxu0 %v298
  %359 = vmatprep.subr.mxu0 0.0
  %360 = vmatpush1.msra.mxu0 %v299
  %361 = vmatprep.subr.mxu0 0.0
  %362 = vmatpush1.msra.mxu0 %v300
  %363 = vmatprep.subr.mxu0 0.0
  %364 = vmatpush1.msra.mxu0 %v301
  %365 = vmatprep.subr.mxu0 0.0
  %366 = vmatpush1.msra.mxu0 0.0
  %367 = vmatprep.subr.mxu0 0.0
  %368 = vmatpush1.msra.mxu0 0.0
  %369 = vmatprep.subr.mxu0 0.0
  %370 = vmatpush1.msra.mxu0 0.0
  %371 = vmatprep.subr.mxu0 0.0
  %372 = vmatpush1.msra.mxu0 0.0
  %373 = vmatprep.subr.mxu0 0.0
  %374 = vmatpush1.msra.mxu0 0.0
  %375 = vmatprep.subr.mxu0 0.0
  %376 = vmatpush1.msra.mxu0 0.0
  %377 = vmatprep.subr.mxu0 0.0
  %378 = vmatpush1.msra.mxu0 0.0
  %379 = vmatprep.subr.mxu0 0.0
  %380 = vmatpush1.msra.mxu0 0.0
  %381 = vmatprep.subr.mxu0 0.0
  %382 = vmatpush1.msra.mxu0 0.0
  %383 = vmatprep.subr.mxu0 0.0
  %384 = vmatpush1.msra.mxu0 0.0
  %385 = vmatprep.subr.mxu0 0.0
  %386 = vmatpush1.msra.mxu0 0.0
  %387 = vmatprep.subr.mxu0 0.0
  %388 = vmatpush1.msra.mxu0 0.0
  %389 = vmatprep.subr.mxu0 0.0
  %390 = vmatpush1.msra.mxu0 0.0
  %391 = vmatprep.subr.mxu0 0.0
  %392 = vmatpush1.msra.mxu0 0.0
  %393 = vmatprep.subr.mxu0 0.0
  %394 = vmatpush1.msra.mxu0 0.0
  %395 = vmatprep.subr.mxu0 0.0
  %396 = vmatpush1.msra.mxu0 0.0
  %397 = vmatprep.subr.mxu0 0.0
  %398 = vmatpush1.msra.mxu0 0.0
  %399 = vmatprep.subr.mxu0 0.0
  %400 = vmatpush1.msra.mxu0 0.0
  %401 = vmatprep.subr.mxu0 0.0
  %402 = vmatpush1.msra.mxu0 0.0
  %403 = vmatprep.subr.mxu0 0.0
  %404 = vmatpush1.msra.mxu0 0.0
  %405 = vmatprep.subr.mxu0 0.0
  %406 = vmatpush1.msra.mxu0 0.0
  %407 = vmatprep.subr.mxu0 0.0
  %408 = vmatpush1.msra.mxu0 0.0
  %409 = vmatprep.subr.mxu0 0.0
  %410 = vmatpush1.msra.mxu0 0.0
  %411 = vmatprep.subr.mxu0 0.0
  %412 = vmatpush1.msra.mxu0 0.0
  %413 = vmatprep.subr.mxu0 0.0
  %414 = vmatpush1.msra.mxu0 0.0
  %415 = vmatprep.subr.mxu0 0.0
  %416 = vmatpush1.msra.mxu0 0.0
  %417 = vmatprep.subr.mxu0 0.0
  %418 = vmatpush1.msra.mxu0 0.0
  %419 = vmatprep.subr.mxu0 0.0
  %420 = vmatpush1.msra.mxu0 0.0
  %421 = vmatprep.mubr.f32.mxu0 0.0
  %422 = vmatmul.mubr.f32.gmra.mrb[0].mxu0 %v310
  %v423 = vpop.f32.mrb[0].mxu0
  %v424 = vadd.f32 %v307, %v423
  %v425 = vpop.f32.mrb[0].mxu0
  %426 = vmatprep.mubr.f32.mxu0 0.0
  %427 = vmatmul.mubr.f32.gmra.mrb[0].mxu0 %v313
  %v428 = vpop.f32.mrb[0].mxu0
  %v429 = vadd.f32 %v307, %v428
  %v430 = vpop.f32.mrb[0].mxu0
  %431 = vmatprep.mubr.f32.mxu0 0.0
  %432 = vmatmul.mubr.f32.gmra.mrb[0].mxu0 %v316
  %v433 = vpop.f32.mrb[0].mxu0
  %v434 = vadd.f32 %v307, %v433
  %v435 = vpop.f32.mrb[0].mxu0
  %436 = vmatprep.mubr.f32.mxu0 0.0
  %437 = vmatmul.mubr.f32.gmra.mrb[0].mxu0 %v319
  %v438 = vpop.f32.mrb[0].mxu0
  %v439 = vadd.f32 %v307, %v438
  %v440 = vpop.f32.mrb[0].mxu0
  %441 = vmatprep.mubr.f32.mxu0 0.0
  %442 = vmatmul.mubr.f32.gmra.mrb[0].mxu0 %v322
  %v443 = vpop.f32.mrb[0].mxu0
  %v444 = vadd.f32 %v307, %v443
  %v445 = vpop.f32.mrb[0].mxu0
  %446 = vmatprep.mubr.f32.mxu0 0.0
  %447 = vmatmul.mubr.f32.gmra.mrb[0].mxu0 %v325
  %v448 = vpop.f32.mrb[0].mxu0
  %v449 = vadd.f32 %v307, %v448
  %v450 = vpop.f32.mrb[0].mxu0
  %451 = vmatprep.mubr.f32.mxu0 0.0
  %452 = vmatmul.mubr.f32.gmra.mrb[0].mxu0 %v328
  %v453 = vpop.f32.mrb[0].mxu0
  %v454 = vadd.f32 %v307, %v453
  %v455 = vpop.f32.mrb[0].mxu0
  %456 = vmatprep.mubr.f32.mxu0 0.0
  %457 = vmatmul.mubr.f32.gmra.mrb[0].mxu0 %v331
  %v458 = vpop.f32.mrb[0].mxu0
  %v459 = vadd.f32 %v307, %v458
  %v460 = vpop.f32.mrb[0].mxu0
  %461 = vmatprep.mubr.f32.mxu0 0.0
  %462 = vmatmul.mubr.f32.gmra.mrb[0].mxu0 %v334
  %v463 = vpop.f32.mrb[0].mxu0
  %v464 = vadd.f32 %v307, %v463
  %v465 = vpop.f32.mrb[0].mxu0
  %466 = vmatprep.mubr.f32.mxu0 0.0
  %467 = vmatmul.mubr.f32.gmra.mrb[0].mxu0 %v337
  %v468 = vpop.f32.mrb[0].mxu0
  %v469 = vadd.f32 %v307, %v468
  %v470 = vpop.f32.mrb[0].mxu0
  %471 = vmatprep.mubr.f32.mxu0 0.0
  %472 = vmatmul.mubr.f32.gmra.mrb[0].mxu0 %v340
  %v473 = vpop.f32.mrb[0].mxu0
  %v474 = vadd.f32 %v307, %v473
  %v475 = vpop.f32.mrb[0].mxu0
  %476 = vmatprep.mubr.f32.mxu0 0.0
  %477 = vmatmul.mubr.f32.gmra.mrb[0].mxu0 %v343
  %v478 = vpop.f32.mrb[0].mxu0
  %v479 = vadd.f32 %v307, %v478
  %v480 = vpop.f32.mrb[0].mxu0
  %481 = vmatprep.mubr.f32.mxu0 0.0
  %482 = vmatmul.mubr.f32.gmra.mrb[0].mxu0 %v346
  %v483 = vpop.f32.mrb[0].mxu0
  %v484 = vadd.f32 %v307, %v483
  %v485 = vpop.f32.mrb[0].mxu0
  %486 = vmatprep.mubr.f32.mxu0 0.0
  %487 = vmatmul.mubr.f32.gmra.mrb[0].mxu0 %v349
  %v488 = vpop.f32.mrb[0].mxu0
  %v489 = vadd.f32 %v307, %v488
  %v490 = vpop.f32.mrb[0].mxu0
  %491 = vmatprep.mubr.f32.mxu0 0.0
  %492 = vmatmul.mubr.f32.gmra.mrb[0].mxu0 %v352
  %v493 = vpop.f32.mrb[0].mxu0
  %v494 = vadd.f32 %v307, %v493
  %v495 = vpop.f32.mrb[0].mxu0
  %496 = vmatprep.mubr.f32.mxu0 0.0
  %497 = vmatmul.mubr.f32.gmra.mrb[0].mxu0 %v355
  %v498 = vpop.f32.mrb[0].mxu0
  %v499 = vadd.f32 %v307, %v498
  %v500 = vpop.f32.mrb[0].mxu0
  %501 = vdwg.mxu0
  %v502 = vmul.f32 %v424, 0.5
  %v503 = vmul.f32 %v429, 0.5
  %v504 = vmul.f32 %v434, 0.5
  %v505 = vmul.f32 %v439, 0.5
  %v506 = vmul.f32 %v444, 0.5
  %v507 = vmul.f32 %v449, 0.5
  %v508 = vmul.f32 %v454, 0.5
  %v509 = vmul.f32 %v459, 0.5
  %v510 = vmul.f32 %v464, 0.5
  %v511 = vmul.f32 %v469, 0.5
  %v512 = vmul.f32 %v474, 0.5
  %v513 = vmul.f32 %v479, 0.5
  %v514 = vmul.f32 %v484, 0.5
  %v515 = vmul.f32 %v489, 0.5
  %v516 = vmul.f32 %v494, 0.5
  %v517 = vmul.f32 %v499, 0.5
  %v518 = vmul.f32 %v424, 0.70710677
  %v519 = vmul.f32 %v429, 0.70710677
  %v520 = vmul.f32 %v434, 0.70710677
  %v521 = vmul.f32 %v439, 0.70710677
  %v522 = vmul.f32 %v444, 0.70710677
  %v523 = vmul.f32 %v449, 0.70710677
  %v524 = vmul.f32 %v454, 0.70710677
  %v525 = vmul.f32 %v459, 0.70710677
  %v526 = vmul.f32 %v464, 0.70710677
  %v527 = vmul.f32 %v469, 0.70710677
  %v528 = vmul.f32 %v474, 0.70710677
  %v529 = vmul.f32 %v479, 0.70710677
  %v530 = vmul.f32 %v484, 0.70710677
  %v531 = vmul.f32 %v489, 0.70710677
  %v532 = vmul.f32 %v494, 0.70710677
  %v533 = vmul.f32 %v499, 0.70710677
  %v534 = verf.f32.pop %v518
  %v535 = verf.f32.pop %v519
  %v536 = verf.f32.pop %v520
  %v537 = verf.f32.pop %v521
  %v538 = verf.f32.pop %v522
  %v539 = verf.f32.pop %v523
  %v540 = verf.f32.pop %v524
  %v541 = verf.f32.pop %v525
  %v542 = verf.f32.pop %v526
  %v543 = verf.f32.pop %v527
  %v544 = verf.f32.pop %v528
  %v545 = verf.f32.pop %v529
  %v546 = verf.f32.pop %v530
  %v547 = verf.f32.pop %v531
  %v548 = verf.f32.pop %v532
  %v549 = verf.f32.pop %v533
  %v550 = vadd.f32 %v534, 1.0
  %v551 = vadd.f32 %v535, 1.0
  %v552 = vadd.f32 %v536, 1.0
  %v553 = vadd.f32 %v537, 1.0
  %v554 = vadd.f32 %v538, 1.0
  %v555 = vadd.f32 %v539, 1.0
  %v556 = vadd.f32 %v540, 1.0
  %v557 = vadd.f32 %v541, 1.0
  %v558 = vadd.f32 %v542, 1.0
  %v559 = vadd.f32 %v543, 1.0
  %v560 = vadd.f32 %v544, 1.0
  %v561 = vadd.f32 %v545, 1.0
  %v562 = vadd.f32 %v546, 1.0
  %v563 = vadd.f32 %v547, 1.0
  %v564 = vadd.f32 %v548, 1.0
  %v565 = vadd.f32 %v549, 1.0
  %v566 = vmul.f32 %v502, %v550
  %v567 = vmul.f32 %v503, %v551
  %v568 = vmul.f32 %v504, %v552
  %v569 = vmul.f32 %v505, %v553
  %v570 = vmul.f32 %v506, %v554
  %v571 = vmul.f32 %v507, %v555
  %v572 = vmul.f32 %v508, %v556
  %v573 = vmul.f32 %v509, %v557
  %v574 = vmul.f32 %v510, %v558
  %v575 = vmul.f32 %v511, %v559
  %v576 = vmul.f32 %v512, %v560
  %v577 = vmul.f32 %v513, %v561
  %v578 = vmul.f32 %v514, %v562
  %v579 = vmul.f32 %v515, %v563
  %v580 = vmul.f32 %v516, %v564
  %v581 = vmul.f32 %v517, %v565
  %v582 = vld [vmem:[%s5] sm:$0xff]
  %v583 = vld [vmem:[%s5 + $0x8] sm:$0xff]
  %v584 = vld [vmem:[%s5 + $0x10] sm:$0xff]
  %v585 = vld [vmem:[%s5 + $0x18] sm:$0xff]
  %v586 = vld [vmem:[%s5 + $0x20] sm:$0xff]
  %v587 = vld [vmem:[%s5 + $0x28] sm:$0xff]
  %v588 = vld [vmem:[%s5 + $0x30] sm:$0xff]
  %v589 = vld [vmem:[%s5 + $0x38] sm:$0xff]
  %v590 = vld [vmem:[%s5 + $0x40] sm:$0xff]
  %v591 = vld [vmem:[%s5 + $0x48] sm:$0xff]
  %v592 = vld [vmem:[%s5 + $0x50] sm:$0xff]
  %v593 = vld [vmem:[%s5 + $0x58] sm:$0xff]
  %v594 = vld [vmem:[%s5 + $0x60] sm:$0xff]
  %v595 = vld [vmem:[%s5 + $0x68] sm:$0xff]
  %v596 = vld [vmem:[%s5 + $0x70] sm:$0xff]
  %v597 = vld [vmem:[%s5 + $0x78] sm:$0xff]
  %598 = vmatprep.subr.mxu0 0.0
  %599 = vmatpush1.msra.mxu0 %v582
  %600 = vmatprep.subr.mxu0 0.0
  %601 = vmatpush1.msra.mxu0 %v583
  %602 = vmatprep.subr.mxu0 0.0
  %603 = vmatpush1.msra.mxu0 %v584
  %604 = vmatprep.subr.mxu0 0.0
  %605 = vmatpush1.msra.mxu0 %v585
  %606 = vmatprep.subr.mxu0 0.0
  %607 = vmatpush1.msra.mxu0 %v586
  %608 = vmatprep.subr.mxu0 0.0
  %609 = vmatpush1.msra.mxu0 %v587
  %610 = vmatprep.subr.mxu0 0.0
  %611 = vmatpush1.msra.mxu0 %v588
  %612 = vmatprep.subr.mxu0 0.0
  %613 = vmatpush1.msra.mxu0 %v589
  %614 = vmatprep.subr.mxu0 0.0
  %615 = vmatpush1.msra.mxu0 %v590
  %616 = vmatprep.subr.mxu0 0.0
  %617 = vmatpush1.msra.mxu0 %v591
  %618 = vmatprep.subr.mxu0 0.0
  %619 = vmatpush1.msra.mxu0 %v592
  %620 = vmatprep.subr.mxu0 0.0
  %621 = vmatpush1.msra.mxu0 %v593
  %622 = vmatprep.subr.mxu0 0.0
  %623 = vmatpush1.msra.mxu0 %v594
  %624 = vmatprep.subr.mxu0 0.0
  %625 = vmatpush1.msra.mxu0 %v595
  %626 = vmatprep.subr.mxu0 0.0
  %627 = vmatpush1.msra.mxu0 %v596
  %628 = vmatprep.subr.mxu0 0.0
  %629 = vmatpush1.msra.mxu0 %v597
  %630 = vmatprep.subr.mxu0 0.0
  %631 = vmatpush1.msra.mxu0 0.0
  %632 = vmatprep.subr.mxu0 0.0
  %633 = vmatpush1.msra.mxu0 0.0
  %634 = vmatprep.subr.mxu0 0.0
  %635 = vmatpush1.msra.mxu0 0.0
  %636 = vmatprep.subr.mxu0 0.0
  %637 = vmatpush1.msra.mxu0 0.0
  %638 = vmatprep.subr.mxu0 0.0
  %639 = vmatpush1.msra.mxu0 0.0
  %640 = vmatprep.subr.mxu0 0.0
  %641 = vmatpush1.msra.mxu0 0.0
  %642 = vmatprep.subr.mxu0 0.0
  %643 = vmatpush1.msra.mxu0 0.0
  %644 = vmatprep.subr.mxu0 0.0
  %645 = vmatpush1.msra.mxu0 0.0
  %646 = vmatprep.subr.mxu0 0.0
  %647 = vmatpush1.msra.mxu0 0.0
  %648 = vmatprep.subr.mxu0 0.0
  %649 = vmatpush1.msra.mxu0 0.0
  %650 = vmatprep.subr.mxu0 0.0
  %651 = vmatpush1.msra.mxu0 0.0
  %652 = vmatprep.subr.mxu0 0.0
  %653 = vmatpush1.msra.mxu0 0.0
  %654 = vmatprep.subr.mxu0 0.0
  %655 = vmatpush1.msra.mxu0 0.0
  %656 = vmatprep.subr.mxu0 0.0
  %657 = vmatpush1.msra.mxu0 0.0
  %658 = vmatprep.subr.mxu0 0.0
  %659 = vmatpush1.msra.mxu0 0.0
  %660 = vmatprep.subr.mxu0 0.0
  %661 = vmatpush1.msra.mxu0 0.0
  %662 = vmatprep.mubr.f32.mxu0 0.0
  %663 = vmatmul.mubr.f32.gmra.mrb[0].mxu0 %v566
  %v664 = vpop.f32.mrb[0].mxu0
  %v665 = vadd.f32 0.0, %v664
  %v666 = vpop.f32.mrb[0].mxu0
  %667 = vmatprep.mubr.f32.mxu0 0.0
  %668 = vmatmul.mubr.f32.gmra.mrb[0].mxu0 %v567
  %v669 = vpop.f32.mrb[0].mxu0
  %v670 = vadd.f32 0.0, %v669
  %v671 = vpop.f32.mrb[0].mxu0
  %672 = vmatprep.mubr.f32.mxu0 0.0
  %673 = vmatmul.mubr.f32.gmra.mrb[0].mxu0 %v568
  %v674 = vpop.f32.mrb[0].mxu0
  %v675 = vadd.f32 0.0, %v674
  %v676 = vpop.f32.mrb[0].mxu0
  %677 = vmatprep.mubr.f32.mxu0 0.0
  %678 = vmatmul.mubr.f32.gmra.mrb[0].mxu0 %v569
  %v679 = vpop.f32.mrb[0].mxu0
  %v680 = vadd.f32 0.0, %v679
  %v681 = vpop.f32.mrb[0].mxu0
  %682 = vmatprep.mubr.f32.mxu0 0.0
  %683 = vmatmul.mubr.f32.gmra.mrb[0].mxu0 %v570
  %v684 = vpop.f32.mrb[0].mxu0
  %v685 = vadd.f32 0.0, %v684
  %v686 = vpop.f32.mrb[0].mxu0
  %687 = vmatprep.mubr.f32.mxu0 0.0
  %688 = vmatmul.mubr.f32.gmra.mrb[0].mxu0 %v571
  %v689 = vpop.f32.mrb[0].mxu0
  %v690 = vadd.f32 0.0, %v689
  %v691 = vpop.f32.mrb[0].mxu0
  %692 = vmatprep.mubr.f32.mxu0 0.0
  %693 = vmatmul.mubr.f32.gmra.mrb[0].mxu0 %v572
  %v694 = vpop.f32.mrb[0].mxu0
  %v695 = vadd.f32 0.0, %v694
  %v696 = vpop.f32.mrb[0].mxu0
  %697 = vmatprep.mubr.f32.mxu0 0.0
  %698 = vmatmul.mubr.f32.gmra.mrb[0].mxu0 %v573
  %v699 = vpop.f32.mrb[0].mxu0
  %v700 = vadd.f32 0.0, %v699
  %v701 = vpop.f32.mrb[0].mxu0
  %702 = vmatprep.mubr.f32.mxu0 0.0
  %703 = vmatmul.mubr.f32.gmra.mrb[0].mxu0 %v574
  %v704 = vpop.f32.mrb[0].mxu0
  %v705 = vadd.f32 0.0, %v704
  %v706 = vpop.f32.mrb[0].mxu0
  %707 = vmatprep.mubr.f32.mxu0 0.0
  %708 = vmatmul.mubr.f32.gmra.mrb[0].mxu0 %v575
  %v709 = vpop.f32.mrb[0].mxu0
  %v710 = vadd.f32 0.0, %v709
  %v711 = vpop.f32.mrb[0].mxu0
  %712 = vmatprep.mubr.f32.mxu0 0.0
  %713 = vmatmul.mubr.f32.gmra.mrb[0].mxu0 %v576
  %v714 = vpop.f32.mrb[0].mxu0
  %v715 = vadd.f32 0.0, %v714
  %v716 = vpop.f32.mrb[0].mxu0
  %717 = vmatprep.mubr.f32.mxu0 0.0
  %718 = vmatmul.mubr.f32.gmra.mrb[0].mxu0 %v577
  %v719 = vpop.f32.mrb[0].mxu0
  %v720 = vadd.f32 0.0, %v719
  %v721 = vpop.f32.mrb[0].mxu0
  %722 = vmatprep.mubr.f32.mxu0 0.0
  %723 = vmatmul.mubr.f32.gmra.mrb[0].mxu0 %v578
  %v724 = vpop.f32.mrb[0].mxu0
  %v725 = vadd.f32 0.0, %v724
  %v726 = vpop.f32.mrb[0].mxu0
  %727 = vmatprep.mubr.f32.mxu0 0.0
  %728 = vmatmul.mubr.f32.gmra.mrb[0].mxu0 %v579
  %v729 = vpop.f32.mrb[0].mxu0
  %v730 = vadd.f32 0.0, %v729
  %v731 = vpop.f32.mrb[0].mxu0
  %732 = vmatprep.mubr.f32.mxu0 0.0
  %733 = vmatmul.mubr.f32.gmra.mrb[0].mxu0 %v580
  %v734 = vpop.f32.mrb[0].mxu0
  %v735 = vadd.f32 0.0, %v734
  %v736 = vpop.f32.mrb[0].mxu0
  %737 = vmatprep.mubr.f32.mxu0 0.0
  %738 = vmatmul.mubr.f32.gmra.mrb[0].mxu0 %v581
  %v739 = vpop.f32.mrb[0].mxu0
  %v740 = vadd.f32 0.0, %v739
  %v741 = vpop.f32.mrb[0].mxu0
  %742 = vdwg.mxu0
  %p743 = scmp.eq.s32.totalorder 0, 0
  // Predicated region
  $region30: #{swin_block_pallas.3} parent=0 // pred_check
    %p744 = pneg %p743
  $region31: #{swin_block_pallas.3} parent=0 // pred_check_branch
    %746 = sbr.rel (%p744) target = $region33
  $region32: #{swin_block_pallas.3} parent=0 // pred_region
    %747 = vst.msk [vmem:[#allocation2] sm:$0xff] %vm42, 0.0
    %748 = vst.msk [vmem:[#allocation2 + $0x8] sm:$0xff] %vm42, 0.0
    %749 = vst.msk [vmem:[#allocation2 + $0x10] sm:$0xff] %vm42, 0.0
    %750 = vst.msk [vmem:[#allocation2 + $0x18] sm:$0xff] %vm42, 0.0
    %751 = vst.msk [vmem:[#allocation2 + $0x20] sm:$0xff] %vm42, 0.0
    %752 = vst.msk [vmem:[#allocation2 + $0x28] sm:$0xff] %vm42, 0.0
    %753 = vst.msk [vmem:[#allocation2 + $0x30] sm:$0xff] %vm42, 0.0
    %754 = vst.msk [vmem:[#allocation2 + $0x38] sm:$0xff] %vm42, 0.0
    %755 = vst.msk [vmem:[#allocation2 + $0x40] sm:$0xff] %vm42, 0.0
    %756 = vst.msk [vmem:[#allocation2 + $0x48] sm:$0xff] %vm42, 0.0
    %757 = vst.msk [vmem:[#allocation2 + $0x50] sm:$0xff] %vm42, 0.0
    %758 = vst.msk [vmem:[#allocation2 + $0x58] sm:$0xff] %vm42, 0.0
    %759 = vst.msk [vmem:[#allocation2 + $0x60] sm:$0xff] %vm42, 0.0
    %760 = vst.msk [vmem:[#allocation2 + $0x68] sm:$0xff] %vm42, 0.0
    %761 = vst.msk [vmem:[#allocation2 + $0x70] sm:$0xff] %vm42, 0.0
    %762 = vst.msk [vmem:[#allocation2 + $0x78] sm:$0xff] %vm42, 0.0
  $region33: #{swin_block_pallas.3} parent=0 // pred_fallthru
    _
  %v763 = vld [vmem:[#allocation2] sm:$0xff]
  %v764 = vld [vmem:[#allocation2 + $0x8] sm:$0xff]
  %v765 = vld [vmem:[#allocation2 + $0x10] sm:$0xff]
  %v766 = vld [vmem:[#allocation2 + $0x18] sm:$0xff]
  %v767 = vld [vmem:[#allocation2 + $0x20] sm:$0xff]
  %v768 = vld [vmem:[#allocation2 + $0x28] sm:$0xff]
  %v769 = vld [vmem:[#allocation2 + $0x30] sm:$0xff]
  %v770 = vld [vmem:[#allocation2 + $0x38] sm:$0xff]
  %v771 = vld [vmem:[#allocation2 + $0x40] sm:$0xff]
  %v772 = vld [vmem:[#allocation2 + $0x48] sm:$0xff]
  %v773 = vld [vmem:[#allocation2 + $0x50] sm:$0xff]
  %v774 = vld [vmem:[#allocation2 + $0x58] sm:$0xff]
  %v775 = vld [vmem:[#allocation2 + $0x60] sm:$0xff]
  %v776 = vld [vmem:[#allocation2 + $0x68] sm:$0xff]
  %v777 = vld [vmem:[#allocation2 + $0x70] sm:$0xff]
  %v778 = vld [vmem:[#allocation2 + $0x78] sm:$0xff]
  %v779 = vadd.f32 %v763, %v665
  %v780 = vadd.f32 %v764, %v670
  %v781 = vadd.f32 %v765, %v675
  %v782 = vadd.f32 %v766, %v680
  %v783 = vadd.f32 %v767, %v685
  %v784 = vadd.f32 %v768, %v690
  %v785 = vadd.f32 %v769, %v695
  %v786 = vadd.f32 %v770, %v700
  %v787 = vadd.f32 %v771, %v705
  %v788 = vadd.f32 %v772, %v710
  %v789 = vadd.f32 %v773, %v715
  %v790 = vadd.f32 %v774, %v720
  %v791 = vadd.f32 %v775, %v725
  %v792 = vadd.f32 %v776, %v730
  %v793 = vadd.f32 %v777, %v735
  %v794 = vadd.f32 %v778, %v740
  %795 = vst.msk [vmem:[#allocation2] sm:$0xff] %vm42, %v779
  %796 = vst.msk [vmem:[#allocation2 + $0x8] sm:$0xff] %vm42, %v780
  %797 = vst.msk [vmem:[#allocation2 + $0x10] sm:$0xff] %vm42, %v781
  %798 = vst.msk [vmem:[#allocation2 + $0x18] sm:$0xff] %vm42, %v782
  %799 = vst.msk [vmem:[#allocation2 + $0x20] sm:$0xff] %vm42, %v783
  %800 = vst.msk [vmem:[#allocation2 + $0x28] sm:$0xff] %vm42, %v784
  %801 = vst.msk [vmem:[#allocation2 + $0x30] sm:$0xff] %vm42, %v785
  %802 = vst.msk [vmem:[#allocation2 + $0x38] sm:$0xff] %vm42, %v786
  %803 = vst.msk [vmem:[#allocation2 + $0x40] sm:$0xff] %vm42, %v787
  %804 = vst.msk [vmem:[#allocation2 + $0x48] sm:$0xff] %vm42, %v788
  %805 = vst.msk [vmem:[#allocation2 + $0x50] sm:$0xff] %vm42, %v789
  %806 = vst.msk [vmem:[#allocation2 + $0x58] sm:$0xff] %vm42, %v790
  %807 = vst.msk [vmem:[#allocation2 + $0x60] sm:$0xff] %vm42, %v791
  %808 = vst.msk [vmem:[#allocation2 + $0x68] sm:$0xff] %vm42, %v792
  %809 = vst.msk [vmem:[#allocation2 + $0x70] sm:$0xff] %vm42, %v793
  %810 = vst.msk [vmem:[#allocation2 + $0x78] sm:$0xff] %vm42, %v794
  // Predicated region
  $region34: #{swin_block_pallas.3} parent=0 // pred_check
    %p811 = pneg %p743
  $region35: #{swin_block_pallas.3} parent=0 // pred_check_branch
    %813 = sbr.rel (%p811) target = $region37
  $region36: #{swin_block_pallas.3} parent=0 // pred_region
    %v814 = vld [vmem:[#allocation2] sm:$0xff]
    %v815 = vld [vmem:[#allocation2 + $0x8] sm:$0xff]
    %v816 = vld [vmem:[#allocation2 + $0x10] sm:$0xff]
    %v817 = vld [vmem:[#allocation2 + $0x18] sm:$0xff]
    %v818 = vld [vmem:[#allocation2 + $0x20] sm:$0xff]
    %v819 = vld [vmem:[#allocation2 + $0x28] sm:$0xff]
    %v820 = vld [vmem:[#allocation2 + $0x30] sm:$0xff]
    %v821 = vld [vmem:[#allocation2 + $0x38] sm:$0xff]
    %v822 = vld [vmem:[#allocation2 + $0x40] sm:$0xff]
    %v823 = vld [vmem:[#allocation2 + $0x48] sm:$0xff]
    %v824 = vld [vmem:[#allocation2 + $0x50] sm:$0xff]
    %v825 = vld [vmem:[#allocation2 + $0x58] sm:$0xff]
    %v826 = vld [vmem:[#allocation2 + $0x60] sm:$0xff]
    %v827 = vld [vmem:[#allocation2 + $0x68] sm:$0xff]
    %v828 = vld [vmem:[#allocation2 + $0x70] sm:$0xff]
    %v829 = vld [vmem:[#allocation2 + $0x78] sm:$0xff]
    %v830 = vadd.f32 %v26, %v814
    %v831 = vadd.f32 %v27, %v815
    %v832 = vadd.f32 %v28, %v816
    %v833 = vadd.f32 %v29, %v817
    %v834 = vadd.f32 %v30, %v818
    %v835 = vadd.f32 %v31, %v819
    %v836 = vadd.f32 %v32, %v820
    %v837 = vadd.f32 %v33, %v821
    %v838 = vadd.f32 %v34, %v822
    %v839 = vadd.f32 %v35, %v823
    %v840 = vadd.f32 %v36, %v824
    %v841 = vadd.f32 %v37, %v825
    %v842 = vadd.f32 %v38, %v826
    %v843 = vadd.f32 %v39, %v827
    %v844 = vadd.f32 %v40, %v828
    %v845 = vadd.f32 %v41, %v829
    %v846 = vld [vmem:[%s6] sm:$0x1]
    %v848 = vlaneseq
    %v849 = vshrl.u32 %v848, 7
    %v850 = vsub.s32 0, %v849
    %v851 = vrot.slane %v846, %v850
    %v853 = vadd.f32 %v830, %v851
    %v854 = vadd.f32 %v831, %v851
    %v855 = vadd.f32 %v832, %v851
    %v856 = vadd.f32 %v833, %v851
    %v857 = vadd.f32 %v834, %v851
    %v858 = vadd.f32 %v835, %v851
    %v859 = vadd.f32 %v836, %v851
    %v860 = vadd.f32 %v837, %v851
    %v861 = vadd.f32 %v838, %v851
    %v862 = vadd.f32 %v839, %v851
    %v863 = vadd.f32 %v840, %v851
    %v864 = vadd.f32 %v841, %v851
    %v865 = vadd.f32 %v842, %v851
    %v866 = vadd.f32 %v843, %v851
    %v867 = vadd.f32 %v844, %v851
    %v868 = vadd.f32 %v845, %v851
    %869 = vst.msk [vmem:[%s7] sm:$0xff] %vm42, %v853
    %870 = vst.msk [vmem:[%s7 + $0x8] sm:$0xff] %vm42, %v854
    %871 = vst.msk [vmem:[%s7 + $0x10] sm:$0xff] %vm42, %v855
    %872 = vst.msk [vmem:[%s7 + $0x18] sm:$0xff] %vm42, %v856
    %873 = vst.msk [vmem:[%s7 + $0x20] sm:$0xff] %vm42, %v857
    %874 = vst.msk [vmem:[%s7 + $0x28] sm:$0xff] %vm42, %v858
    %875 = vst.msk [vmem:[%s7 + $0x30] sm:$0xff] %vm42, %v859
    %876 = vst.msk [vmem:[%s7 + $0x38] sm:$0xff] %vm42, %v860
    %877 = vst.msk [vmem:[%s7 + $0x40] sm:$0xff] %vm42, %v861
    %878 = vst.msk [vmem:[%s7 + $0x48] sm:$0xff] %vm42, %v862
    %879 = vst.msk [vmem:[%s7 + $0x50] sm:$0xff] %vm42, %v863
    %880 = vst.msk [vmem:[%s7 + $0x58] sm:$0xff] %vm42, %v864
    %881 = vst.msk [vmem:[%s7 + $0x60] sm:$0xff] %vm42, %v865
    %882 = vst.msk [vmem:[%s7 + $0x68] sm:$0xff] %vm42, %v866
    %883 = vst.msk [vmem:[%s7 + $0x70] sm:$0xff] %vm42, %v867
    %884 = vst.msk [vmem:[%s7 + $0x78] sm:$0xff] %vm42, %v868
  $region37: #{swin_block_pallas.3} parent=0 // pred_fallthru
    _
  // Predicated region
  $region38: #{swin_block_pallas.3} parent=0 // pred_check
    _
  $region39: #{swin_block_pallas.3} parent=0 // pred_check_branch
    %886 = sbr.rel (0) target = $region41
  $region40: #{swin_block_pallas.3} parent=0 // pred_region
    _
  $region41: #{swin_block_pallas.3} parent=0 // pred_fallthru
    _
  // Predicated region
  $region42: #{swin_block_pallas.3} parent=0 // pred_check
    _
  $region43: #{swin_block_pallas.3} parent=0 // pred_check_branch
    %888 = sbr.rel (0) target = $region45
  $region44: #{swin_block_pallas.3} parent=0 // pred_region
    _
  $region45: #{swin_block_pallas.3} parent=0 // pred_fallthru
    _

// kernel: swin_block_pallas.2
$region0: #{swin_block_pallas.2}
  #allocation0 [shape = 'u32[]', space=smem, size = 0x4, offset = 0x4, fixed_abs, tag = 'smem constant byte address 0x4 - core index']
  #allocation1 [shape = 'u32[144,128]{1,0:T(1,128)}', space=vmem, size = 0x12000, scoped, tag = 'internal scratch']
  %s0 = inlined_call_operand.vmem [shape: f32[8,16,32], index: 0, kind: input, shape index: {}]
  %s1 = inlined_call_operand.vmem [shape: f32[8,16,32], index: 1, kind: input, shape index: {}]
  %s2 = inlined_call_operand.vmem [shape: f32[1,32], index: 2, kind: input, shape index: {}]
  %s3 = inlined_call_operand.vmem [shape: f32[1,32], index: 3, kind: input, shape index: {}]
  %s4 = inlined_call_operand.vmem [shape: f32[32,32], index: 4, kind: input, shape index: {}]
  %s5 = inlined_call_operand.vmem [shape: f32[1,32], index: 5, kind: input, shape index: {}]
  %s6 = inlined_call_operand.vmem [shape: f32[32,64], index: 6, kind: input, shape index: {}]
  %s7 = inlined_call_operand.vmem [shape: f32[1,64], index: 7, kind: input, shape index: {}]
  %s8 = inlined_call_operand.vmem [shape: f32[4,16,16], index: 8, kind: input, shape index: {}]
  %s9 = inlined_call_operand.vmem [shape: f32[32,32], index: 9, kind: input, shape index: {}]
  %s10 = inlined_call_operand.vmem [shape: f32[1,32], index: 10, kind: input, shape index: {}]
  %s11 = inlined_call_operand.vmem [shape: f32[4,16,16], index: 11, kind: input, shape index: {}]
  %s12 = inlined_call_operand.vmem [shape: f32[8,16,32], index: 12, kind: output, shape index: {}]
  %s13 = sld [smem:[#allocation0]]
  $region81: #{swin_block_pallas.2} parent=0
    _
  %s15 = ssub.s32 1, %s13
  %s16 = scalar_select 0, %s15, %s13
  loop: start=0, step=1, limit=4
  $region2: #{swin_block_pallas.2} parent=0 // loop_pre_header
    _
  $region3: #{swin_block_pallas.2} parent=0 // loop_header
    %s18 = sphi 0, %s22
    %p19 = scmp.ge.s32.totalorder %s18, 4
    %s28 = sphi 0, %s30
    %s31 = sphi 0, %s28
    %s32 = sphi 0, %s31
    %s48 = sphi 0, %s32
    %s54 = sphi 0, %s56
    %s57 = sphi 0, %s54
    %s58 = sphi 0, %s57
    %s74 = sphi 0, %s58
    %s78 = sphi 0, %s78
    %s80 = sphi 0, %s78
    %s81 = sphi 0, %s80
    %s95 = sphi 0, %s81
    %s99 = sphi 0, %s99
    %s101 = sphi 0, %s99
    %s102 = sphi 0, %s101
    %s116 = sphi 0, %s102
    %s120 = sphi 0, %s120
    %s122 = sphi 0, %s120
    %s123 = sphi 0, %s122
    %s137 = sphi 0, %s123
    %s141 = sphi 0, %s141
    %s143 = sphi 0, %s141
    %s144 = sphi 0, %s143
    %s158 = sphi 0, %s144
    %s162 = sphi 0, %s162
    %s164 = sphi 0, %s162
    %s165 = sphi 0, %s164
    %s179 = sphi 0, %s165
    %s183 = sphi 0, %s183
    %s185 = sphi 0, %s183
    %s186 = sphi 0, %s185
    %s200 = sphi 0, %s186
    %s204 = sphi 0, %s204
    %s206 = sphi 0, %s204
    %s207 = sphi 0, %s206
    %s221 = sphi 0, %s207
    %s225 = sphi 0, %s225
    %s227 = sphi 0, %s225
    %s228 = sphi 0, %s227
    %s242 = sphi 0, %s228
    %s246 = sphi 0, %s246
    %s248 = sphi 0, %s246
    %s249 = sphi 0, %s248
    %s263 = sphi 0, %s249
    %s267 = sphi 0, %s267
    %s269 = sphi 0, %s267
    %s270 = sphi 0, %s269
    %s284 = sphi 0, %s270
    %s290 = sphi 0, %s292
    %s293 = sphi 0, %s290
    %s294 = sphi 0, %s293
    %s310 = sphi 0, %s294
  $region4: #{swin_block_pallas.2} parent=0 // loop_header_branch
    %21 = sbr.rel (%p19) target = $region8
  $region5: #{swin_block_pallas.2} parent=0 // loop_body
    %s23 = ssub.s32 %s18, 1
    %s24 = ssub.s32 %s18, 2
    %s25 = sadd.s32 %s18, 1
    %s26 = ssub.s32 %s18, %s25
    %p27 = scmp.eq.s32.totalorder %s26, 0
    %s29 = sadd.s32 %s28, 1
    %s30 = scalar_select %p27, %s28, %s29
    %p33 = pneg %p27
    %p34 = scmp.eq.s32.totalorder %s18, 1
    %p35 = por %p33, %p34
    %p36 = scmp.ne.s32.totalorder %s28, %s31
    %p37 = scmp.eq.s32.totalorder %s18, 0
    %p38 = por %p36, %p37
    %p39 = scmp.ne.s32.totalorder %s28, %s31
    %p40 = scmp.eq.s32.totalorder %s23, 1
    %p41 = por %p39, %p40
    %p42 = scmp.ne.s32.totalorder %s31, %s32
    %p43 = scmp.eq.s32.totalorder %s23, 0
    %p44 = por %p42, %p43
    %p45 = scmp.ne.s32.totalorder %s31, %s32
    %p46 = scmp.eq.s32.totalorder %s24, 1
    %p47 = por %p45, %p46
    %p49 = scmp.ne.s32.totalorder %s32, %s48
    %p50 = scmp.eq.s32.totalorder %s24, 0
    %p51 = por %p49, %p50
    %s52 = ssub.s32 %s18, %s25
    %p53 = scmp.eq.s32.totalorder %s52, 0
    %s55 = sadd.s32 %s54, 1
    %s56 = scalar_select %p53, %s54, %s55
    %p59 = pneg %p53
    %p60 = scmp.eq.s32.totalorder %s18, 1
    %p61 = por %p59, %p60
    %p62 = scmp.ne.s32.totalorder %s54, %s57
    %p63 = scmp.eq.s32.totalorder %s18, 0
    %p64 = por %p62, %p63
    %p65 = scmp.ne.s32.totalorder %s54, %s57
    %p66 = scmp.eq.s32.totalorder %s23, 1
    %p67 = por %p65, %p66
    %p68 = scmp.ne.s32.totalorder %s57, %s58
    %p69 = scmp.eq.s32.totalorder %s23, 0
    %p70 = por %p68, %p69
    %p71 = scmp.ne.s32.totalorder %s57, %s58
    %p72 = scmp.eq.s32.totalorder %s24, 1
    %p73 = por %p71, %p72
    %p75 = scmp.ne.s32.totalorder %s58, %s74
    %p76 = scmp.eq.s32.totalorder %s24, 0
    %p77 = por %p75, %p76
    %s79 = sadd.s32 %s78, 1
    %p82 = scmp.eq.s32.totalorder %s18, 1
    %p83 = scmp.ne.s32.totalorder %s78, %s80
    %p84 = scmp.eq.s32.totalorder %s18, 0
    %p85 = por %p83, %p84
    %p86 = scmp.ne.s32.totalorder %s78, %s80
    %p87 = scmp.eq.s32.totalorder %s23, 1
    %p88 = por %p86, %p87
    %p89 = scmp.ne.s32.totalorder %s80, %s81
    %p90 = scmp.eq.s32.totalorder %s23, 0
    %p91 = por %p89, %p90
    %p92 = scmp.ne.s32.totalorder %s80, %s81
    %p93 = scmp.eq.s32.totalorder %s24, 1
    %p94 = por %p92, %p93
    %p96 = scmp.ne.s32.totalorder %s81, %s95
    %p97 = scmp.eq.s32.totalorder %s24, 0
    %p98 = por %p96, %p97
    %s100 = sadd.s32 %s99, 1
    %p103 = scmp.eq.s32.totalorder %s18, 1
    %p104 = scmp.ne.s32.totalorder %s99, %s101
    %p105 = scmp.eq.s32.totalorder %s18, 0
    %p106 = por %p104, %p105
    %p107 = scmp.ne.s32.totalorder %s99, %s101
    %p108 = scmp.eq.s32.totalorder %s23, 1
    %p109 = por %p107, %p108
    %p110 = scmp.ne.s32.totalorder %s101, %s102
    %p111 = scmp.eq.s32.totalorder %s23, 0
    %p112 = por %p110, %p111
    %p113 = scmp.ne.s32.totalorder %s101, %s102
    %p114 = scmp.eq.s32.totalorder %s24, 1
    %p115 = por %p113, %p114
    %p117 = scmp.ne.s32.totalorder %s102, %s116
    %p118 = scmp.eq.s32.totalorder %s24, 0
    %p119 = por %p117, %p118
    %s121 = sadd.s32 %s120, 1
    %p124 = scmp.eq.s32.totalorder %s18, 1
    %p125 = scmp.ne.s32.totalorder %s120, %s122
    %p126 = scmp.eq.s32.totalorder %s18, 0
    %p127 = por %p125, %p126
    %p128 = scmp.ne.s32.totalorder %s120, %s122
    %p129 = scmp.eq.s32.totalorder %s23, 1
    %p130 = por %p128, %p129
    %p131 = scmp.ne.s32.totalorder %s122, %s123
    %p132 = scmp.eq.s32.totalorder %s23, 0
    %p133 = por %p131, %p132
    %p134 = scmp.ne.s32.totalorder %s122, %s123
    %p135 = scmp.eq.s32.totalorder %s24, 1
    %p136 = por %p134, %p135
    %p138 = scmp.ne.s32.totalorder %s123, %s137
    %p139 = scmp.eq.s32.totalorder %s24, 0
    %p140 = por %p138, %p139
    %s142 = sadd.s32 %s141, 1
    %p145 = scmp.eq.s32.totalorder %s18, 1
    %p146 = scmp.ne.s32.totalorder %s141, %s143
    %p147 = scmp.eq.s32.totalorder %s18, 0
    %p148 = por %p146, %p147
    %p149 = scmp.ne.s32.totalorder %s141, %s143
    %p150 = scmp.eq.s32.totalorder %s23, 1
    %p151 = por %p149, %p150
    %p152 = scmp.ne.s32.totalorder %s143, %s144
    %p153 = scmp.eq.s32.totalorder %s23, 0
    %p154 = por %p152, %p153
    %p155 = scmp.ne.s32.totalorder %s143, %s144
    %p156 = scmp.eq.s32.totalorder %s24, 1
    %p157 = por %p155, %p156
    %p159 = scmp.ne.s32.totalorder %s144, %s158
    %p160 = scmp.eq.s32.totalorder %s24, 0
    %p161 = por %p159, %p160
    %s163 = sadd.s32 %s162, 1
    %p166 = scmp.eq.s32.totalorder %s18, 1
    %p167 = scmp.ne.s32.totalorder %s162, %s164
    %p168 = scmp.eq.s32.totalorder %s18, 0
    %p169 = por %p167, %p168
    %p170 = scmp.ne.s32.totalorder %s162, %s164
    %p171 = scmp.eq.s32.totalorder %s23, 1
    %p172 = por %p170, %p171
    %p173 = scmp.ne.s32.totalorder %s164, %s165
    %p174 = scmp.eq.s32.totalorder %s23, 0
    %p175 = por %p173, %p174
    %p176 = scmp.ne.s32.totalorder %s164, %s165
    %p177 = scmp.eq.s32.totalorder %s24, 1
    %p178 = por %p176, %p177
    %p180 = scmp.ne.s32.totalorder %s165, %s179
    %p181 = scmp.eq.s32.totalorder %s24, 0
    %p182 = por %p180, %p181
    %s184 = sadd.s32 %s183, 1
    %p187 = scmp.eq.s32.totalorder %s18, 1
    %p188 = scmp.ne.s32.totalorder %s183, %s185
    %p189 = scmp.eq.s32.totalorder %s18, 0
    %p190 = por %p188, %p189
    %p191 = scmp.ne.s32.totalorder %s183, %s185
    %p192 = scmp.eq.s32.totalorder %s23, 1
    %p193 = por %p191, %p192
    %p194 = scmp.ne.s32.totalorder %s185, %s186
    %p195 = scmp.eq.s32.totalorder %s23, 0
    %p196 = por %p194, %p195
    %p197 = scmp.ne.s32.totalorder %s185, %s186
    %p198 = scmp.eq.s32.totalorder %s24, 1
    %p199 = por %p197, %p198
    %p201 = scmp.ne.s32.totalorder %s186, %s200
    %p202 = scmp.eq.s32.totalorder %s24, 0
    %p203 = por %p201, %p202
    %s205 = sadd.s32 %s204, 1
    %p208 = scmp.eq.s32.totalorder %s18, 1
    %p209 = scmp.ne.s32.totalorder %s204, %s206
    %p210 = scmp.eq.s32.totalorder %s18, 0
    %p211 = por %p209, %p210
    %p212 = scmp.ne.s32.totalorder %s204, %s206
    %p213 = scmp.eq.s32.totalorder %s23, 1
    %p214 = por %p212, %p213
    %p215 = scmp.ne.s32.totalorder %s206, %s207
    %p216 = scmp.eq.s32.totalorder %s23, 0
    %p217 = por %p215, %p216
    %p218 = scmp.ne.s32.totalorder %s206, %s207
    %p219 = scmp.eq.s32.totalorder %s24, 1
    %p220 = por %p218, %p219
    %p222 = scmp.ne.s32.totalorder %s207, %s221
    %p223 = scmp.eq.s32.totalorder %s24, 0
    %p224 = por %p222, %p223
    %s226 = sadd.s32 %s225, 1
    %p229 = scmp.eq.s32.totalorder %s18, 1
    %p230 = scmp.ne.s32.totalorder %s225, %s227
    %p231 = scmp.eq.s32.totalorder %s18, 0
    %p232 = por %p230, %p231
    %p233 = scmp.ne.s32.totalorder %s225, %s227
    %p234 = scmp.eq.s32.totalorder %s23, 1
    %p235 = por %p233, %p234
    %p236 = scmp.ne.s32.totalorder %s227, %s228
    %p237 = scmp.eq.s32.totalorder %s23, 0
    %p238 = por %p236, %p237
    %p239 = scmp.ne.s32.totalorder %s227, %s228
    %p240 = scmp.eq.s32.totalorder %s24, 1
    %p241 = por %p239, %p240
    %p243 = scmp.ne.s32.totalorder %s228, %s242
    %p244 = scmp.eq.s32.totalorder %s24, 0
    %p245 = por %p243, %p244
    %s247 = sadd.s32 %s246, 1
    %p250 = scmp.eq.s32.totalorder %s18, 1
    %p251 = scmp.ne.s32.totalorder %s246, %s248
    %p252 = scmp.eq.s32.totalorder %s18, 0
    %p253 = por %p251, %p252
    %p254 = scmp.ne.s32.totalorder %s246, %s248
    %p255 = scmp.eq.s32.totalorder %s23, 1
    %p256 = por %p254, %p255
    %p257 = scmp.ne.s32.totalorder %s248, %s249
    %p258 = scmp.eq.s32.totalorder %s23, 0
    %p259 = por %p257, %p258
    %p260 = scmp.ne.s32.totalorder %s248, %s249
    %p261 = scmp.eq.s32.totalorder %s24, 1
    %p262 = por %p260, %p261
    %p264 = scmp.ne.s32.totalorder %s249, %s263
    %p265 = scmp.eq.s32.totalorder %s24, 0
    %p266 = por %p264, %p265
    %s268 = sadd.s32 %s267, 1
    %p271 = scmp.eq.s32.totalorder %s18, 1
    %p272 = scmp.ne.s32.totalorder %s267, %s269
    %p273 = scmp.eq.s32.totalorder %s18, 0
    %p274 = por %p272, %p273
    %p275 = scmp.ne.s32.totalorder %s267, %s269
    %p276 = scmp.eq.s32.totalorder %s23, 1
    %p277 = por %p275, %p276
    %p278 = scmp.ne.s32.totalorder %s269, %s270
    %p279 = scmp.eq.s32.totalorder %s23, 0
    %p280 = por %p278, %p279
    %p281 = scmp.ne.s32.totalorder %s269, %s270
    %p282 = scmp.eq.s32.totalorder %s24, 1
    %p283 = por %p281, %p282
    %p285 = scmp.ne.s32.totalorder %s270, %s284
    %p286 = scmp.eq.s32.totalorder %s24, 0
    %p287 = por %p285, %p286
    %s288 = ssub.s32 %s18, %s25
    %p289 = scmp.eq.s32.totalorder %s288, 0
    %s291 = sadd.s32 %s290, 1
    %s292 = scalar_select %p289, %s290, %s291
    %p295 = pneg %p289
    %p296 = scmp.eq.s32.totalorder %s18, 1
    %p297 = por %p295, %p296
    %p298 = scmp.ne.s32.totalorder %s290, %s293
    %p299 = scmp.eq.s32.totalorder %s18, 0
    %p300 = por %p298, %p299
    %p301 = scmp.ne.s32.totalorder %s290, %s293
    %p302 = scmp.eq.s32.totalorder %s23, 1
    %p303 = por %p301, %p302
    %p304 = scmp.ne.s32.totalorder %s293, %s294
    %p305 = scmp.eq.s32.totalorder %s23, 0
    %p306 = por %p304, %p305
    %p307 = scmp.ne.s32.totalorder %s293, %s294
    %p308 = scmp.eq.s32.totalorder %s24, 1
    %p309 = por %p307, %p308
    %p311 = scmp.ne.s32.totalorder %s294, %s310
    %p312 = scmp.eq.s32.totalorder %s24, 0
    %p313 = por %p311, %p312
    %p314 = scmp.le.s32.totalorder 1, %s18
    %p315 = scmp.lt.s32.totalorder %s18, 3
    %p316 = pnand %p314, %p315
    %p317 = pneg %p316
    // Predicated region
    $region9: #{swin_block_pallas.2} parent=5 // pred_check
      _
    $region10: #{swin_block_pallas.2} parent=5 // pred_check_branch
      %319 = sbr.rel (%p316) target = $region12
    $region11: #{swin_block_pallas.2} parent=5 // pred_region
      %s320 = ssub.s32 %s18, 1
      // Predicated region
      $region13: #{swin_block_pallas.2} parent=11 // pred_check
        %p321 = pneg %p91
      $region14: #{swin_block_pallas.2} parent=11 // pred_check_branch
        %323 = sbr.rel (%p321) target = $region16
      $region15: #{swin_block_pallas.2} parent=11 // pred_region
        _
      $region16: #{swin_block_pallas.2} parent=11 // pred_fallthru
        _
      // Predicated region
      $region17: #{swin_block_pallas.2} parent=11 // pred_check
        %p324 = pneg %p112
      $region18: #{swin_block_pallas.2} parent=11 // pred_check_branch
        %326 = sbr.rel (%p324) target = $region20
      $region19: #{swin_block_pallas.2} parent=11 // pred_region
        _
      $region20: #{swin_block_pallas.2} parent=11 // pred_fallthru
        _
      // Predicated region
      $region21: #{swin_block_pallas.2} parent=11 // pred_check
        %p327 = pneg %p133
      $region22: #{swin_block_pallas.2} parent=11 // pred_check_branch
        %329 = sbr.rel (%p327) target = $region24
      $region23: #{swin_block_pallas.2} parent=11 // pred_region
        _
      $region24: #{swin_block_pallas.2} parent=11 // pred_fallthru
        _
      // Predicated region
      $region25: #{swin_block_pallas.2} parent=11 // pred_check
        %p330 = pneg %p154
      $region26: #{swin_block_pallas.2} parent=11 // pred_check_branch
        %332 = sbr.rel (%p330) target = $region28
      $region27: #{swin_block_pallas.2} parent=11 // pred_region
        _
      $region28: #{swin_block_pallas.2} parent=11 // pred_fallthru
        _
      // Predicated region
      $region29: #{swin_block_pallas.2} parent=11 // pred_check
        %p333 = pneg %p175
      $region30: #{swin_block_pallas.2} parent=11 // pred_check_branch
        %335 = sbr.rel (%p333) target = $region32
      $region31: #{swin_block_pallas.2} parent=11 // pred_region
        _
      $region32: #{swin_block_pallas.2} parent=11 // pred_fallthru
        _
      // Predicated region
      $region33: #{swin_block_pallas.2} parent=11 // pred_check
        %p336 = pneg %p196
      $region34: #{swin_block_pallas.2} parent=11 // pred_check_branch
        %338 = sbr.rel (%p336) target = $region36
      $region35: #{swin_block_pallas.2} parent=11 // pred_region
        _
      $region36: #{swin_block_pallas.2} parent=11 // pred_fallthru
        _
      // Predicated region
      $region37: #{swin_block_pallas.2} parent=11 // pred_check
        %p339 = pneg %p217
      $region38: #{swin_block_pallas.2} parent=11 // pred_check_branch
        %341 = sbr.rel (%p339) target = $region40
      $region39: #{swin_block_pallas.2} parent=11 // pred_region
        _
      $region40: #{swin_block_pallas.2} parent=11 // pred_fallthru
        _
      // Predicated region
      $region41: #{swin_block_pallas.2} parent=11 // pred_check
        %p342 = pneg %p238
      $region42: #{swin_block_pallas.2} parent=11 // pred_check_branch
        %344 = sbr.rel (%p342) target = $region44
      $region43: #{swin_block_pallas.2} parent=11 // pred_region
        _
      $region44: #{swin_block_pallas.2} parent=11 // pred_fallthru
        _
      // Predicated region
      $region45: #{swin_block_pallas.2} parent=11 // pred_check
        %p345 = pneg %p259
      $region46: #{swin_block_pallas.2} parent=11 // pred_check_branch
        %347 = sbr.rel (%p345) target = $region48
      $region47: #{swin_block_pallas.2} parent=11 // pred_region
        _
      $region48: #{swin_block_pallas.2} parent=11 // pred_fallthru
        _
      // Predicated region
      $region49: #{swin_block_pallas.2} parent=11 // pred_check
        %p348 = pneg %p280
      $region50: #{swin_block_pallas.2} parent=11 // pred_check_branch
        %350 = sbr.rel (%p348) target = $region52
      $region51: #{swin_block_pallas.2} parent=11 // pred_region
        _
      $region52: #{swin_block_pallas.2} parent=11 // pred_fallthru
        _
    $region12: #{swin_block_pallas.2} parent=5 // pred_fallthru
      _
    %p351 = scmp.lt.s32.totalorder %s18, 2
    // Predicated region
    $region53: #{swin_block_pallas.2} parent=5 // pred_check
      %p352 = pneg %p351
    $region54: #{swin_block_pallas.2} parent=5 // pred_check_branch
      %354 = sbr.rel (%p352) target = $region56
    $region55: #{swin_block_pallas.2} parent=5 // pred_region
      // Predicated region
      $region57: #{swin_block_pallas.2} parent=55 // pred_check
        %p355 = pneg %p38
      $region58: #{swin_block_pallas.2} parent=55 // pred_check_branch
        %357 = sbr.rel (%p355) target = $region60
      $region59: #{swin_block_pallas.2} parent=55 // pred_region
        %s358 = smul.u32 4, %s18
        %p359 = scmp.lt.s32.totalorder %s358, 7
        %s360 = scalar_select %p359, %s358, 7
        %s361 = smul.addr %s360, 2
        %s362 = smul.addr %s361, 8
        %s363 = scalar_lea.vmem %s0, %s362
        %s364 = smul.u32 4, %s18
      $region60: #{swin_block_pallas.2} parent=55 // pred_fallthru
        _
      // Predicated region
      $region61: #{swin_block_pallas.2} parent=55 // pred_check
        %p365 = pneg %p64
      $region62: #{swin_block_pallas.2} parent=55 // pred_check_branch
        %367 = sbr.rel (%p365) target = $region64
      $region63: #{swin_block_pallas.2} parent=55 // pred_region
        %s368 = smul.u32 4, %s18
        %p369 = scmp.lt.s32.totalorder %s368, 7
        %s370 = scalar_select %p369, %s368, 7
        %s371 = smul.addr %s370, 2
        %s372 = smul.addr %s371, 8
        %s373 = scalar_lea.vmem %s1, %s372
        %s374 = smul.u32 4, %s18
      $region64: #{swin_block_pallas.2} parent=55 // pred_fallthru
        _
    $region56: #{swin_block_pallas.2} parent=5 // pred_fallthru
      _
    %p375 = scmp.le.s32.totalorder 1, %s18
    %p376 = scmp.lt.s32.totalorder %s18, 3
    %p377 = pnand %p375, %p376
    %p378 = pneg %p377
    // Predicated region
    $region65: #{swin_block_pallas.2} parent=5 // pred_check
      _
    $region66: #{swin_block_pallas.2} parent=5 // pred_check_branch
      %380 = sbr.rel (%p377) target = $region68
    $region67: #{swin_block_pallas.2} parent=5 // pred_region
      %s381 = ssub.s32 %s18, 1
      %s382 = smul.u32 4, %s23
      %p383 = scmp.lt.s32.totalorder %s382, 7
      %s384 = scalar_select %p383, %s382, 7
      %s385 = smul.addr %s384, 2
      %s386 = smul.addr %s385, 8
      %s387 = scalar_lea.vmem %s0, %s386
      %p388 = pneg %p44
      %p389 = pneg %p41
      %s390 = smul.u32 4, %s23
      %p391 = scmp.lt.s32.totalorder %s390, 7
      %s392 = scalar_select %p391, %s390, 7
      %s393 = smul.addr %s392, 2
      %s394 = smul.addr %s393, 8
      %s395 = scalar_lea.vmem %s1, %s394
      %p396 = pneg %p70
      %p397 = pneg %p67
      %p398 = pneg %p91
      %p399 = pneg %p88
      %p400 = pneg %p112
      %p401 = pneg %p109
      %p402 = pneg %p133
      %p403 = pneg %p130
      %p404 = pneg %p154
      %p405 = pneg %p151
      %p406 = pneg %p175
      %p407 = pneg %p172
      %p408 = pneg %p196
      %p409 = pneg %p193
      %p410 = pneg %p217
      %p411 = pneg %p214
      %p412 = pneg %p238
      %p413 = pneg %p235
      %p414 = pneg %p259
      %p415 = pneg %p256
      %p416 = pneg %p280
      %p417 = pneg %p277
      %p418 = pneg %p306
      %p419 = pneg %p303
      %s420 = smul.u32 4, %s23
      %p421 = scmp.lt.s32.totalorder %s420, 7
      %s422 = scalar_select %p421, %s420, 7
      %s423 = smul.addr %s422, 2
      %s424 = smul.addr %s423, 8
      %s425 = scalar_lea.vmem %s12, %s424
      %s426 = smul.u32 4, %s23
      %p427 = scmp.lt.s32.totalorder %s426, 7
      %s428 = scalar_select %p427, %s426, 7
      %s429 = smul.addr %s428, 2
      %s430 = smul.addr %s429, 8
      %s431 = scalar_lea.vmem %s0, %s430
      %s432 = smul.u32 4, %s23
      %s433 = smul.u32 4, %s23
      %p434 = scmp.lt.s32.totalorder %s433, 7
      %s435 = scalar_select %p434, %s433, 7
      %s436 = smul.addr %s435, 2
      %s437 = smul.addr %s436, 8
      %s438 = scalar_lea.vmem %s1, %s437
      %s439 = smul.u32 4, %s23
      %s440 = smul.u32 4, %s23
      %p441 = scmp.lt.s32.totalorder %s440, 7
      %s442 = scalar_select %p441, %s440, 7
      %s443 = smul.addr %s442, 2
      %s444 = smul.addr %s443, 8
      %s445 = scalar_lea.vmem %s12, %s444
      %s446 = smul.u32 4, %s23
      %v447 = vld [vmem:[%s431] sm:$0xff]
      %v448 = vld [vmem:[%s431 + $0x8] sm:$0xff]
      %v449 = vld [vmem:[%s431 + $0x10] sm:$0xff]
      %v450 = vld [vmem:[%s431 + $0x18] sm:$0xff]
      %v451 = vld [vmem:[%s431 + $0x20] sm:$0xff]
      %v452 = vld [vmem:[%s431 + $0x28] sm:$0xff]
      %v453 = vld [vmem:[%s431 + $0x30] sm:$0xff]
      %v454 = vld [vmem:[%s431 + $0x38] sm:$0xff]
      %vm455 = vcmask 261120
      %v456 = vsel %vm455, %v447, 0.0
      %457 = vadd.xlane.f32.xlu0 %v456
      %v458 = vpop.xlane.xlu0 %457
      %v459 = vsel %vm455, %v448, 0.0
      %460 = vadd.xlane.f32.xlu0 %v459
      %v461 = vpop.xlane.xlu0 %460
      %v462 = vsel %vm455, %v449, 0.0
      %463 = vadd.xlane.f32.xlu0 %v462
      %v464 = vpop.xlane.xlu0 %463
      %v465 = vsel %vm455, %v450, 0.0
      %466 = vadd.xlane.f32.xlu0 %v465
      %v467 = vpop.xlane.xlu0 %466
      %v468 = vsel %vm455, %v451, 0.0
      %469 = vadd.xlane.f32.xlu0 %v468
      %v470 = vpop.xlane.xlu0 %469
      %v471 = vsel %vm455, %v452, 0.0
      %472 = vadd.xlane.f32.xlu0 %v471
      %v473 = vpop.xlane.xlu0 %472
      %v474 = vsel %vm455, %v453, 0.0
      %475 = vadd.xlane.f32.xlu0 %v474
      %v476 = vpop.xlane.xlu0 %475
      %v477 = vsel %vm455, %v454, 0.0
      %478 = vadd.xlane.f32.xlu0 %v477
      %v479 = vpop.xlane.xlu0 %478
      %v480 = vrcp.pop 32.0
      %v481 = vmul.f32 %v458, %v480
      %v482 = vmul.f32 %v461, %v480
      %v483 = vmul.f32 %v464, %v480
      %v484 = vmul.f32 %v467, %v480
      %v485 = vmul.f32 %v470, %v480
      %v486 = vmul.f32 %v473, %v480
      %v487 = vmul.f32 %v476, %v480
      %v488 = vmul.f32 %v479, %v480
      %v489 = vsub.f32 %v447, %v481
      %v490 = vsub.f32 %v448, %v482
      %v491 = vsub.f32 %v449, %v483
      %v492 = vsub.f32 %v450, %v484
      %v493 = vsub.f32 %v451, %v485
      %v494 = vsub.f32 %v452, %v486
      %v495 = vsub.f32 %v453, %v487
      %v496 = vsub.f32 %v454, %v488
      %v497 = vmul.f32 %v489, %v489
      %v498 = vmul.f32 %v490, %v490
      %v499 = vmul.f32 %v491, %v491
      %v500 = vmul.f32 %v492, %v492
      %v501 = vmul.f32 %v493, %v493
      %v502 = vmul.f32 %v494, %v494
      %v503 = vmul.f32 %v495, %v495
      %v504 = vmul.f32 %v496, %v496
      %v505 = vsel %vm455, %v497, 0.0
      %506 = vadd.xlane.f32.xlu0 %v505
      %v507 = vpop.xlane.xlu0 %506
      %v508 = vsel %vm455, %v498, 0.0
      %509 = vadd.xlane.f32.xlu0 %v508
      %v510 = vpop.xlane.xlu0 %509
      %v511 = vsel %vm455, %v499, 0.0
      %512 = vadd.xlane.f32.xlu0 %v511
      %v513 = vpop.xlane.xlu0 %512
      %v514 = vsel %vm455, %v500, 0.0
      %515 = vadd.xlane.f32.xlu0 %v514
      %v516 = vpop.xlane.xlu0 %515
      %v517 = vsel %vm455, %v501, 0.0
      %518 = vadd.xlane.f32.xlu0 %v517
      %v519 = vpop.xlane.xlu0 %518
      %v520 = vsel %vm455, %v502, 0.0
      %521 = vadd.xlane.f32.xlu0 %v520
      %v522 = vpop.xlane.xlu0 %521
      %v523 = vsel %vm455, %v503, 0.0
      %524 = vadd.xlane.f32.xlu0 %v523
      %v525 = vpop.xlane.xlu0 %524
      %v526 = vsel %vm455, %v504, 0.0
      %527 = vadd.xlane.f32.xlu0 %v526
      %v528 = vpop.xlane.xlu0 %527
      %v529 = vmul.f32 %v507, %v480
      %v530 = vmul.f32 %v510, %v480
      %v531 = vmul.f32 %v513, %v480
      %v532 = vmul.f32 %v516, %v480
      %v533 = vmul.f32 %v519, %v480
      %v534 = vmul.f32 %v522, %v480
      %v535 = vmul.f32 %v525, %v480
      %v536 = vmul.f32 %v528, %v480
      %v537 = vadd.f32 %v529, 1e-05
      %v538 = vadd.f32 %v530, 1e-05
      %v539 = vadd.f32 %v531, 1e-05
      %v540 = vadd.f32 %v532, 1e-05
      %v541 = vadd.f32 %v533, 1e-05
      %v542 = vadd.f32 %v534, 1e-05
      %v543 = vadd.f32 %v535, 1e-05
      %v544 = vadd.f32 %v536, 1e-05
      %v545 = vrsqrt.pop %v537
      %v546 = vrsqrt.pop %v538
      %v547 = vrsqrt.pop %v539
      %v548 = vrsqrt.pop %v540
      %v549 = vrsqrt.pop %v541
      %v550 = vrsqrt.pop %v542
      %v551 = vrsqrt.pop %v543
      %v552 = vrsqrt.pop %v544
      %v553 = vmul.f32 %v489, %v545
      %v554 = vmul.f32 %v490, %v546
      %v555 = vmul.f32 %v491, %v547
      %v556 = vmul.f32 %v492, %v548
      %v557 = vmul.f32 %v493, %v549
      %v558 = vmul.f32 %v494, %v550
      %v559 = vmul.f32 %v495, %v551
      %v560 = vmul.f32 %v496, %v552
      %v561 = vld [vmem:[%s2] sm:$0x1]
      %v563 = vlaneseq
      %v564 = vshrl.u32 %v563, 7
      %v565 = vsub.s32 0, %v564
      %v566 = vrot.slane %v561, %v565
      %v568 = vmul.f32 %v553, %v566
      %v569 = vmul.f32 %v554, %v566
      %v570 = vmul.f32 %v555, %v566
      %v571 = vmul.f32 %v556, %v566
      %v572 = vmul.f32 %v557, %v566
      %v573 = vmul.f32 %v558, %v566
      %v574 = vmul.f32 %v559, %v566
      %v575 = vmul.f32 %v560, %v566
      %v576 = vld [vmem:[%s3] sm:$0x1]
      %v578 = vlaneseq
      %v579 = vshrl.u32 %v578, 7
      %v580 = vsub.s32 0, %v579
      %v581 = vrot.slane %v576, %v580
      %v583 = vadd.f32 %v568, %v581
      %v584 = vadd.f32 %v569, %v581
      %v585 = vadd.f32 %v570, %v581
      %v586 = vadd.f32 %v571, %v581
      %v587 = vadd.f32 %v572, %v581
      %v588 = vadd.f32 %v573, %v581
      %v589 = vadd.f32 %v574, %v581
      %v590 = vadd.f32 %v575, %v581
      %v591 = vld [vmem:[%s438] sm:$0xff]
      %v592 = vld [vmem:[%s438 + $0x8] sm:$0xff]
      %v593 = vld [vmem:[%s438 + $0x10] sm:$0xff]
      %v594 = vld [vmem:[%s438 + $0x18] sm:$0xff]
      %v595 = vld [vmem:[%s438 + $0x20] sm:$0xff]
      %v596 = vld [vmem:[%s438 + $0x28] sm:$0xff]
      %v597 = vld [vmem:[%s438 + $0x30] sm:$0xff]
      %v598 = vld [vmem:[%s438 + $0x38] sm:$0xff]
      %v599 = vsel %vm455, %v591, 0.0
      %600 = vadd.xlane.f32.xlu0 %v599
      %v601 = vpop.xlane.xlu0 %600
      %v602 = vsel %vm455, %v592, 0.0
      %603 = vadd.xlane.f32.xlu0 %v602
      %v604 = vpop.xlane.xlu0 %603
      %v605 = vsel %vm455, %v593, 0.0
      %606 = vadd.xlane.f32.xlu0 %v605
      %v607 = vpop.xlane.xlu0 %606
      %v608 = vsel %vm455, %v594, 0.0
      %609 = vadd.xlane.f32.xlu0 %v608
      %v610 = vpop.xlane.xlu0 %609
      %v611 = vsel %vm455, %v595, 0.0
      %612 = vadd.xlane.f32.xlu0 %v611
      %v613 = vpop.xlane.xlu0 %612
      %v614 = vsel %vm455, %v596, 0.0
      %615 = vadd.xlane.f32.xlu0 %v614
      %v616 = vpop.xlane.xlu0 %615
      %v617 = vsel %vm455, %v597, 0.0
      %618 = vadd.xlane.f32.xlu0 %v617
      %v619 = vpop.xlane.xlu0 %618
      %v620 = vsel %vm455, %v598, 0.0
      %621 = vadd.xlane.f32.xlu0 %v620
      %v622 = vpop.xlane.xlu0 %621
      %v623 = vmul.f32 %v601, %v480
      %v624 = vmul.f32 %v604, %v480
      %v625 = vmul.f32 %v607, %v480
      %v626 = vmul.f32 %v610, %v480
      %v627 = vmul.f32 %v613, %v480
      %v628 = vmul.f32 %v616, %v480
      %v629 = vmul.f32 %v619, %v480
      %v630 = vmul.f32 %v622, %v480
      %v631 = vsub.f32 %v591, %v623
      %v632 = vsub.f32 %v592, %v624
      %v633 = vsub.f32 %v593, %v625
      %v634 = vsub.f32 %v594, %v626
      %v635 = vsub.f32 %v595, %v627
      %v636 = vsub.f32 %v596, %v628
      %v637 = vsub.f32 %v597, %v629
      %v638 = vsub.f32 %v598, %v630
      %v639 = vmul.f32 %v631, %v631
      %v640 = vmul.f32 %v632, %v632
      %v641 = vmul.f32 %v633, %v633
      %v642 = vmul.f32 %v634, %v634
      %v643 = vmul.f32 %v635, %v635
      %v644 = vmul.f32 %v636, %v636
      %v645 = vmul.f32 %v637, %v637
      %v646 = vmul.f32 %v638, %v638
      %v647 = vsel %vm455, %v639, 0.0
      %648 = vadd.xlane.f32.xlu0 %v647
      %v649 = vpop.xlane.xlu0 %648
      %v650 = vsel %vm455, %v640, 0.0
      %651 = vadd.xlane.f32.xlu0 %v650
      %v652 = vpop.xlane.xlu0 %651
      %v653 = vsel %vm455, %v641, 0.0
      %654 = vadd.xlane.f32.xlu0 %v653
      %v655 = vpop.xlane.xlu0 %654
      %v656 = vsel %vm455, %v642, 0.0
      %657 = vadd.xlane.f32.xlu0 %v656
      %v658 = vpop.xlane.xlu0 %657
      %v659 = vsel %vm455, %v643, 0.0
      %660 = vadd.xlane.f32.xlu0 %v659
      %v661 = vpop.xlane.xlu0 %660
      %v662 = vsel %vm455, %v644, 0.0
      %663 = vadd.xlane.f32.xlu0 %v662
      %v664 = vpop.xlane.xlu0 %663
      %v665 = vsel %vm455, %v645, 0.0
      %666 = vadd.xlane.f32.xlu0 %v665
      %v667 = vpop.xlane.xlu0 %666
      %v668 = vsel %vm455, %v646, 0.0
      %669 = vadd.xlane.f32.xlu0 %v668
      %v670 = vpop.xlane.xlu0 %669
      %v671 = vmul.f32 %v649, %v480
      %v672 = vmul.f32 %v652, %v480
      %v673 = vmul.f32 %v655, %v480
      %v674 = vmul.f32 %v658, %v480
      %v675 = vmul.f32 %v661, %v480
      %v676 = vmul.f32 %v664, %v480
      %v677 = vmul.f32 %v667, %v480
      %v678 = vmul.f32 %v670, %v480
      %v679 = vadd.f32 %v671, 1e-05
      %v680 = vadd.f32 %v672, 1e-05
      %v681 = vadd.f32 %v673, 1e-05
      %v682 = vadd.f32 %v674, 1e-05
      %v683 = vadd.f32 %v675, 1e-05
      %v684 = vadd.f32 %v676, 1e-05
      %v685 = vadd.f32 %v677, 1e-05
      %v686 = vadd.f32 %v678, 1e-05
      %v687 = vrsqrt.pop %v679
      %v688 = vrsqrt.pop %v680
      %v689 = vrsqrt.pop %v681
      %v690 = vrsqrt.pop %v682
      %v691 = vrsqrt.pop %v683
      %v692 = vrsqrt.pop %v684
      %v693 = vrsqrt.pop %v685
      %v694 = vrsqrt.pop %v686
      %v695 = vmul.f32 %v631, %v687
      %v696 = vmul.f32 %v632, %v688
      %v697 = vmul.f32 %v633, %v689
      %v698 = vmul.f32 %v634, %v690
      %v699 = vmul.f32 %v635, %v691
      %v700 = vmul.f32 %v636, %v692
      %v701 = vmul.f32 %v637, %v693
      %v702 = vmul.f32 %v638, %v694
      %v703 = vmul.f32 %v695, %v566
      %v704 = vmul.f32 %v696, %v566
      %v705 = vmul.f32 %v697, %v566
      %v706 = vmul.f32 %v698, %v566
      %v707 = vmul.f32 %v699, %v566
      %v708 = vmul.f32 %v700, %v566
      %v709 = vmul.f32 %v701, %v566
      %v710 = vmul.f32 %v702, %v566
      %v711 = vadd.f32 %v703, %v581
      %v712 = vadd.f32 %v704, %v581
      %v713 = vadd.f32 %v705, %v581
      %v714 = vadd.f32 %v706, %v581
      %v715 = vadd.f32 %v707, %v581
      %v716 = vadd.f32 %v708, %v581
      %v717 = vadd.f32 %v709, %v581
      %v718 = vadd.f32 %v710, %v581
      %v719 = vld [vmem:[%s4] sm:$0xff]
      %v720 = vld [vmem:[%s4 + $0x8] sm:$0xff]
      %v721 = vld [vmem:[%s4 + $0x10] sm:$0xff]
      %v722 = vld [vmem:[%s4 + $0x18] sm:$0xff]
      %v723 = vld [vmem:[%s5] sm:$0x1]
      %v725 = vlaneseq
      %v726 = vshrl.u32 %v725, 7
      %v727 = vsub.s32 0, %v726
      %v728 = vrot.slane %v723, %v727
      %v731 = vsel %vm455, %v583, 0
      %v734 = vsel %vm455, %v584, 0
      %v737 = vsel %vm455, %v585, 0
      %v740 = vsel %vm455, %v586, 0
      %v743 = vsel %vm455, %v587, 0
      %v746 = vsel %vm455, %v588, 0
      %v749 = vsel %vm455, %v589, 0
      %v752 = vsel %vm455, %v590, 0
      %754 = vmatprep.subr.mxu0 0.0
      %755 = vmatpush1.msra.mxu0 %v719
      %756 = vmatprep.subr.mxu0 0.0
      %757 = vmatpush1.msra.mxu0 %v720
      %758 = vmatprep.subr.mxu0 0.0
      %759 = vmatpush1.msra.mxu0 %v721
      %760 = vmatprep.subr.mxu0 0.0
      %761 = vmatpush1.msra.mxu0 %v722
      %762 = vmatprep.subr.mxu0 0.0
      %763 = vmatpush1.msra.mxu0 0.0
      %764 = vmatprep.subr.mxu0 0.0
      %765 = vmatpush1.msra.mxu0 0.0
      %766 = vmatprep.subr.mxu0 0.0
      %767 = vmatpush1.msra.mxu0 0.0
      %768 = vmatprep.subr.mxu0 0.0
      %769 = vmatpush1.msra.mxu0 0.0
      %770 = vmatprep.subr.mxu0 0.0
      %771 = vmatpush1.msra.mxu0 0.0
      %772 = vmatprep.subr.mxu0 0.0
      %773 = vmatpush1.msra.mxu0 0.0
      %774 = vmatprep.subr.mxu0 0.0
      %775 = vmatpush1.msra.mxu0 0.0
      %776 = vmatprep.subr.mxu0 0.0
      %777 = vmatpush1.msra.mxu0 0.0
      %778 = vmatprep.subr.mxu0 0.0
      %779 = vmatpush1.msra.mxu0 0.0
      %780 = vmatprep.subr.mxu0 0.0
      %781 = vmatpush1.msra.mxu0 0.0
      %782 = vmatprep.subr.mxu0 0.0
      %783 = vmatpush1.msra.mxu0 0.0
      %784 = vmatprep.subr.mxu0 0.0
      %785 = vmatpush1.msra.mxu0 0.0
      %786 = vmatprep.subr.mxu0 0.0
      %787 = vmatpush1.msra.mxu0 0.0
      %788 = vmatprep.subr.mxu0 0.0
      %789 = vmatpush1.msra.mxu0 0.0
      %790 = vmatprep.subr.mxu0 0.0
      %791 = vmatpush1.msra.mxu0 0.0
      %792 = vmatprep.subr.mxu0 0.0
      %793 = vmatpush1.msra.mxu0 0.0
      %794 = vmatprep.subr.mxu0 0.0
      %795 = vmatpush1.msra.mxu0 0.0
      %796 = vmatprep.subr.mxu0 0.0
      %797 = vmatpush1.msra.mxu0 0.0
      %798 = vmatprep.subr.mxu0 0.0
      %799 = vmatpush1.msra.mxu0 0.0
      %800 = vmatprep.subr.mxu0 0.0
      %801 = vmatpush1.msra.mxu0 0.0
      %802 = vmatprep.subr.mxu0 0.0
      %803 = vmatpush1.msra.mxu0 0.0
      %804 = vmatprep.subr.mxu0 0.0
      %805 = vmatpush1.msra.mxu0 0.0
      %806 = vmatprep.subr.mxu0 0.0
      %807 = vmatpush1.msra.mxu0 0.0
      %808 = vmatprep.subr.mxu0 0.0
      %809 = vmatpush1.msra.mxu0 0.0
      %810 = vmatprep.subr.mxu0 0.0
      %811 = vmatpush1.msra.mxu0 0.0
      %812 = vmatprep.subr.mxu0 0.0
      %813 = vmatpush1.msra.mxu0 0.0
      %814 = vmatprep.subr.mxu0 0.0
      %815 = vmatpush1.msra.mxu0 0.0
      %816 = vmatprep.subr.mxu0 0.0
      %817 = vmatpush1.msra.mxu0 0.0
      %818 = vmatprep.mubr.f32.mxu0 0.0
      %819 = vmatmul.mubr.f32.gmra.mrb[0].mxu0 %v731
      %v820 = vpop.f32.mrb[0].mxu0
      %v821 = vadd.f32 %v728, %v820
      %v822 = vpop.f32.mrb[0].mxu0
      %823 = vmatprep.mubr.f32.mxu0 0.0
      %824 = vmatmul.mubr.f32.gmra.mrb[0].mxu0 %v734
      %v825 = vpop.f32.mrb[0].mxu0
      %v826 = vadd.f32 %v728, %v825
      %v827 = vpop.f32.mrb[0].mxu0
      %828 = vmatprep.mubr.f32.mxu0 0.0
      %829 = vmatmul.mubr.f32.gmra.mrb[0].mxu0 %v737
      %v830 = vpop.f32.mrb[0].mxu0
      %v831 = vadd.f32 %v728, %v830
      %v832 = vpop.f32.mrb[0].mxu0
      %833 = vmatprep.mubr.f32.mxu0 0.0
      %834 = vmatmul.mubr.f32.gmra.mrb[0].mxu0 %v740
      %v835 = vpop.f32.mrb[0].mxu0
      %v836 = vadd.f32 %v728, %v835
      %v837 = vpop.f32.mrb[0].mxu0
      %838 = vmatprep.mubr.f32.mxu0 0.0
      %839 = vmatmul.mubr.f32.gmra.mrb[0].mxu0 %v743
      %v840 = vpop.f32.mrb[0].mxu0
      %v841 = vadd.f32 %v728, %v840
      %v842 = vpop.f32.mrb[0].mxu0
      %843 = vmatprep.mubr.f32.mxu0 0.0
      %844 = vmatmul.mubr.f32.gmra.mrb[0].mxu0 %v746
      %v845 = vpop.f32.mrb[0].mxu0
      %v846 = vadd.f32 %v728, %v845
      %v847 = vpop.f32.mrb[0].mxu0
      %848 = vmatprep.mubr.f32.mxu0 0.0
      %849 = vmatmul.mubr.f32.gmra.mrb[0].mxu0 %v749
      %v850 = vpop.f32.mrb[0].mxu0
      %v851 = vadd.f32 %v728, %v850
      %v852 = vpop.f32.mrb[0].mxu0
      %853 = vmatprep.mubr.f32.mxu0 0.0
      %854 = vmatmul.mubr.f32.gmra.mrb[0].mxu0 %v752
      %v855 = vpop.f32.mrb[0].mxu0
      %v856 = vadd.f32 %v728, %v855
      %v857 = vpop.f32.mrb[0].mxu0
      %858 = vdwg.mxu0
      %v859 = vmul.f32 %v821, 0.35355338
      %v860 = vmul.f32 %v826, 0.35355338
      %v861 = vmul.f32 %v831, 0.35355338
      %v862 = vmul.f32 %v836, 0.35355338
      %v863 = vmul.f32 %v841, 0.35355338
      %v864 = vmul.f32 %v846, 0.35355338
      %v865 = vmul.f32 %v851, 0.35355338
      %v866 = vmul.f32 %v856, 0.35355338
      %v867 = vld [vmem:[%s6] sm:$0xff]
      %v868 = vld [vmem:[%s6 + $0x8] sm:$0xff]
      %v869 = vld [vmem:[%s6 + $0x10] sm:$0xff]
      %v870 = vld [vmem:[%s6 + $0x18] sm:$0xff]
      %v871 = vld [vmem:[%s7] sm:$0x1]
      %v873 = vlaneseq
      %v874 = vshrl.u32 %v873, 7
      %v875 = vsub.s32 0, %v874
      %v876 = vrot.slane %v871, %v875
      %v879 = vsel %vm455, %v711, 0
      %v882 = vsel %vm455, %v712, 0
      %v885 = vsel %vm455, %v713, 0
      %v888 = vsel %vm455, %v714, 0
      %v891 = vsel %vm455, %v715, 0
      %v894 = vsel %vm455, %v716, 0
      %v897 = vsel %vm455, %v717, 0
      %v900 = vsel %vm455, %v718, 0
      %902 = vmatprep.subr.mxu0 0.0
      %903 = vmatpush1.msra.mxu0 %v867
      %904 = vmatprep.subr.mxu0 0.0
      %905 = vmatpush1.msra.mxu0 %v868
      %906 = vmatprep.subr.mxu0 0.0
      %907 = vmatpush1.msra.mxu0 %v869
      %908 = vmatprep.subr.mxu0 0.0
      %909 = vmatpush1.msra.mxu0 %v870
      %910 = vmatprep.subr.mxu0 0.0
      %911 = vmatpush1.msra.mxu0 0.0
      %912 = vmatprep.subr.mxu0 0.0
      %913 = vmatpush1.msra.mxu0 0.0
      %914 = vmatprep.subr.mxu0 0.0
      %915 = vmatpush1.msra.mxu0 0.0
      %916 = vmatprep.subr.mxu0 0.0
      %917 = vmatpush1.msra.mxu0 0.0
      %918 = vmatprep.subr.mxu0 0.0
      %919 = vmatpush1.msra.mxu0 0.0
      %920 = vmatprep.subr.mxu0 0.0
      %921 = vmatpush1.msra.mxu0 0.0
      %922 = vmatprep.subr.mxu0 0.0
      %923 = vmatpush1.msra.mxu0 0.0
      %924 = vmatprep.subr.mxu0 0.0
      %925 = vmatpush1.msra.mxu0 0.0
      %926 = vmatprep.subr.mxu0 0.0
      %927 = vmatpush1.msra.mxu0 0.0
      %928 = vmatprep.subr.mxu0 0.0
      %929 = vmatpush1.msra.mxu0 0.0
      %930 = vmatprep.subr.mxu0 0.0
      %931 = vmatpush1.msra.mxu0 0.0
      %932 = vmatprep.subr.mxu0 0.0
      %933 = vmatpush1.msra.mxu0 0.0
      %934 = vmatprep.subr.mxu0 0.0
      %935 = vmatpush1.msra.mxu0 0.0
      %936 = vmatprep.subr.mxu0 0.0
      %937 = vmatpush1.msra.mxu0 0.0
      %938 = vmatprep.subr.mxu0 0.0
      %939 = vmatpush1.msra.mxu0 0.0
      %940 = vmatprep.subr.mxu0 0.0
      %941 = vmatpush1.msra.mxu0 0.0
      %942 = vmatprep.subr.mxu0 0.0
      %943 = vmatpush1.msra.mxu0 0.0
      %944 = vmatprep.subr.mxu0 0.0
      %945 = vmatpush1.msra.mxu0 0.0
      %946 = vmatprep.subr.mxu0 0.0
      %947 = vmatpush1.msra.mxu0 0.0
      %948 = vmatprep.subr.mxu0 0.0
      %949 = vmatpush1.msra.mxu0 0.0
      %950 = vmatprep.subr.mxu0 0.0
      %951 = vmatpush1.msra.mxu0 0.0
      %952 = vmatprep.subr.mxu0 0.0
      %953 = vmatpush1.msra.mxu0 0.0
      %954 = vmatprep.subr.mxu0 0.0
      %955 = vmatpush1.msra.mxu0 0.0
      %956 = vmatprep.subr.mxu0 0.0
      %957 = vmatpush1.msra.mxu0 0.0
      %958 = vmatprep.subr.mxu0 0.0
      %959 = vmatpush1.msra.mxu0 0.0
      %960 = vmatprep.subr.mxu0 0.0
      %961 = vmatpush1.msra.mxu0 0.0
      %962 = vmatprep.subr.mxu0 0.0
      %963 = vmatpush1.msra.mxu0 0.0
      %964 = vmatprep.subr.mxu0 0.0
      %965 = vmatpush1.msra.mxu0 0.0
      %966 = vmatprep.mubr.f32.mxu0 0.0
      %967 = vmatmul.mubr.f32.gmra.mrb[0].mxu0 %v879
      %v968 = vpop.f32.mrb[0].mxu0
      %v969 = vadd.f32 %v876, %v968
      %v970 = vpop.f32.mrb[0].mxu0
      %971 = vmatprep.mubr.f32.mxu0 0.0
      %972 = vmatmul.mubr.f32.gmra.mrb[0].mxu0 %v882
      %v973 = vpop.f32.mrb[0].mxu0
      %v974 = vadd.f32 %v876, %v973
      %v975 = vpop.f32.mrb[0].mxu0
      %976 = vmatprep.mubr.f32.mxu0 0.0
      %977 = vmatmul.mubr.f32.gmra.mrb[0].mxu0 %v885
      %v978 = vpop.f32.mrb[0].mxu0
      %v979 = vadd.f32 %v876, %v978
      %v980 = vpop.f32.mrb[0].mxu0
      %981 = vmatprep.mubr.f32.mxu0 0.0
      %982 = vmatmul.mubr.f32.gmra.mrb[0].mxu0 %v888
      %v983 = vpop.f32.mrb[0].mxu0
      %v984 = vadd.f32 %v876, %v983
      %v985 = vpop.f32.mrb[0].mxu0
      %986 = vmatprep.mubr.f32.mxu0 0.0
      %987 = vmatmul.mubr.f32.gmra.mrb[0].mxu0 %v891
      %v988 = vpop.f32.mrb[0].mxu0
      %v989 = vadd.f32 %v876, %v988
      %v990 = vpop.f32.mrb[0].mxu0
      %991 = vmatprep.mubr.f32.mxu0 0.0
      %992 = vmatmul.mubr.f32.gmra.mrb[0].mxu0 %v894
      %v993 = vpop.f32.mrb[0].mxu0
      %v994 = vadd.f32 %v876, %v993
      %v995 = vpop.f32.mrb[0].mxu0
      %996 = vmatprep.mubr.f32.mxu0 0.0
      %997 = vmatmul.mubr.f32.gmra.mrb[0].mxu0 %v897
      %v998 = vpop.f32.mrb[0].mxu0
      %v999 = vadd.f32 %v876, %v998
      %v1000 = vpop.f32.mrb[0].mxu0
      %1001 = vmatprep.mubr.f32.mxu0 0.0
      %1002 = vmatmul.mubr.f32.gmra.mrb[0].mxu0 %v900
      %v1003 = vpop.f32.mrb[0].mxu0
      %v1004 = vadd.f32 %v876, %v1003
      %v1005 = vpop.f32.mrb[0].mxu0
      %1006 = vdwg.mxu0
      %1015 = vrot.lane.b32.xlu0 %v859, 120
      %v1016 = vpop.permute.xlu0 %1015
      %1017 = vrot.lane.b32.xlu0 %v860, 120
      %v1018 = vpop.permute.xlu0 %1017
      %1019 = vrot.lane.b32.xlu0 %v861, 120
      %v1020 = vpop.permute.xlu0 %1019
      %1021 = vrot.lane.b32.xlu0 %v862, 120
      %v1022 = vpop.permute.xlu0 %1021
      %1023 = vrot.lane.b32.xlu0 %v863, 120
      %v1024 = vpop.permute.xlu0 %1023
      %1025 = vrot.lane.b32.xlu0 %v864, 120
      %v1026 = vpop.permute.xlu0 %1025
      %1027 = vrot.lane.b32.xlu0 %v865, 120
      %v1028 = vpop.permute.xlu0 %1027
      %1029 = vrot.lane.b32.xlu0 %v866, 120
      %v1030 = vpop.permute.xlu0 %1029
      %1031 = vrot.lane.b32.xlu0 %v859, 112
      %v1032 = vpop.permute.xlu0 %1031
      %1033 = vrot.lane.b32.xlu0 %v860, 112
      %v1034 = vpop.permute.xlu0 %1033
      %1035 = vrot.lane.b32.xlu0 %v861, 112
      %v1036 = vpop.permute.xlu0 %1035
      %1037 = vrot.lane.b32.xlu0 %v862, 112
      %v1038 = vpop.permute.xlu0 %1037
      %1039 = vrot.lane.b32.xlu0 %v863, 112
      %v1040 = vpop.permute.xlu0 %1039
      %1041 = vrot.lane.b32.xlu0 %v864, 112
      %v1042 = vpop.permute.xlu0 %1041
      %1043 = vrot.lane.b32.xlu0 %v865, 112
      %v1044 = vpop.permute.xlu0 %1043
      %1045 = vrot.lane.b32.xlu0 %v866, 112
      %v1046 = vpop.permute.xlu0 %1045
      %1047 = vrot.lane.b32.xlu0 %v859, 104
      %v1048 = vpop.permute.xlu0 %1047
      %1049 = vrot.lane.b32.xlu0 %v860, 104
      %v1050 = vpop.permute.xlu0 %1049
      %1051 = vrot.lane.b32.xlu0 %v861, 104
      %v1052 = vpop.permute.xlu0 %1051
      %1053 = vrot.lane.b32.xlu0 %v862, 104
      %v1054 = vpop.permute.xlu0 %1053
      %1055 = vrot.lane.b32.xlu0 %v863, 104
      %v1056 = vpop.permute.xlu0 %1055
      %1057 = vrot.lane.b32.xlu0 %v864, 104
      %v1058 = vpop.permute.xlu0 %1057
      %1059 = vrot.lane.b32.xlu0 %v865, 104
      %v1060 = vpop.permute.xlu0 %1059
      %1061 = vrot.lane.b32.xlu0 %v866, 104
      %v1062 = vpop.permute.xlu0 %1061
      %1071 = vrot.lane.b32.xlu0 %v969, 120
      %v1072 = vpop.permute.xlu0 %1071
      %1073 = vrot.lane.b32.xlu0 %v974, 120
      %v1074 = vpop.permute.xlu0 %1073
      %1075 = vrot.lane.b32.xlu0 %v979, 120
      %v1076 = vpop.permute.xlu0 %1075
      %1077 = vrot.lane.b32.xlu0 %v984, 120
      %v1078 = vpop.permute.xlu0 %1077
      %1079 = vrot.lane.b32.xlu0 %v989, 120
      %v1080 = vpop.permute.xlu0 %1079
      %1081 = vrot.lane.b32.xlu0 %v994, 120
      %v1082 = vpop.permute.xlu0 %1081
      %1083 = vrot.lane.b32.xlu0 %v999, 120
      %v1084 = vpop.permute.xlu0 %1083
      %1085 = vrot.lane.b32.xlu0 %v1004, 120
      %v1086 = vpop.permute.xlu0 %1085
      %1087 = vrot.lane.b32.xlu0 %v969, 112
      %v1088 = vpop.permute.xlu0 %1087
      %1089 = vrot.lane.b32.xlu0 %v974, 112
      %v1090 = vpop.permute.xlu0 %1089
      %1091 = vrot.lane.b32.xlu0 %v979, 112
      %v1092 = vpop.permute.xlu0 %1091
      %1093 = vrot.lane.b32.xlu0 %v984, 112
      %v1094 = vpop.permute.xlu0 %1093
      %1095 = vrot.lane.b32.xlu0 %v989, 112
      %v1096 = vpop.permute.xlu0 %1095
      %1097 = vrot.lane.b32.xlu0 %v994, 112
      %v1098 = vpop.permute.xlu0 %1097
      %1099 = vrot.lane.b32.xlu0 %v999, 112
      %v1100 = vpop.permute.xlu0 %1099
      %1101 = vrot.lane.b32.xlu0 %v1004, 112
      %v1102 = vpop.permute.xlu0 %1101
      %1103 = vrot.lane.b32.xlu0 %v969, 104
      %v1104 = vpop.permute.xlu0 %1103
      %1105 = vrot.lane.b32.xlu0 %v974, 104
      %v1106 = vpop.permute.xlu0 %1105
      %1107 = vrot.lane.b32.xlu0 %v979, 104
      %v1108 = vpop.permute.xlu0 %1107
      %1109 = vrot.lane.b32.xlu0 %v984, 104
      %v1110 = vpop.permute.xlu0 %1109
      %1111 = vrot.lane.b32.xlu0 %v989, 104
      %v1112 = vpop.permute.xlu0 %1111
      %1113 = vrot.lane.b32.xlu0 %v994, 104
      %v1114 = vpop.permute.xlu0 %1113
      %1115 = vrot.lane.b32.xlu0 %v999, 104
      %v1116 = vpop.permute.xlu0 %1115
      %1117 = vrot.lane.b32.xlu0 %v1004, 104
      %v1118 = vpop.permute.xlu0 %1117
      %vm1119 = vcmask 64512
      %v1120 = vsel %vm1119, %v859, 0
      %v1122 = vsel %vm1119, %v860, 0
      %v1124 = vsel %vm1119, %v969, 0
      %v1126 = vsel %vm1119, %v974, 0
      %1128 = vmatprep.subr.mxu0 0.0
      %1129 = vmatpush1.xpose.msra.mxu0 %v1124
      %1130 = vmatprep.subr.mxu0 0.0
      %1131 = vmatpush1.xpose.msra.mxu0 %v1126
      %1132 = vmatprep.subr.mxu0 0.0
      %1133 = vmatpush1.xpose.msra.mxu0 0.0
      %1134 = vmatprep.subr.mxu0 0.0
      %1135 = vmatpush1.xpose.msra.mxu0 0.0
      %1136 = vmatprep.subr.mxu0 0.0
      %1137 = vmatpush1.xpose.msra.mxu0 0.0
      %1138 = vmatprep.subr.mxu0 0.0
      %1139 = vmatpush1.xpose.msra.mxu0 0.0
      %1140 = vmatprep.subr.mxu0 0.0
      %1141 = vmatpush1.xpose.msra.mxu0 0.0
      %1142 = vmatprep.subr.mxu0 0.0
      %1143 = vmatpush1.xpose.msra.mxu0 0.0
      %1144 = vmatprep.subr.mxu0 0.0
      %1145 = vmatpush1.xpose.msra.mxu0 0.0
      %1146 = vmatprep.subr.mxu0 0.0
      %1147 = vmatpush1.xpose.msra.mxu0 0.0
      %1148 = vmatprep.subr.mxu0 0.0
      %1149 = vmatpush1.xpose.msra.mxu0 0.0
      %1150 = vmatprep.subr.mxu0 0.0
      %1151 = vmatpush1.xpose.msra.mxu0 0.0
      %1152 = vmatprep.subr.mxu0 0.0
      %1153 = vmatpush1.xpose.msra.mxu0 0.0
      %1154 = vmatprep.subr.mxu0 0.0
      %1155 = vmatpush1.xpose.msra.mxu0 0.0
      %1156 = vmatprep.subr.mxu0 0.0
      %1157 = vmatpush1.xpose.msra.mxu0 0.0
      %1158 = vmatprep.subr.mxu0 0.0
      %1159 = vmatpush1.xpose.msra.mxu0 0.0
      %1160 = vmatprep.subr.mxu0 0.0
      %1161 = vmatpush1.xpose.msra.mxu0 0.0
      %1162 = vmatprep.subr.mxu0 0.0
      %1163 = vmatpush1.xpose.msra.mxu0 0.0
      %1164 = vmatprep.subr.mxu0 0.0
      %1165 = vmatpush1.xpose.msra.mxu0 0.0
      %1166 = vmatprep.subr.mxu0 0.0
      %1167 = vmatpush1.xpose.msra.mxu0 0.0
      %1168 = vmatprep.subr.mxu0 0.0
      %1169 = vmatpush1.xpose.msra.mxu0 0.0
      %1170 = vmatprep.subr.mxu0 0.0
      %1171 = vmatpush1.xpose.msra.mxu0 0.0
      %1172 = vmatprep.subr.mxu0 0.0
      %1173 = vmatpush1.xpose.msra.mxu0 0.0
      %1174 = vmatprep.subr.mxu0 0.0
      %1175 = vmatpush1.xpose.msra.mxu0 0.0
      %1176 = vmatprep.subr.mxu0 0.0
      %1177 = vmatpush1.xpose.msra.mxu0 0.0
      %1178 = vmatprep.subr.mxu0 0.0
      %1179 = vmatpush1.xpose.msra.mxu0 0.0
      %1180 = vmatprep.subr.mxu0 0.0
      %1181 = vmatpush1.xpose.msra.mxu0 0.0
      %1182 = vmatprep.subr.mxu0 0.0
      %1183 = vmatpush1.xpose.msra.mxu0 0.0
      %1184 = vmatprep.subr.mxu0 0.0
      %1185 = vmatpush1.xpose.msra.mxu0 0.0
      %1186 = vmatprep.subr.mxu0 0.0
      %1187 = vmatpush1.xpose.msra.mxu0 0.0
      %1188 = vmatprep.subr.mxu0 0.0
      %1189 = vmatpush1.xpose.msra.mxu0 0.0
      %1190 = vmatprep.subr.mxu0 0.0
      %1191 = vmatpush1.xpose.msra.mxu0 0.0
      %1192 = vmatprep.mubr.f32.mxu0 0.0
      %1193 = vmatmul.mubr.f32.gmra.mrb[0].mxu0 %v1120
      %v1194 = vpop.f32.mrb[0].mxu0
      %v1195 = vadd.f32 0.0, %v1194
      %v1196 = vpop.f32.mrb[0].mxu0
      %1197 = vmatprep.mubr.f32.mxu0 0.0
      %1198 = vmatmul.mubr.f32.gmra.mrb[0].mxu0 %v1122
      %v1199 = vpop.f32.mrb[0].mxu0
      %v1200 = vadd.f32 0.0, %v1199
      %v1201 = vpop.f32.mrb[0].mxu0
      %1202 = vdwg.mxu0
      %v1203 = vsel %vm1119, %v861, 0
      %v1205 = vsel %vm1119, %v862, 0
      %v1207 = vsel %vm1119, %v979, 0
      %v1209 = vsel %vm1119, %v984, 0
      %1211 = vmatprep.subr.mxu0 0.0
      %1212 = vmatpush1.xpose.msra.mxu0 %v1207
      %1213 = vmatprep.subr.mxu0 0.0
      %1214 = vmatpush1.xpose.msra.mxu0 %v1209
      %1215 = vmatprep.subr.mxu0 0.0
      %1216 = vmatpush1.xpose.msra.mxu0 0.0
      %1217 = vmatprep.subr.mxu0 0.0
      %1218 = vmatpush1.xpose.msra.mxu0 0.0
      %1219 = vmatprep.subr.mxu0 0.0
      %1220 = vmatpush1.xpose.msra.mxu0 0.0
      %1221 = vmatprep.subr.mxu0 0.0
      %1222 = vmatpush1.xpose.msra.mxu0 0.0
      %1223 = vmatprep.subr.mxu0 0.0
      %1224 = vmatpush1.xpose.msra.mxu0 0.0
      %1225 = vmatprep.subr.mxu0 0.0
      %1226 = vmatpush1.xpose.msra.mxu0 0.0
      %1227 = vmatprep.subr.mxu0 0.0
      %1228 = vmatpush1.xpose.msra.mxu0 0.0
      %1229 = vmatprep.subr.mxu0 0.0
      %1230 = vmatpush1.xpose.msra.mxu0 0.0
      %1231 = vmatprep.subr.mxu0 0.0
      %1232 = vmatpush1.xpose.msra.mxu0 0.0
      %1233 = vmatprep.subr.mxu0 0.0
      %1234 = vmatpush1.xpose.msra.mxu0 0.0
      %1235 = vmatprep.subr.mxu0 0.0
      %1236 = vmatpush1.xpose.msra.mxu0 0.0
      %1237 = vmatprep.subr.mxu0 0.0
      %1238 = vmatpush1.xpose.msra.mxu0 0.0
      %1239 = vmatprep.subr.mxu0 0.0
      %1240 = vmatpush1.xpose.msra.mxu0 0.0
      %1241 = vmatprep.subr.mxu0 0.0
      %1242 = vmatpush1.xpose.msra.mxu0 0.0
      %1243 = vmatprep.subr.mxu0 0.0
      %1244 = vmatpush1.xpose.msra.mxu0 0.0
      %1245 = vmatprep.subr.mxu0 0.0
      %1246 = vmatpush1.xpose.msra.mxu0 0.0
      %1247 = vmatprep.subr.mxu0 0.0
      %1248 = vmatpush1.xpose.msra.mxu0 0.0
      %1249 = vmatprep.subr.mxu0 0.0
      %1250 = vmatpush1.xpose.msra.mxu0 0.0
      %1251 = vmatprep.subr.mxu0 0.0
      %1252 = vmatpush1.xpose.msra.mxu0 0.0
      %1253 = vmatprep.subr.mxu0 0.0
      %1254 = vmatpush1.xpose.msra.mxu0 0.0
      %1255 = vmatprep.subr.mxu0 0.0
      %1256 = vmatpush1.xpose.msra.mxu0 0.0
      %1257 = vmatprep.subr.mxu0 0.0
      %1258 = vmatpush1.xpose.msra.mxu0 0.0
      %1259 = vmatprep.subr.mxu0 0.0
      %1260 = vmatpush1.xpose.msra.mxu0 0.0
      %1261 = vmatprep.subr.mxu0 0.0
      %1262 = vmatpush1.xpose.msra.mxu0 0.0
      %1263 = vmatprep.subr.mxu0 0.0
      %1264 = vmatpush1.xpose.msra.mxu0 0.0
      %1265 = vmatprep.subr.mxu0 0.0
      %1266 = vmatpush1.xpose.msra.mxu0 0.0
      %1267 = vmatprep.subr.mxu0 0.0
      %1268 = vmatpush1.xpose.msra.mxu0 0.0
      %1269 = vmatprep.subr.mxu0 0.0
      %1270 = vmatpush1.xpose.msra.mxu0 0.0
      %1271 = vmatprep.subr.mxu0 0.0
      %1272 = vmatpush1.xpose.msra.mxu0 0.0
      %1273 = vmatprep.subr.mxu0 0.0
      %1274 = vmatpush1.xpose.msra.mxu0 0.0
      %1275 = vmatprep.mubr.f32.mxu0 0.0
      %1276 = vmatmul.mubr.f32.gmra.mrb[0].mxu0 %v1203
      %v1277 = vpop.f32.mrb[0].mxu0
      %v1278 = vadd.f32 0.0, %v1277
      %v1279 = vpop.f32.mrb[0].mxu0
      %1280 = vmatprep.mubr.f32.mxu0 0.0
      %1281 = vmatmul.mubr.f32.gmra.mrb[0].mxu0 %v1205
      %v1282 = vpop.f32.mrb[0].mxu0
      %v1283 = vadd.f32 0.0, %v1282
      %v1284 = vpop.f32.mrb[0].mxu0
      %1285 = vdwg.mxu0
      %v1286 = vsel %vm1119, %v863, 0
      %v1288 = vsel %vm1119, %v864, 0
      %v1290 = vsel %vm1119, %v989, 0
      %v1292 = vsel %vm1119, %v994, 0
      %1294 = vmatprep.subr.mxu0 0.0
      %1295 = vmatpush1.xpose.msra.mxu0 %v1290
      %1296 = vmatprep.subr.mxu0 0.0
      %1297 = vmatpush1.xpose.msra.mxu0 %v1292
      %1298 = vmatprep.subr.mxu0 0.0
      %1299 = vmatpush1.xpose.msra.mxu0 0.0
      %1300 = vmatprep.subr.mxu0 0.0
      %1301 = vmatpush1.xpose.msra.mxu0 0.0
      %1302 = vmatprep.subr.mxu0 0.0
      %1303 = vmatpush1.xpose.msra.mxu0 0.0
      %1304 = vmatprep.subr.mxu0 0.0
      %1305 = vmatpush1.xpose.msra.mxu0 0.0
      %1306 = vmatprep.subr.mxu0 0.0
      %1307 = vmatpush1.xpose.msra.mxu0 0.0
      %1308 = vmatprep.subr.mxu0 0.0
      %1309 = vmatpush1.xpose.msra.mxu0 0.0
      %1310 = vmatprep.subr.mxu0 0.0
      %1311 = vmatpush1.xpose.msra.mxu0 0.0
      %1312 = vmatprep.subr.mxu0 0.0
      %1313 = vmatpush1.xpose.msra.mxu0 0.0
      %1314 = vmatprep.subr.mxu0 0.0
      %1315 = vmatpush1.xpose.msra.mxu0 0.0
      %1316 = vmatprep.subr.mxu0 0.0
      %1317 = vmatpush1.xpose.msra.mxu0 0.0
      %1318 = vmatprep.subr.mxu0 0.0
      %1319 = vmatpush1.xpose.msra.mxu0 0.0
      %1320 = vmatprep.subr.mxu0 0.0
      %1321 = vmatpush1.xpose.msra.mxu0 0.0
      %1322 = vmatprep.subr.mxu0 0.0
      %1323 = vmatpush1.xpose.msra.mxu0 0.0
      %1324 = vmatprep.subr.mxu0 0.0
      %1325 = vmatpush1.xpose.msra.mxu0 0.0
      %1326 = vmatprep.subr.mxu0 0.0
      %1327 = vmatpush1.xpose.msra.mxu0 0.0
      %1328 = vmatprep.subr.mxu0 0.0
      %1329 = vmatpush1.xpose.msra.mxu0 0.0
      %1330 = vmatprep.subr.mxu0 0.0
      %1331 = vmatpush1.xpose.msra.mxu0 0.0
      %1332 = vmatprep.subr.mxu0 0.0
      %1333 = vmatpush1.xpose.msra.mxu0 0.0
      %1334 = vmatprep.subr.mxu0 0.0
      %1335 = vmatpush1.xpose.msra.mxu0 0.0
      %1336 = vmatprep.subr.mxu0 0.0
      %1337 = vmatpush1.xpose.msra.mxu0 0.0
      %1338 = vmatprep.subr.mxu0 0.0
      %1339 = vmatpush1.xpose.msra.mxu0 0.0
      %1340 = vmatprep.subr.mxu0 0.0
      %1341 = vmatpush1.xpose.msra.mxu0 0.0
      %1342 = vmatprep.subr.mxu0 0.0
      %1343 = vmatpush1.xpose.msra.mxu0 0.0
      %1344 = vmatprep.subr.mxu0 0.0
      %1345 = vmatpush1.xpose.msra.mxu0 0.0
      %1346 = vmatprep.subr.mxu0 0.0
      %1347 = vmatpush1.xpose.msra.mxu0 0.0
      %1348 = vmatprep.subr.mxu0 0.0
      %1349 = vmatpush1.xpose.msra.mxu0 0.0
      %1350 = vmatprep.subr.mxu0 0.0
      %1351 = vmatpush1.xpose.msra.mxu0 0.0
      %1352 = vmatprep.subr.mxu0 0.0
      %1353 = vmatpush1.xpose.msra.mxu0 0.0
      %1354 = vmatprep.subr.mxu0 0.0
      %1355 = vmatpush1.xpose.msra.mxu0 0.0
      %1356 = vmatprep.subr.mxu0 0.0
      %1357 = vmatpush1.xpose.msra.mxu0 0.0
      %1358 = vmatprep.mubr.f32.mxu0 0.0
      %1359 = vmatmul.mubr.f32.gmra.mrb[0].mxu0 %v1286
      %v1360 = vpop.f32.mrb[0].mxu0
      %v1361 = vadd.f32 0.0, %v1360
      %v1362 = vpop.f32.mrb[0].mxu0
      %1363 = vmatprep.mubr.f32.mxu0 0.0
      %1364 = vmatmul.mubr.f32.gmra.mrb[0].mxu0 %v1288
      %v1365 = vpop.f32.mrb[0].mxu0
      %v1366 = vadd.f32 0.0, %v1365
      %v1367 = vpop.f32.mrb[0].mxu0
      %1368 = vdwg.mxu0
      %v1369 = vsel %vm1119, %v865, 0
      %v1371 = vsel %vm1119, %v866, 0
      %v1373 = vsel %vm1119, %v999, 0
      %v1375 = vsel %vm1119, %v1004, 0
      %1377 = vmatprep.subr.mxu0 0.0
      %1378 = vmatpush1.xpose.msra.mxu0 %v1373
      %1379 = vmatprep.subr.mxu0 0.0
      %1380 = vmatpush1.xpose.msra.mxu0 %v1375
      %1381 = vmatprep.subr.mxu0 0.0
      %1382 = vmatpush1.xpose.msra.mxu0 0.0
      %1383 = vmatprep.subr.mxu0 0.0
      %1384 = vmatpush1.xpose.msra.mxu0 0.0
      %1385 = vmatprep.subr.mxu0 0.0
      %1386 = vmatpush1.xpose.msra.mxu0 0.0
      %1387 = vmatprep.subr.mxu0 0.0
      %1388 = vmatpush1.xpose.msra.mxu0 0.0
      %1389 = vmatprep.subr.mxu0 0.0
      %1390 = vmatpush1.xpose.msra.mxu0 0.0
      %1391 = vmatprep.subr.mxu0 0.0
      %1392 = vmatpush1.xpose.msra.mxu0 0.0
      %1393 = vmatprep.subr.mxu0 0.0
      %1394 = vmatpush1.xpose.msra.mxu0 0.0
      %1395 = vmatprep.subr.mxu0 0.0
      %1396 = vmatpush1.xpose.msra.mxu0 0.0
      %1397 = vmatprep.subr.mxu0 0.0
      %1398 = vmatpush1.xpose.msra.mxu0 0.0
      %1399 = vmatprep.subr.mxu0 0.0
      %1400 = vmatpush1.xpose.msra.mxu0 0.0
      %1401 = vmatprep.subr.mxu0 0.0
      %1402 = vmatpush1.xpose.msra.mxu0 0.0
      %1403 = vmatprep.subr.mxu0 0.0
      %1404 = vmatpush1.xpose.msra.mxu0 0.0
      %1405 = vmatprep.subr.mxu0 0.0
      %1406 = vmatpush1.xpose.msra.mxu0 0.0
      %1407 = vmatprep.subr.mxu0 0.0
      %1408 = vmatpush1.xpose.msra.mxu0 0.0
      %1409 = vmatprep.subr.mxu0 0.0
      %1410 = vmatpush1.xpose.msra.mxu0 0.0
      %1411 = vmatprep.subr.mxu0 0.0
      %1412 = vmatpush1.xpose.msra.mxu0 0.0
      %1413 = vmatprep.subr.mxu0 0.0
      %1414 = vmatpush1.xpose.msra.mxu0 0.0
      %1415 = vmatprep.subr.mxu0 0.0
      %1416 = vmatpush1.xpose.msra.mxu0 0.0
      %1417 = vmatprep.subr.mxu0 0.0
      %1418 = vmatpush1.xpose.msra.mxu0 0.0
      %1419 = vmatprep.subr.mxu0 0.0
      %1420 = vmatpush1.xpose.msra.mxu0 0.0
      %1421 = vmatprep.subr.mxu0 0.0
      %1422 = vmatpush1.xpose.msra.mxu0 0.0
      %1423 = vmatprep.subr.mxu0 0.0
      %1424 = vmatpush1.xpose.msra.mxu0 0.0
      %1425 = vmatprep.subr.mxu0 0.0
      %1426 = vmatpush1.xpose.msra.mxu0 0.0
      %1427 = vmatprep.subr.mxu0 0.0
      %1428 = vmatpush1.xpose.msra.mxu0 0.0
      %1429 = vmatprep.subr.mxu0 0.0
      %1430 = vmatpush1.xpose.msra.mxu0 0.0
      %1431 = vmatprep.subr.mxu0 0.0
      %1432 = vmatpush1.xpose.msra.mxu0 0.0
      %1433 = vmatprep.subr.mxu0 0.0
      %1434 = vmatpush1.xpose.msra.mxu0 0.0
      %1435 = vmatprep.subr.mxu0 0.0
      %1436 = vmatpush1.xpose.msra.mxu0 0.0
      %1437 = vmatprep.subr.mxu0 0.0
      %1438 = vmatpush1.xpose.msra.mxu0 0.0
      %1439 = vmatprep.subr.mxu0 0.0
      %1440 = vmatpush1.xpose.msra.mxu0 0.0
      %1441 = vmatprep.mubr.f32.mxu0 0.0
      %1442 = vmatmul.mubr.f32.gmra.mrb[0].mxu0 %v1369
      %v1443 = vpop.f32.mrb[0].mxu0
      %v1444 = vadd.f32 0.0, %v1443
      %v1445 = vpop.f32.mrb[0].mxu0
      %1446 = vmatprep.mubr.f32.mxu0 0.0
      %1447 = vmatmul.mubr.f32.gmra.mrb[0].mxu0 %v1371
      %v1448 = vpop.f32.mrb[0].mxu0
      %v1449 = vadd.f32 0.0, %v1448
      %v1450 = vpop.f32.mrb[0].mxu0
      %1451 = vdwg.mxu0
      %v1452 = vsel %vm1119, %v1016, 0
      %v1454 = vsel %vm1119, %v1018, 0
      %v1456 = vsel %vm1119, %v1072, 0
      %v1458 = vsel %vm1119, %v1074, 0
      %1460 = vmatprep.subr.mxu0 0.0
      %1461 = vmatpush1.xpose.msra.mxu0 %v1456
      %1462 = vmatprep.subr.mxu0 0.0
      %1463 = vmatpush1.xpose.msra.mxu0 %v1458
      %1464 = vmatprep.subr.mxu0 0.0
      %1465 = vmatpush1.xpose.msra.mxu0 0.0
      %1466 = vmatprep.subr.mxu0 0.0
      %1467 = vmatpush1.xpose.msra.mxu0 0.0
      %1468 = vmatprep.subr.mxu0 0.0
      %1469 = vmatpush1.xpose.msra.mxu0 0.0
      %1470 = vmatprep.subr.mxu0 0.0
      %1471 = vmatpush1.xpose.msra.mxu0 0.0
      %1472 = vmatprep.subr.mxu0 0.0
      %1473 = vmatpush1.xpose.msra.mxu0 0.0
      %1474 = vmatprep.subr.mxu0 0.0
      %1475 = vmatpush1.xpose.msra.mxu0 0.0
      %1476 = vmatprep.subr.mxu0 0.0
      %1477 = vmatpush1.xpose.msra.mxu0 0.0
      %1478 = vmatprep.subr.mxu0 0.0
      %1479 = vmatpush1.xpose.msra.mxu0 0.0
      %1480 = vmatprep.subr.mxu0 0.0
      %1481 = vmatpush1.xpose.msra.mxu0 0.0
      %1482 = vmatprep.subr.mxu0 0.0
      %1483 = vmatpush1.xpose.msra.mxu0 0.0
      %1484 = vmatprep.subr.mxu0 0.0
      %1485 = vmatpush1.xpose.msra.mxu0 0.0
      %1486 = vmatprep.subr.mxu0 0.0
      %1487 = vmatpush1.xpose.msra.mxu0 0.0
      %1488 = vmatprep.subr.mxu0 0.0
      %1489 = vmatpush1.xpose.msra.mxu0 0.0
      %1490 = vmatprep.subr.mxu0 0.0
      %1491 = vmatpush1.xpose.msra.mxu0 0.0
      %1492 = vmatprep.subr.mxu0 0.0
      %1493 = vmatpush1.xpose.msra.mxu0 0.0
      %1494 = vmatprep.subr.mxu0 0.0
      %1495 = vmatpush1.xpose.msra.mxu0 0.0
      %1496 = vmatprep.subr.mxu0 0.0
      %1497 = vmatpush1.xpose.msra.mxu0 0.0
      %1498 = vmatprep.subr.mxu0 0.0
      %1499 = vmatpush1.xpose.msra.mxu0 0.0
      %1500 = vmatprep.subr.mxu0 0.0
      %1501 = vmatpush1.xpose.msra.mxu0 0.0
      %1502 = vmatprep.subr.mxu0 0.0
      %1503 = vmatpush1.xpose.msra.mxu0 0.0
      %1504 = vmatprep.subr.mxu0 0.0
      %1505 = vmatpush1.xpose.msra.mxu0 0.0
      %1506 = vmatprep.subr.mxu0 0.0
      %1507 = vmatpush1.xpose.msra.mxu0 0.0
      %1508 = vmatprep.subr.mxu0 0.0
      %1509 = vmatpush1.xpose.msra.mxu0 0.0
      %1510 = vmatprep.subr.mxu0 0.0
      %1511 = vmatpush1.xpose.msra.mxu0 0.0
      %1512 = vmatprep.subr.mxu0 0.0
      %1513 = vmatpush1.xpose.msra.mxu0 0.0
      %1514 = vmatprep.subr.mxu0 0.0
      %1515 = vmatpush1.xpose.msra.mxu0 0.0
      %1516 = vmatprep.subr.mxu0 0.0
      %1517 = vmatpush1.xpose.msra.mxu0 0.0
      %1518 = vmatprep.subr.mxu0 0.0
      %1519 = vmatpush1.xpose.msra.mxu0 0.0
      %1520 = vmatprep.subr.mxu0 0.0
      %1521 = vmatpush1.xpose.msra.mxu0 0.0
      %1522 = vmatprep.subr.mxu0 0.0
      %1523 = vmatpush1.xpose.msra.mxu0 0.0
      %1524 = vmatprep.mubr.f32.mxu0 0.0
      %1525 = vmatmul.mubr.f32.gmra.mrb[0].mxu0 %v1452
      %v1526 = vpop.f32.mrb[0].mxu0
      %v1527 = vadd.f32 0.0, %v1526
      %v1528 = vpop.f32.mrb[0].mxu0
      %1529 = vmatprep.mubr.f32.mxu0 0.0
      %1530 = vmatmul.mubr.f32.gmra.mrb[0].mxu0 %v1454
      %v1531 = vpop.f32.mrb[0].mxu0
      %v1532 = vadd.f32 0.0, %v1531
      %v1533 = vpop.f32.mrb[0].mxu0
      %1534 = vdwg.mxu0
      %v1535 = vsel %vm1119, %v1020, 0
      %v1537 = vsel %vm1119, %v1022, 0
      %v1539 = vsel %vm1119, %v1076, 0
      %v1541 = vsel %vm1119, %v1078, 0
      %1543 = vmatprep.subr.mxu0 0.0
      %1544 = vmatpush1.xpose.msra.mxu0 %v1539
      %1545 = vmatprep.subr.mxu0 0.0
      %1546 = vmatpush1.xpose.msra.mxu0 %v1541
      %1547 = vmatprep.subr.mxu0 0.0
      %1548 = vmatpush1.xpose.msra.mxu0 0.0
      %1549 = vmatprep.subr.mxu0 0.0
      %1550 = vmatpush1.xpose.msra.mxu0 0.0
      %1551 = vmatprep.subr.mxu0 0.0
      %1552 = vmatpush1.xpose.msra.mxu0 0.0
      %1553 = vmatprep.subr.mxu0 0.0
      %1554 = vmatpush1.xpose.msra.mxu0 0.0
      %1555 = vmatprep.subr.mxu0 0.0
      %1556 = vmatpush1.xpose.msra.mxu0 0.0
      %1557 = vmatprep.subr.mxu0 0.0
      %1558 = vmatpush1.xpose.msra.mxu0 0.0
      %1559 = vmatprep.subr.mxu0 0.0
      %1560 = vmatpush1.xpose.msra.mxu0 0.0
      %1561 = vmatprep.subr.mxu0 0.0
      %1562 = vmatpush1.xpose.msra.mxu0 0.0
      %1563 = vmatprep.subr.mxu0 0.0
      %1564 = vmatpush1.xpose.msra.mxu0 0.0
      %1565 = vmatprep.subr.mxu0 0.0
      %1566 = vmatpush1.xpose.msra.mxu0 0.0
      %1567 = vmatprep.subr.mxu0 0.0
      %1568 = vmatpush1.xpose.msra.mxu0 0.0
      %1569 = vmatprep.subr.mxu0 0.0
      %1570 = vmatpush1.xpose.msra.mxu0 0.0
      %1571 = vmatprep.subr.mxu0 0.0
      %1572 = vmatpush1.xpose.msra.mxu0 0.0
      %1573 = vmatprep.subr.mxu0 0.0
      %1574 = vmatpush1.xpose.msra.mxu0 0.0
      %1575 = vmatprep.subr.mxu0 0.0
      %1576 = vmatpush1.xpose.msra.mxu0 0.0
      %1577 = vmatprep.subr.mxu0 0.0
      %1578 = vmatpush1.xpose.msra.mxu0 0.0
      %1579 = vmatprep.subr.mxu0 0.0
      %1580 = vmatpush1.xpose.msra.mxu0 0.0
      %1581 = vmatprep.subr.mxu0 0.0
      %1582 = vmatpush1.xpose.msra.mxu0 0.0
      %1583 = vmatprep.subr.mxu0 0.0
      %1584 = vmatpush1.xpose.msra.mxu0 0.0
      %1585 = vmatprep.subr.mxu0 0.0
      %1586 = vmatpush1.xpose.msra.mxu0 0.0
      %1587 = vmatprep.subr.mxu0 0.0
      %1588 = vmatpush1.xpose.msra.mxu0 0.0
      %1589 = vmatprep.subr.mxu0 0.0
      %1590 = vmatpush1.xpose.msra.mxu0 0.0
      %1591 = vmatprep.subr.mxu0 0.0
      %1592 = vmatpush1.xpose.msra.mxu0 0.0
      %1593 = vmatprep.subr.mxu0 0.0
      %1594 = vmatpush1.xpose.msra.mxu0 0.0
      %1595 = vmatprep.subr.mxu0 0.0
      %1596 = vmatpush1.xpose.msra.mxu0 0.0
      %1597 = vmatprep.subr.mxu0 0.0
      %1598 = vmatpush1.xpose.msra.mxu0 0.0
      %1599 = vmatprep.subr.mxu0 0.0
      %1600 = vmatpush1.xpose.msra.mxu0 0.0
      %1601 = vmatprep.subr.mxu0 0.0
      %1602 = vmatpush1.xpose.msra.mxu0 0.0
      %1603 = vmatprep.subr.mxu0 0.0
      %1604 = vmatpush1.xpose.msra.mxu0 0.0
      %1605 = vmatprep.subr.mxu0 0.0
      %1606 = vmatpush1.xpose.msra.mxu0 0.0
      %1607 = vmatprep.mubr.f32.mxu0 0.0
      %1608 = vmatmul.mubr.f32.gmra.mrb[0].mxu0 %v1535
      %v1609 = vpop.f32.mrb[0].mxu0
      %v1610 = vadd.f32 0.0, %v1609
      %v1611 = vpop.f32.mrb[0].mxu0
      %1612 = vmatprep.mubr.f32.mxu0 0.0
      %1613 = vmatmul.mubr.f32.gmra.mrb[0].mxu0 %v1537
      %v1614 = vpop.f32.mrb[0].mxu0
      %v1615 = vadd.f32 0.0, %v1614
      %v1616 = vpop.f32.mrb[0].mxu0
      %1617 = vdwg.mxu0
      %v1618 = vsel %vm1119, %v1024, 0
      %v1620 = vsel %vm1119, %v1026, 0
      %v1622 = vsel %vm1119, %v1080, 0
      %v1624 = vsel %vm1119, %v1082, 0
      %1626 = vmatprep.subr.mxu0 0.0
      %1627 = vmatpush1.xpose.msra.mxu0 %v1622
      %1628 = vmatprep.subr.mxu0 0.0
      %1629 = vmatpush1.xpose.msra.mxu0 %v1624
      %1630 = vmatprep.subr.mxu0 0.0
      %1631 = vmatpush1.xpose.msra.mxu0 0.0
      %1632 = vmatprep.subr.mxu0 0.0
      %1633 = vmatpush1.xpose.msra.mxu0 0.0
      %1634 = vmatprep.subr.mxu0 0.0
      %1635 = vmatpush1.xpose.msra.mxu0 0.0
      %1636 = vmatprep.subr.mxu0 0.0
      %1637 = vmatpush1.xpose.msra.mxu0 0.0
      %1638 = vmatprep.subr.mxu0 0.0
      %1639 = vmatpush1.xpose.msra.mxu0 0.0
      %1640 = vmatprep.subr.mxu0 0.0
      %1641 = vmatpush1.xpose.msra.mxu0 0.0
      %1642 = vmatprep.subr.mxu0 0.0
      %1643 = vmatpush1.xpose.msra.mxu0 0.0
      %1644 = vmatprep.subr.mxu0 0.0
      %1645 = vmatpush1.xpose.msra.mxu0 0.0
      %1646 = vmatprep.subr.mxu0 0.0
      %1647 = vmatpush1.xpose.msra.mxu0 0.0
      %1648 = vmatprep.subr.mxu0 0.0
      %1649 = vmatpush1.xpose.msra.mxu0 0.0
      %1650 = vmatprep.subr.mxu0 0.0
      %1651 = vmatpush1.xpose.msra.mxu0 0.0
      %1652 = vmatprep.subr.mxu0 0.0
      %1653 = vmatpush1.xpose.msra.mxu0 0.0
      %1654 = vmatprep.subr.mxu0 0.0
      %1655 = vmatpush1.xpose.msra.mxu0 0.0
      %1656 = vmatprep.subr.mxu0 0.0
      %1657 = vmatpush1.xpose.msra.mxu0 0.0
      %1658 = vmatprep.subr.mxu0 0.0
      %1659 = vmatpush1.xpose.msra.mxu0 0.0
      %1660 = vmatprep.subr.mxu0 0.0
      %1661 = vmatpush1.xpose.msra.mxu0 0.0
      %1662 = vmatprep.subr.mxu0 0.0
      %1663 = vmatpush1.xpose.msra.mxu0 0.0
      %1664 = vmatprep.subr.mxu0 0.0
      %1665 = vmatpush1.xpose.msra.mxu0 0.0
      %1666 = vmatprep.subr.mxu0 0.0
      %1667 = vmatpush1.xpose.msra.mxu0 0.0
      %1668 = vmatprep.subr.mxu0 0.0
      %1669 = vmatpush1.xpose.msra.mxu0 0.0
      %1670 = vmatprep.subr.mxu0 0.0
      %1671 = vmatpush1.xpose.msra.mxu0 0.0
      %1672 = vmatprep.subr.mxu0 0.0
      %1673 = vmatpush1.xpose.msra.mxu0 0.0
      %1674 = vmatprep.subr.mxu0 0.0
      %1675 = vmatpush1.xpose.msra.mxu0 0.0
      %1676 = vmatprep.subr.mxu0 0.0
      %1677 = vmatpush1.xpose.msra.mxu0 0.0
      %1678 = vmatprep.subr.mxu0 0.0
      %1679 = vmatpush1.xpose.msra.mxu0 0.0
      %1680 = vmatprep.subr.mxu0 0.0
      %1681 = vmatpush1.xpose.msra.mxu0 0.0
      %1682 = vmatprep.subr.mxu0 0.0
      %1683 = vmatpush1.xpose.msra.mxu0 0.0
      %1684 = vmatprep.subr.mxu0 0.0
      %1685 = vmatpush1.xpose.msra.mxu0 0.0
      %1686 = vmatprep.subr.mxu0 0.0
      %1687 = vmatpush1.xpose.msra.mxu0 0.0
      %1688 = vmatprep.subr.mxu0 0.0
      %1689 = vmatpush1.xpose.msra.mxu0 0.0
      %1690 = vmatprep.mubr.f32.mxu0 0.0
      %1691 = vmatmul.mubr.f32.gmra.mrb[0].mxu0 %v1618
      %v1692 = vpop.f32.mrb[0].mxu0
      %v1693 = vadd.f32 0.0, %v1692
      %v1694 = vpop.f32.mrb[0].mxu0
      %1695 = vmatprep.mubr.f32.mxu0 0.0
      %1696 = vmatmul.mubr.f32.gmra.mrb[0].mxu0 %v1620
      %v1697 = vpop.f32.mrb[0].mxu0
      %v1698 = vadd.f32 0.0, %v1697
      %v1699 = vpop.f32.mrb[0].mxu0
      %1700 = vdwg.mxu0
      %v1701 = vsel %vm1119, %v1028, 0
      %v1703 = vsel %vm1119, %v1030, 0
      %v1705 = vsel %vm1119, %v1084, 0
      %v1707 = vsel %vm1119, %v1086, 0
      %1709 = vmatprep.subr.mxu0 0.0
      %1710 = vmatpush1.xpose.msra.mxu0 %v1705
      %1711 = vmatprep.subr.mxu0 0.0
      %1712 = vmatpush1.xpose.msra.mxu0 %v1707
      %1713 = vmatprep.subr.mxu0 0.0
      %1714 = vmatpush1.xpose.msra.mxu0 0.0
      %1715 = vmatprep.subr.mxu0 0.0
      %1716 = vmatpush1.xpose.msra.mxu0 0.0
      %1717 = vmatprep.subr.mxu0 0.0
      %1718 = vmatpush1.xpose.msra.mxu0 0.0
      %1719 = vmatprep.subr.mxu0 0.0
      %1720 = vmatpush1.xpose.msra.mxu0 0.0
      %1721 = vmatprep.subr.mxu0 0.0
      %1722 = vmatpush1.xpose.msra.mxu0 0.0
      %1723 = vmatprep.subr.mxu0 0.0
      %1724 = vmatpush1.xpose.msra.mxu0 0.0
      %1725 = vmatprep.subr.mxu0 0.0
      %1726 = vmatpush1.xpose.msra.mxu0 0.0
      %1727 = vmatprep.subr.mxu0 0.0
      %1728 = vmatpush1.xpose.msra.mxu0 0.0
      %1729 = vmatprep.subr.mxu0 0.0
      %1730 = vmatpush1.xpose.msra.mxu0 0.0
      %1731 = vmatprep.subr.mxu0 0.0
      %1732 = vmatpush1.xpose.msra.mxu0 0.0
      %1733 = vmatprep.subr.mxu0 0.0
      %1734 = vmatpush1.xpose.msra.mxu0 0.0
      %1735 = vmatprep.subr.mxu0 0.0
      %1736 = vmatpush1.xpose.msra.mxu0 0.0
      %1737 = vmatprep.subr.mxu0 0.0
      %1738 = vmatpush1.xpose.msra.mxu0 0.0
      %1739 = vmatprep.subr.mxu0 0.0
      %1740 = vmatpush1.xpose.msra.mxu0 0.0
      %1741 = vmatprep.subr.mxu0 0.0
      %1742 = vmatpush1.xpose.msra.mxu0 0.0
      %1743 = vmatprep.subr.mxu0 0.0
      %1744 = vmatpush1.xpose.msra.mxu0 0.0
      %1745 = vmatprep.subr.mxu0 0.0
      %1746 = vmatpush1.xpose.msra.mxu0 0.0
      %1747 = vmatprep.subr.mxu0 0.0
      %1748 = vmatpush1.xpose.msra.mxu0 0.0
      %1749 = vmatprep.subr.mxu0 0.0
      %1750 = vmatpush1.xpose.msra.mxu0 0.0
      %1751 = vmatprep.subr.mxu0 0.0
      %1752 = vmatpush1.xpose.msra.mxu0 0.0
      %1753 = vmatprep.subr.mxu0 0.0
      %1754 = vmatpush1.xpose.msra.mxu0 0.0
      %1755 = vmatprep.subr.mxu0 0.0
      %1756 = vmatpush1.xpose.msra.mxu0 0.0
      %1757 = vmatprep.subr.mxu0 0.0
      %1758 = vmatpush1.xpose.msra.mxu0 0.0
      %1759 = vmatprep.subr.mxu0 0.0
      %1760 = vmatpush1.xpose.msra.mxu0 0.0
      %1761 = vmatprep.subr.mxu0 0.0
      %1762 = vmatpush1.xpose.msra.mxu0 0.0
      %1763 = vmatprep.subr.mxu0 0.0
      %1764 = vmatpush1.xpose.msra.mxu0 0.0
      %1765 = vmatprep.subr.mxu0 0.0
      %1766 = vmatpush1.xpose.msra.mxu0 0.0
      %1767 = vmatprep.subr.mxu0 0.0
      %1768 = vmatpush1.xpose.msra.mxu0 0.0
      %1769 = vmatprep.subr.mxu0 0.0
      %1770 = vmatpush1.xpose.msra.mxu0 0.0
      %1771 = vmatprep.subr.mxu0 0.0
      %1772 = vmatpush1.xpose.msra.mxu0 0.0
      %1773 = vmatprep.mubr.f32.mxu0 0.0
      %1774 = vmatmul.mubr.f32.gmra.mrb[0].mxu0 %v1701
      %v1775 = vpop.f32.mrb[0].mxu0
      %v1776 = vadd.f32 0.0, %v1775
      %v1777 = vpop.f32.mrb[0].mxu0
      %1778 = vmatprep.mubr.f32.mxu0 0.0
      %1779 = vmatmul.mubr.f32.gmra.mrb[0].mxu0 %v1703
      %v1780 = vpop.f32.mrb[0].mxu0
      %v1781 = vadd.f32 0.0, %v1780
      %v1782 = vpop.f32.mrb[0].mxu0
      %1783 = vdwg.mxu0
      %v1784 = vsel %vm1119, %v1032, 0
      %v1786 = vsel %vm1119, %v1034, 0
      %v1788 = vsel %vm1119, %v1088, 0
      %v1790 = vsel %vm1119, %v1090, 0
      %1792 = vmatprep.subr.mxu0 0.0
      %1793 = vmatpush1.xpose.msra.mxu0 %v1788
      %1794 = vmatprep.subr.mxu0 0.0
      %1795 = vmatpush1.xpose.msra.mxu0 %v1790
      %1796 = vmatprep.subr.mxu0 0.0
      %1797 = vmatpush1.xpose.msra.mxu0 0.0
      %1798 = vmatprep.subr.mxu0 0.0
      %1799 = vmatpush1.xpose.msra.mxu0 0.0
      %1800 = vmatprep.subr.mxu0 0.0
      %1801 = vmatpush1.xpose.msra.mxu0 0.0
      %1802 = vmatprep.subr.mxu0 0.0
      %1803 = vmatpush1.xpose.msra.mxu0 0.0
      %1804 = vmatprep.subr.mxu0 0.0
      %1805 = vmatpush1.xpose.msra.mxu0 0.0
      %1806 = vmatprep.subr.mxu0 0.0
      %1807 = vmatpush1.xpose.msra.mxu0 0.0
      %1808 = vmatprep.subr.mxu0 0.0
      %1809 = vmatpush1.xpose.msra.mxu0 0.0
      %1810 = vmatprep.subr.mxu0 0.0
      %1811 = vmatpush1.xpose.msra.mxu0 0.0
      %1812 = vmatprep.subr.mxu0 0.0
      %1813 = vmatpush1.xpose.msra.mxu0 0.0
      %1814 = vmatprep.subr.mxu0 0.0
      %1815 = vmatpush1.xpose.msra.mxu0 0.0
      %1816 = vmatprep.subr.mxu0 0.0
      %1817 = vmatpush1.xpose.msra.mxu0 0.0
      %1818 = vmatprep.subr.mxu0 0.0
      %1819 = vmatpush1.xpose.msra.mxu0 0.0
      %1820 = vmatprep.subr.mxu0 0.0
      %1821 = vmatpush1.xpose.msra.mxu0 0.0
      %1822 = vmatprep.subr.mxu0 0.0
      %1823 = vmatpush1.xpose.msra.mxu0 0.0
      %1824 = vmatprep.subr.mxu0 0.0
      %1825 = vmatpush1.xpose.msra.mxu0 0.0
      %1826 = vmatprep.subr.mxu0 0.0
      %1827 = vmatpush1.xpose.msra.mxu0 0.0
      %1828 = vmatprep.subr.mxu0 0.0
      %1829 = vmatpush1.xpose.msra.mxu0 0.0
      %1830 = vmatprep.subr.mxu0 0.0
      %1831 = vmatpush1.xpose.msra.mxu0 0.0
      %1832 = vmatprep.subr.mxu0 0.0
      %1833 = vmatpush1.xpose.msra.mxu0 0.0
      %1834 = vmatprep.subr.mxu0 0.0
      %1835 = vmatpush1.xpose.msra.mxu0 0.0
      %1836 = vmatprep.subr.mxu0 0.0
      %1837 = vmatpush1.xpose.msra.mxu0 0.0
      %1838 = vmatprep.subr.mxu0 0.0
      %1839 = vmatpush1.xpose.msra.mxu0 0.0
      %1840 = vmatprep.subr.mxu0 0.0
      %1841 = vmatpush1.xpose.msra.mxu0 0.0
      %1842 = vmatprep.subr.mxu0 0.0
      %1843 = vmatpush1.xpose.msra.mxu0 0.0
      %1844 = vmatprep.subr.mxu0 0.0
      %1845 = vmatpush1.xpose.msra.mxu0 0.0
      %1846 = vmatprep.subr.mxu0 0.0
      %1847 = vmatpush1.xpose.msra.mxu0 0.0
      %1848 = vmatprep.subr.mxu0 0.0
      %1849 = vmatpush1.xpose.msra.mxu0 0.0
      %1850 = vmatprep.subr.mxu0 0.0
      %1851 = vmatpush1.xpose.msra.mxu0 0.0
      %1852 = vmatprep.subr.mxu0 0.0
      %1853 = vmatpush1.xpose.msra.mxu0 0.0
      %1854 = vmatprep.subr.mxu0 0.0
      %1855 = vmatpush1.xpose.msra.mxu0 0.0
      %1856 = vmatprep.mubr.f32.mxu0 0.0
      %1857 = vmatmul.mubr.f32.gmra.mrb[0].mxu0 %v1784
      %v1858 = vpop.f32.mrb[0].mxu0
      %v1859 = vadd.f32 0.0, %v1858
      %v1860 = vpop.f32.mrb[0].mxu0
      %1861 = vmatprep.mubr.f32.mxu0 0.0
      %1862 = vmatmul.mubr.f32.gmra.mrb[0].mxu0 %v1786
      %v1863 = vpop.f32.mrb[0].mxu0
      %v1864 = vadd.f32 0.0, %v1863
      %v1865 = vpop.f32.mrb[0].mxu0
      %1866 = vdwg.mxu0
      %v1867 = vsel %vm1119, %v1036, 0
      %v1869 = vsel %vm1119, %v1038, 0
      %v1871 = vsel %vm1119, %v1092, 0
      %v1873 = vsel %vm1119, %v1094, 0
      %1875 = vmatprep.subr.mxu0 0.0
      %1876 = vmatpush1.xpose.msra.mxu0 %v1871
      %1877 = vmatprep.subr.mxu0 0.0
      %1878 = vmatpush1.xpose.msra.mxu0 %v1873
      %1879 = vmatprep.subr.mxu0 0.0
      %1880 = vmatpush1.xpose.msra.mxu0 0.0
      %1881 = vmatprep.subr.mxu0 0.0
      %1882 = vmatpush1.xpose.msra.mxu0 0.0
      %1883 = vmatprep.subr.mxu0 0.0
      %1884 = vmatpush1.xpose.msra.mxu0 0.0
      %1885 = vmatprep.subr.mxu0 0.0
      %1886 = vmatpush1.xpose.msra.mxu0 0.0
      %1887 = vmatprep.subr.mxu0 0.0
      %1888 = vmatpush1.xpose.msra.mxu0 0.0
      %1889 = vmatprep.subr.mxu0 0.0
      %1890 = vmatpush1.xpose.msra.mxu0 0.0
      %1891 = vmatprep.subr.mxu0 0.0
      %1892 = vmatpush1.xpose.msra.mxu0 0.0
      %1893 = vmatprep.subr.mxu0 0.0
      %1894 = vmatpush1.xpose.msra.mxu0 0.0
      %1895 = vmatprep.subr.mxu0 0.0
      %1896 = vmatpush1.xpose.msra.mxu0 0.0
      %1897 = vmatprep.subr.mxu0 0.0
      %1898 = vmatpush1.xpose.msra.mxu0 0.0
      %1899 = vmatprep.subr.mxu0 0.0
      %1900 = vmatpush1.xpose.msra.mxu0 0.0
      %1901 = vmatprep.subr.mxu0 0.0
      %1902 = vmatpush1.xpose.msra.mxu0 0.0
      %1903 = vmatprep.subr.mxu0 0.0
      %1904 = vmatpush1.xpose.msra.mxu0 0.0
      %1905 = vmatprep.subr.mxu0 0.0
      %1906 = vmatpush1.xpose.msra.mxu0 0.0
      %1907 = vmatprep.subr.mxu0 0.0
      %1908 = vmatpush1.xpose.msra.mxu0 0.0
      %1909 = vmatprep.subr.mxu0 0.0
      %1910 = vmatpush1.xpose.msra.mxu0 0.0
      %1911 = vmatprep.subr.mxu0 0.0
      %1912 = vmatpush1.xpose.msra.mxu0 0.0
      %1913 = vmatprep.subr.mxu0 0.0
      %1914 = vmatpush1.xpose.msra.mxu0 0.0
      %1915 = vmatprep.subr.mxu0 0.0
      %1916 = vmatpush1.xpose.msra.mxu0 0.0
      %1917 = vmatprep.subr.mxu0 0.0
      %1918 = vmatpush1.xpose.msra.mxu0 0.0
      %1919 = vmatprep.subr.mxu0 0.0
      %1920 = vmatpush1.xpose.msra.mxu0 0.0
      %1921 = vmatprep.subr.mxu0 0.0
      %1922 = vmatpush1.xpose.msra.mxu0 0.0
      %1923 = vmatprep.subr.mxu0 0.0
      %1924 = vmatpush1.xpose.msra.mxu0 0.0
      %1925 = vmatprep.subr.mxu0 0.0
      %1926 = vmatpush1.xpose.msra.mxu0 0.0
      %1927 = vmatprep.subr.mxu0 0.0
      %1928 = vmatpush1.xpose.msra.mxu0 0.0
      %1929 = vmatprep.subr.mxu0 0.0
      %1930 = vmatpush1.xpose.msra.mxu0 0.0
      %1931 = vmatprep.subr.mxu0 0.0
      %1932 = vmatpush1.xpose.msra.mxu0 0.0
      %1933 = vmatprep.subr.mxu0 0.0
      %1934 = vmatpush1.xpose.msra.mxu0 0.0
      %1935 = vmatprep.subr.mxu0 0.0
      %1936 = vmatpush1.xpose.msra.mxu0 0.0
      %1937 = vmatprep.subr.mxu0 0.0
      %1938 = vmatpush1.xpose.msra.mxu0 0.0
      %1939 = vmatprep.mubr.f32.mxu0 0.0
      %1940 = vmatmul.mubr.f32.gmra.mrb[0].mxu0 %v1867
      %v1941 = vpop.f32.mrb[0].mxu0
      %v1942 = vadd.f32 0.0, %v1941
      %v1943 = vpop.f32.mrb[0].mxu0
      %1944 = vmatprep.mubr.f32.mxu0 0.0
      %1945 = vmatmul.mubr.f32.gmra.mrb[0].mxu0 %v1869
      %v1946 = vpop.f32.mrb[0].mxu0
      %v1947 = vadd.f32 0.0, %v1946
      %v1948 = vpop.f32.mrb[0].mxu0
      %1949 = vdwg.mxu0
      %v1950 = vsel %vm1119, %v1040, 0
      %v1952 = vsel %vm1119, %v1042, 0
      %v1954 = vsel %vm1119, %v1096, 0
      %v1956 = vsel %vm1119, %v1098, 0
      %1958 = vmatprep.subr.mxu0 0.0
      %1959 = vmatpush1.xpose.msra.mxu0 %v1954
      %1960 = vmatprep.subr.mxu0 0.0
      %1961 = vmatpush1.xpose.msra.mxu0 %v1956
      %1962 = vmatprep.subr.mxu0 0.0
      %1963 = vmatpush1.xpose.msra.mxu0 0.0
      %1964 = vmatprep.subr.mxu0 0.0
      %1965 = vmatpush1.xpose.msra.mxu0 0.0
      %1966 = vmatprep.subr.mxu0 0.0
      %1967 = vmatpush1.xpose.msra.mxu0 0.0
      %1968 = vmatprep.subr.mxu0 0.0
      %1969 = vmatpush1.xpose.msra.mxu0 0.0
      %1970 = vmatprep.subr.mxu0 0.0
      %1971 = vmatpush1.xpose.msra.mxu0 0.0
      %1972 = vmatprep.subr.mxu0 0.0
      %1973 = vmatpush1.xpose.msra.mxu0 0.0
      %1974 = vmatprep.subr.mxu0 0.0
      %1975 = vmatpush1.xpose.msra.mxu0 0.0
      %1976 = vmatprep.subr.mxu0 0.0
      %1977 = vmatpush1.xpose.msra.mxu0 0.0
      %1978 = vmatprep.subr.mxu0 0.0
      %1979 = vmatpush1.xpose.msra.mxu0 0.0
      %1980 = vmatprep.subr.mxu0 0.0
      %1981 = vmatpush1.xpose.msra.mxu0 0.0
      %1982 = vmatprep.subr.mxu0 0.0
      %1983 = vmatpush1.xpose.msra.mxu0 0.0
      %1984 = vmatprep.subr.mxu0 0.0
      %1985 = vmatpush1.xpose.msra.mxu0 0.0
      %1986 = vmatprep.subr.mxu0 0.0
      %1987 = vmatpush1.xpose.msra.mxu0 0.0
      %1988 = vmatprep.subr.mxu0 0.0
      %1989 = vmatpush1.xpose.msra.mxu0 0.0
      %1990 = vmatprep.subr.mxu0 0.0
      %1991 = vmatpush1.xpose.msra.mxu0 0.0
      %1992 = vmatprep.subr.mxu0 0.0
      %1993 = vmatpush1.xpose.msra.mxu0 0.0
      %1994 = vmatprep.subr.mxu0 0.0
      %1995 = vmatpush1.xpose.msra.mxu0 0.0
      %1996 = vmatprep.subr.mxu0 0.0
      %1997 = vmatpush1.xpose.msra.mxu0 0.0
      %1998 = vmatprep.subr.mxu0 0.0
      %1999 = vmatpush1.xpose.msra.mxu0 0.0
      %2000 = vmatprep.subr.mxu0 0.0
      %2001 = vmatpush1.xpose.msra.mxu0 0.0
      %2002 = vmatprep.subr.mxu0 0.0
      %2003 = vmatpush1.xpose.msra.mxu0 0.0
      %2004 = vmatprep.subr.mxu0 0.0
      %2005 = vmatpush1.xpose.msra.mxu0 0.0
      %2006 = vmatprep.subr.mxu0 0.0
      %2007 = vmatpush1.xpose.msra.mxu0 0.0
      %2008 = vmatprep.subr.mxu0 0.0
      %2009 = vmatpush1.xpose.msra.mxu0 0.0
      %2010 = vmatprep.subr.mxu0 0.0
      %2011 = vmatpush1.xpose.msra.mxu0 0.0
      %2012 = vmatprep.subr.mxu0 0.0
      %2013 = vmatpush1.xpose.msra.mxu0 0.0
      %2014 = vmatprep.subr.mxu0 0.0
      %2015 = vmatpush1.xpose.msra.mxu0 0.0
      %2016 = vmatprep.subr.mxu0 0.0
      %2017 = vmatpush1.xpose.msra.mxu0 0.0
      %2018 = vmatprep.subr.mxu0 0.0
      %2019 = vmatpush1.xpose.msra.mxu0 0.0
      %2020 = vmatprep.subr.mxu0 0.0
      %2021 = vmatpush1.xpose.msra.mxu0 0.0
      %2022 = vmatprep.mubr.f32.mxu0 0.0
      %2023 = vmatmul.mubr.f32.gmra.mrb[0].mxu0 %v1950
      %v2024 = vpop.f32.mrb[0].mxu0
      %v2025 = vadd.f32 0.0, %v2024
      %v2026 = vpop.f32.mrb[0].mxu0
      %2027 = vmatprep.mubr.f32.mxu0 0.0
      %2028 = vmatmul.mubr.f32.gmra.mrb[0].mxu0 %v1952
      %v2029 = vpop.f32.mrb[0].mxu0
      %v2030 = vadd.f32 0.0, %v2029
      %v2031 = vpop.f32.mrb[0].mxu0
      %2032 = vdwg.mxu0
      %v2033 = vsel %vm1119, %v1044, 0
      %v2035 = vsel %vm1119, %v1046, 0
      %v2037 = vsel %vm1119, %v1100, 0
      %v2039 = vsel %vm1119, %v1102, 0
      %2041 = vmatprep.subr.mxu0 0.0
      %2042 = vmatpush1.xpose.msra.mxu0 %v2037
      %2043 = vmatprep.subr.mxu0 0.0
      %2044 = vmatpush1.xpose.msra.mxu0 %v2039
      %2045 = vmatprep.subr.mxu0 0.0
      %2046 = vmatpush1.xpose.msra.mxu0 0.0
      %2047 = vmatprep.subr.mxu0 0.0
      %2048 = vmatpush1.xpose.msra.mxu0 0.0
      %2049 = vmatprep.subr.mxu0 0.0
      %2050 = vmatpush1.xpose.msra.mxu0 0.0
      %2051 = vmatprep.subr.mxu0 0.0
      %2052 = vmatpush1.xpose.msra.mxu0 0.0
      %2053 = vmatprep.subr.mxu0 0.0
      %2054 = vmatpush1.xpose.msra.mxu0 0.0
      %2055 = vmatprep.subr.mxu0 0.0
      %2056 = vmatpush1.xpose.msra.mxu0 0.0
      %2057 = vmatprep.subr.mxu0 0.0
      %2058 = vmatpush1.xpose.msra.mxu0 0.0
      %2059 = vmatprep.subr.mxu0 0.0
      %2060 = vmatpush1.xpose.msra.mxu0 0.0
      %2061 = vmatprep.subr.mxu0 0.0
      %2062 = vmatpush1.xpose.msra.mxu0 0.0
      %2063 = vmatprep.subr.mxu0 0.0
      %2064 = vmatpush1.xpose.msra.mxu0 0.0
      %2065 = vmatprep.subr.mxu0 0.0
      %2066 = vmatpush1.xpose.msra.mxu0 0.0
      %2067 = vmatprep.subr.mxu0 0.0
      %2068 = vmatpush1.xpose.msra.mxu0 0.0
      %2069 = vmatprep.subr.mxu0 0.0
      %2070 = vmatpush1.xpose.msra.mxu0 0.0
      %2071 = vmatprep.subr.mxu0 0.0
      %2072 = vmatpush1.xpose.msra.mxu0 0.0
      %2073 = vmatprep.subr.mxu0 0.0
      %2074 = vmatpush1.xpose.msra.mxu0 0.0
      %2075 = vmatprep.subr.mxu0 0.0
      %2076 = vmatpush1.xpose.msra.mxu0 0.0
      %2077 = vmatprep.subr.mxu0 0.0
      %2078 = vmatpush1.xpose.msra.mxu0 0.0
      %2079 = vmatprep.subr.mxu0 0.0
      %2080 = vmatpush1.xpose.msra.mxu0 0.0
      %2081 = vmatprep.subr.mxu0 0.0
      %2082 = vmatpush1.xpose.msra.mxu0 0.0
      %2083 = vmatprep.subr.mxu0 0.0
      %2084 = vmatpush1.xpose.msra.mxu0 0.0
      %2085 = vmatprep.subr.mxu0 0.0
      %2086 = vmatpush1.xpose.msra.mxu0 0.0
      %2087 = vmatprep.subr.mxu0 0.0
      %2088 = vmatpush1.xpose.msra.mxu0 0.0
      %2089 = vmatprep.subr.mxu0 0.0
      %2090 = vmatpush1.xpose.msra.mxu0 0.0
      %2091 = vmatprep.subr.mxu0 0.0
      %2092 = vmatpush1.xpose.msra.mxu0 0.0
      %2093 = vmatprep.subr.mxu0 0.0
      %2094 = vmatpush1.xpose.msra.mxu0 0.0
      %2095 = vmatprep.subr.mxu0 0.0
      %2096 = vmatpush1.xpose.msra.mxu0 0.0
      %2097 = vmatprep.subr.mxu0 0.0
      %2098 = vmatpush1.xpose.msra.mxu0 0.0
      %2099 = vmatprep.subr.mxu0 0.0
      %2100 = vmatpush1.xpose.msra.mxu0 0.0
      %2101 = vmatprep.subr.mxu0 0.0
      %2102 = vmatpush1.xpose.msra.mxu0 0.0
      %2103 = vmatprep.subr.mxu0 0.0
      %2104 = vmatpush1.xpose.msra.mxu0 0.0
      %2105 = vmatprep.mubr.f32.mxu0 0.0
      %2106 = vmatmul.mubr.f32.gmra.mrb[0].mxu0 %v2033
      %v2107 = vpop.f32.mrb[0].mxu0
      %v2108 = vadd.f32 0.0, %v2107
      %v2109 = vpop.f32.mrb[0].mxu0
      %2110 = vmatprep.mubr.f32.mxu0 0.0
      %2111 = vmatmul.mubr.f32.gmra.mrb[0].mxu0 %v2035
      %v2112 = vpop.f32.mrb[0].mxu0
      %v2113 = vadd.f32 0.0, %v2112
      %v2114 = vpop.f32.mrb[0].mxu0
      %2115 = vdwg.mxu0
      %v2116 = vsel %vm1119, %v1048, 0
      %v2118 = vsel %vm1119, %v1050, 0
      %v2120 = vsel %vm1119, %v1104, 0
      %v2122 = vsel %vm1119, %v1106, 0
      %2124 = vmatprep.subr.mxu0 0.0
      %2125 = vmatpush1.xpose.msra.mxu0 %v2120
      %2126 = vmatprep.subr.mxu0 0.0
      %2127 = vmatpush1.xpose.msra.mxu0 %v2122
      %2128 = vmatprep.subr.mxu0 0.0
      %2129 = vmatpush1.xpose.msra.mxu0 0.0
      %2130 = vmatprep.subr.mxu0 0.0
      %2131 = vmatpush1.xpose.msra.mxu0 0.0
      %2132 = vmatprep.subr.mxu0 0.0
      %2133 = vmatpush1.xpose.msra.mxu0 0.0
      %2134 = vmatprep.subr.mxu0 0.0
      %2135 = vmatpush1.xpose.msra.mxu0 0.0
      %2136 = vmatprep.subr.mxu0 0.0
      %2137 = vmatpush1.xpose.msra.mxu0 0.0
      %2138 = vmatprep.subr.mxu0 0.0
      %2139 = vmatpush1.xpose.msra.mxu0 0.0
      %2140 = vmatprep.subr.mxu0 0.0
      %2141 = vmatpush1.xpose.msra.mxu0 0.0
      %2142 = vmatprep.subr.mxu0 0.0
      %2143 = vmatpush1.xpose.msra.mxu0 0.0
      %2144 = vmatprep.subr.mxu0 0.0
      %2145 = vmatpush1.xpose.msra.mxu0 0.0
      %2146 = vmatprep.subr.mxu0 0.0
      %2147 = vmatpush1.xpose.msra.mxu0 0.0
      %2148 = vmatprep.subr.mxu0 0.0
      %2149 = vmatpush1.xpose.msra.mxu0 0.0
      %2150 = vmatprep.subr.mxu0 0.0
      %2151 = vmatpush1.xpose.msra.mxu0 0.0
      %2152 = vmatprep.subr.mxu0 0.0
      %2153 = vmatpush1.xpose.msra.mxu0 0.0
      %2154 = vmatprep.subr.mxu0 0.0
      %2155 = vmatpush1.xpose.msra.mxu0 0.0
      %2156 = vmatprep.subr.mxu0 0.0
      %2157 = vmatpush1.xpose.msra.mxu0 0.0
      %2158 = vmatprep.subr.mxu0 0.0
      %2159 = vmatpush1.xpose.msra.mxu0 0.0
      %2160 = vmatprep.subr.mxu0 0.0
      %2161 = vmatpush1.xpose.msra.mxu0 0.0
      %2162 = vmatprep.subr.mxu0 0.0
      %2163 = vmatpush1.xpose.msra.mxu0 0.0
      %2164 = vmatprep.subr.mxu0 0.0
      %2165 = vmatpush1.xpose.msra.mxu0 0.0
      %2166 = vmatprep.subr.mxu0 0.0
      %2167 = vmatpush1.xpose.msra.mxu0 0.0
      %2168 = vmatprep.subr.mxu0 0.0
      %2169 = vmatpush1.xpose.msra.mxu0 0.0
      %2170 = vmatprep.subr.mxu0 0.0
      %2171 = vmatpush1.xpose.msra.mxu0 0.0
      %2172 = vmatprep.subr.mxu0 0.0
      %2173 = vmatpush1.xpose.msra.mxu0 0.0
      %2174 = vmatprep.subr.mxu0 0.0
      %2175 = vmatpush1.xpose.msra.mxu0 0.0
      %2176 = vmatprep.subr.mxu0 0.0
      %2177 = vmatpush1.xpose.msra.mxu0 0.0
      %2178 = vmatprep.subr.mxu0 0.0
      %2179 = vmatpush1.xpose.msra.mxu0 0.0
      %2180 = vmatprep.subr.mxu0 0.0
      %2181 = vmatpush1.xpose.msra.mxu0 0.0
      %2182 = vmatprep.subr.mxu0 0.0
      %2183 = vmatpush1.xpose.msra.mxu0 0.0
      %2184 = vmatprep.subr.mxu0 0.0
      %2185 = vmatpush1.xpose.msra.mxu0 0.0
      %2186 = vmatprep.subr.mxu0 0.0
      %2187 = vmatpush1.xpose.msra.mxu0 0.0
      %2188 = vmatprep.mubr.f32.mxu0 0.0
      %2189 = vmatmul.mubr.f32.gmra.mrb[0].mxu0 %v2116
      %v2190 = vpop.f32.mrb[0].mxu0
      %v2191 = vadd.f32 0.0, %v2190
      %v2192 = vpop.f32.mrb[0].mxu0
      %2193 = vmatprep.mubr.f32.mxu0 0.0
      %2194 = vmatmul.mubr.f32.gmra.mrb[0].mxu0 %v2118
      %v2195 = vpop.f32.mrb[0].mxu0
      %v2196 = vadd.f32 0.0, %v2195
      %v2197 = vpop.f32.mrb[0].mxu0
      %2198 = vdwg.mxu0
      %v2199 = vsel %vm1119, %v1052, 0
      %v2201 = vsel %vm1119, %v1054, 0
      %v2203 = vsel %vm1119, %v1108, 0
      %v2205 = vsel %vm1119, %v1110, 0
      %2207 = vmatprep.subr.mxu0 0.0
      %2208 = vmatpush1.xpose.msra.mxu0 %v2203
      %2209 = vmatprep.subr.mxu0 0.0
      %2210 = vmatpush1.xpose.msra.mxu0 %v2205
      %2211 = vmatprep.subr.mxu0 0.0
      %2212 = vmatpush1.xpose.msra.mxu0 0.0
      %2213 = vmatprep.subr.mxu0 0.0
      %2214 = vmatpush1.xpose.msra.mxu0 0.0
      %2215 = vmatprep.subr.mxu0 0.0
      %2216 = vmatpush1.xpose.msra.mxu0 0.0
      %2217 = vmatprep.subr.mxu0 0.0
      %2218 = vmatpush1.xpose.msra.mxu0 0.0
      %2219 = vmatprep.subr.mxu0 0.0
      %2220 = vmatpush1.xpose.msra.mxu0 0.0
      %2221 = vmatprep.subr.mxu0 0.0
      %2222 = vmatpush1.xpose.msra.mxu0 0.0
      %2223 = vmatprep.subr.mxu0 0.0
      %2224 = vmatpush1.xpose.msra.mxu0 0.0
      %2225 = vmatprep.subr.mxu0 0.0
      %2226 = vmatpush1.xpose.msra.mxu0 0.0
      %2227 = vmatprep.subr.mxu0 0.0
      %2228 = vmatpush1.xpose.msra.mxu0 0.0
      %2229 = vmatprep.subr.mxu0 0.0
      %2230 = vmatpush1.xpose.msra.mxu0 0.0
      %2231 = vmatprep.subr.mxu0 0.0
      %2232 = vmatpush1.xpose.msra.mxu0 0.0
      %2233 = vmatprep.subr.mxu0 0.0
      %2234 = vmatpush1.xpose.msra.mxu0 0.0
      %2235 = vmatprep.subr.mxu0 0.0
      %2236 = vmatpush1.xpose.msra.mxu0 0.0
      %2237 = vmatprep.subr.mxu0 0.0
      %2238 = vmatpush1.xpose.msra.mxu0 0.0
      %2239 = vmatprep.subr.mxu0 0.0
      %2240 = vmatpush1.xpose.msra.mxu0 0.0
      %2241 = vmatprep.subr.mxu0 0.0
      %2242 = vmatpush1.xpose.msra.mxu0 0.0
      %2243 = vmatprep.subr.mxu0 0.0
      %2244 = vmatpush1.xpose.msra.mxu0 0.0
      %2245 = vmatprep.subr.mxu0 0.0
      %2246 = vmatpush1.xpose.msra.mxu0 0.0
      %2247 = vmatprep.subr.mxu0 0.0
      %2248 = vmatpush1.xpose.msra.mxu0 0.0
      %2249 = vmatprep.subr.mxu0 0.0
      %2250 = vmatpush1.xpose.msra.mxu0 0.0
      %2251 = vmatprep.subr.mxu0 0.0
      %2252 = vmatpush1.xpose.msra.mxu0 0.0
      %2253 = vmatprep.subr.mxu0 0.0
      %2254 = vmatpush1.xpose.msra.mxu0 0.0
      %2255 = vmatprep.subr.mxu0 0.0
      %2256 = vmatpush1.xpose.msra.mxu0 0.0
      %2257 = vmatprep.subr.mxu0 0.0
      %2258 = vmatpush1.xpose.msra.mxu0 0.0
      %2259 = vmatprep.subr.mxu0 0.0
      %2260 = vmatpush1.xpose.msra.mxu0 0.0
      %2261 = vmatprep.subr.mxu0 0.0
      %2262 = vmatpush1.xpose.msra.mxu0 0.0
      %2263 = vmatprep.subr.mxu0 0.0
      %2264 = vmatpush1.xpose.msra.mxu0 0.0
      %2265 = vmatprep.subr.mxu0 0.0
      %2266 = vmatpush1.xpose.msra.mxu0 0.0
      %2267 = vmatprep.subr.mxu0 0.0
      %2268 = vmatpush1.xpose.msra.mxu0 0.0
      %2269 = vmatprep.subr.mxu0 0.0
      %2270 = vmatpush1.xpose.msra.mxu0 0.0
      %2271 = vmatprep.mubr.f32.mxu0 0.0
      %2272 = vmatmul.mubr.f32.gmra.mrb[0].mxu0 %v2199
      %v2273 = vpop.f32.mrb[0].mxu0
      %v2274 = vadd.f32 0.0, %v2273
      %v2275 = vpop.f32.mrb[0].mxu0
      %2276 = vmatprep.mubr.f32.mxu0 0.0
      %2277 = vmatmul.mubr.f32.gmra.mrb[0].mxu0 %v2201
      %v2278 = vpop.f32.mrb[0].mxu0
      %v2279 = vadd.f32 0.0, %v2278
      %v2280 = vpop.f32.mrb[0].mxu0
      %2281 = vdwg.mxu0
      %v2282 = vsel %vm1119, %v1056, 0
      %v2284 = vsel %vm1119, %v1058, 0
      %v2286 = vsel %vm1119, %v1112, 0
      %v2288 = vsel %vm1119, %v1114, 0
      %2290 = vmatprep.subr.mxu0 0.0
      %2291 = vmatpush1.xpose.msra.mxu0 %v2286
      %2292 = vmatprep.subr.mxu0 0.0
      %2293 = vmatpush1.xpose.msra.mxu0 %v2288
      %2294 = vmatprep.subr.mxu0 0.0
      %2295 = vmatpush1.xpose.msra.mxu0 0.0
      %2296 = vmatprep.subr.mxu0 0.0
      %2297 = vmatpush1.xpose.msra.mxu0 0.0
      %2298 = vmatprep.subr.mxu0 0.0
      %2299 = vmatpush1.xpose.msra.mxu0 0.0
      %2300 = vmatprep.subr.mxu0 0.0
      %2301 = vmatpush1.xpose.msra.mxu0 0.0
      %2302 = vmatprep.subr.mxu0 0.0
      %2303 = vmatpush1.xpose.msra.mxu0 0.0
      %2304 = vmatprep.subr.mxu0 0.0
      %2305 = vmatpush1.xpose.msra.mxu0 0.0
      %2306 = vmatprep.subr.mxu0 0.0
      %2307 = vmatpush1.xpose.msra.mxu0 0.0
      %2308 = vmatprep.subr.mxu0 0.0
      %2309 = vmatpush1.xpose.msra.mxu0 0.0
      %2310 = vmatprep.subr.mxu0 0.0
      %2311 = vmatpush1.xpose.msra.mxu0 0.0
      %2312 = vmatprep.subr.mxu0 0.0
      %2313 = vmatpush1.xpose.msra.mxu0 0.0
      %2314 = vmatprep.subr.mxu0 0.0
      %2315 = vmatpush1.xpose.msra.mxu0 0.0
      %2316 = vmatprep.subr.mxu0 0.0
      %2317 = vmatpush1.xpose.msra.mxu0 0.0
      %2318 = vmatprep.subr.mxu0 0.0
      %2319 = vmatpush1.xpose.msra.mxu0 0.0
      %2320 = vmatprep.subr.mxu0 0.0
      %2321 = vmatpush1.xpose.msra.mxu0 0.0
      %2322 = vmatprep.subr.mxu0 0.0
      %2323 = vmatpush1.xpose.msra.mxu0 0.0
      %2324 = vmatprep.subr.mxu0 0.0
      %2325 = vmatpush1.xpose.msra.mxu0 0.0
      %2326 = vmatprep.subr.mxu0 0.0
      %2327 = vmatpush1.xpose.msra.mxu0 0.0
      %2328 = vmatprep.subr.mxu0 0.0
      %2329 = vmatpush1.xpose.msra.mxu0 0.0
      %2330 = vmatprep.subr.mxu0 0.0
      %2331 = vmatpush1.xpose.msra.mxu0 0.0
      %2332 = vmatprep.subr.mxu0 0.0
      %2333 = vmatpush1.xpose.msra.mxu0 0.0
      %2334 = vmatprep.subr.mxu0 0.0
      %2335 = vmatpush1.xpose.msra.mxu0 0.0
      %2336 = vmatprep.subr.mxu0 0.0
      %2337 = vmatpush1.xpose.msra.mxu0 0.0
      %2338 = vmatprep.subr.mxu0 0.0
      %2339 = vmatpush1.xpose.msra.mxu0 0.0
      %2340 = vmatprep.subr.mxu0 0.0
      %2341 = vmatpush1.xpose.msra.mxu0 0.0
      %2342 = vmatprep.subr.mxu0 0.0
      %2343 = vmatpush1.xpose.msra.mxu0 0.0
      %2344 = vmatprep.subr.mxu0 0.0
      %2345 = vmatpush1.xpose.msra.mxu0 0.0
      %2346 = vmatprep.subr.mxu0 0.0
      %2347 = vmatpush1.xpose.msra.mxu0 0.0
      %2348 = vmatprep.subr.mxu0 0.0
      %2349 = vmatpush1.xpose.msra.mxu0 0.0
      %2350 = vmatprep.subr.mxu0 0.0
      %2351 = vmatpush1.xpose.msra.mxu0 0.0
      %2352 = vmatprep.subr.mxu0 0.0
      %2353 = vmatpush1.xpose.msra.mxu0 0.0
      %2354 = vmatprep.mubr.f32.mxu0 0.0
      %2355 = vmatmul.mubr.f32.gmra.mrb[0].mxu0 %v2282
      %v2356 = vpop.f32.mrb[0].mxu0
      %v2357 = vadd.f32 0.0, %v2356
      %v2358 = vpop.f32.mrb[0].mxu0
      %2359 = vmatprep.mubr.f32.mxu0 0.0
      %2360 = vmatmul.mubr.f32.gmra.mrb[0].mxu0 %v2284
      %v2361 = vpop.f32.mrb[0].mxu0
      %v2362 = vadd.f32 0.0, %v2361
      %v2363 = vpop.f32.mrb[0].mxu0
      %2364 = vdwg.mxu0
      %v2365 = vsel %vm1119, %v1060, 0
      %v2367 = vsel %vm1119, %v1062, 0
      %v2369 = vsel %vm1119, %v1116, 0
      %v2371 = vsel %vm1119, %v1118, 0
      %2373 = vmatprep.subr.mxu0 0.0
      %2374 = vmatpush1.xpose.msra.mxu0 %v2369
      %2375 = vmatprep.subr.mxu0 0.0
      %2376 = vmatpush1.xpose.msra.mxu0 %v2371
      %2377 = vmatprep.subr.mxu0 0.0
      %2378 = vmatpush1.xpose.msra.mxu0 0.0
      %2379 = vmatprep.subr.mxu0 0.0
      %2380 = vmatpush1.xpose.msra.mxu0 0.0
      %2381 = vmatprep.subr.mxu0 0.0
      %2382 = vmatpush1.xpose.msra.mxu0 0.0
      %2383 = vmatprep.subr.mxu0 0.0
      %2384 = vmatpush1.xpose.msra.mxu0 0.0
      %2385 = vmatprep.subr.mxu0 0.0
      %2386 = vmatpush1.xpose.msra.mxu0 0.0
      %2387 = vmatprep.subr.mxu0 0.0
      %2388 = vmatpush1.xpose.msra.mxu0 0.0
      %2389 = vmatprep.subr.mxu0 0.0
      %2390 = vmatpush1.xpose.msra.mxu0 0.0
      %2391 = vmatprep.subr.mxu0 0.0
      %2392 = vmatpush1.xpose.msra.mxu0 0.0
      %2393 = vmatprep.subr.mxu0 0.0
      %2394 = vmatpush1.xpose.msra.mxu0 0.0
      %2395 = vmatprep.subr.mxu0 0.0
      %2396 = vmatpush1.xpose.msra.mxu0 0.0
      %2397 = vmatprep.subr.mxu0 0.0
      %2398 = vmatpush1.xpose.msra.mxu0 0.0
      %2399 = vmatprep.subr.mxu0 0.0
      %2400 = vmatpush1.xpose.msra.mxu0 0.0
      %2401 = vmatprep.subr.mxu0 0.0
      %2402 = vmatpush1.xpose.msra.mxu0 0.0
      %2403 = vmatprep.subr.mxu0 0.0
      %2404 = vmatpush1.xpose.msra.mxu0 0.0
      %2405 = vmatprep.subr.mxu0 0.0
      %2406 = vmatpush1.xpose.msra.mxu0 0.0
      %2407 = vmatprep.subr.mxu0 0.0
      %2408 = vmatpush1.xpose.msra.mxu0 0.0
      %2409 = vmatprep.subr.mxu0 0.0
      %2410 = vmatpush1.xpose.msra.mxu0 0.0
      %2411 = vmatprep.subr.mxu0 0.0
      %2412 = vmatpush1.xpose.msra.mxu0 0.0
      %2413 = vmatprep.subr.mxu0 0.0
      %2414 = vmatpush1.xpose.msra.mxu0 0.0
      %2415 = vmatprep.subr.mxu0 0.0
      %2416 = vmatpush1.xpose.msra.mxu0 0.0
      %2417 = vmatprep.subr.mxu0 0.0
      %2418 = vmatpush1.xpose.msra.mxu0 0.0
      %2419 = vmatprep.subr.mxu0 0.0
      %2420 = vmatpush1.xpose.msra.mxu0 0.0
      %2421 = vmatprep.subr.mxu0 0.0
      %2422 = vmatpush1.xpose.msra.mxu0 0.0
      %2423 = vmatprep.subr.mxu0 0.0
      %2424 = vmatpush1.xpose.msra.mxu0 0.0
      %2425 = vmatprep.subr.mxu0 0.0
      %2426 = vmatpush1.xpose.msra.mxu0 0.0
      %2427 = vmatprep.subr.mxu0 0.0
      %2428 = vmatpush1.xpose.msra.mxu0 0.0
      %2429 = vmatprep.subr.mxu0 0.0
      %2430 = vmatpush1.xpose.msra.mxu0 0.0
      %2431 = vmatprep.subr.mxu0 0.0
      %2432 = vmatpush1.xpose.msra.mxu0 0.0
      %2433 = vmatprep.subr.mxu0 0.0
      %2434 = vmatpush1.xpose.msra.mxu0 0.0
      %2435 = vmatprep.subr.mxu0 0.0
      %2436 = vmatpush1.xpose.msra.mxu0 0.0
      %2437 = vmatprep.mubr.f32.mxu0 0.0
      %2438 = vmatmul.mubr.f32.gmra.mrb[0].mxu0 %v2365
      %v2439 = vpop.f32.mrb[0].mxu0
      %v2440 = vadd.f32 0.0, %v2439
      %v2441 = vpop.f32.mrb[0].mxu0
      %2442 = vmatprep.mubr.f32.mxu0 0.0
      %2443 = vmatmul.mubr.f32.gmra.mrb[0].mxu0 %v2367
      %v2444 = vpop.f32.mrb[0].mxu0
      %v2445 = vadd.f32 0.0, %v2444
      %v2446 = vpop.f32.mrb[0].mxu0
      %2447 = vdwg.mxu0
      %v2448 = vld [vmem:[%s8] sm:$0xff]
      %v2449 = vld [vmem:[%s8 + $0x8] sm:$0xff]
      %v2450 = vld [vmem:[%s8 + $0x10] sm:$0xff]
      %v2451 = vld [vmem:[%s8 + $0x18] sm:$0xff]
      %v2452 = vld [vmem:[%s8 + $0x20] sm:$0xff]
      %v2453 = vld [vmem:[%s8 + $0x28] sm:$0xff]
      %v2454 = vld [vmem:[%s8 + $0x30] sm:$0xff]
      %v2455 = vld [vmem:[%s8 + $0x38] sm:$0xff]
      %v2456 = vadd.f32 %v1195, %v2448
      %v2457 = vadd.f32 %v1200, %v2449
      %v2458 = vadd.f32 %v1278, %v2448
      %v2459 = vadd.f32 %v1283, %v2449
      %v2460 = vadd.f32 %v1361, %v2448
      %v2461 = vadd.f32 %v1366, %v2449
      %v2462 = vadd.f32 %v1444, %v2448
      %v2463 = vadd.f32 %v1449, %v2449
      %v2464 = vadd.f32 %v1527, %v2450
      %v2465 = vadd.f32 %v1532, %v2451
      %v2466 = vadd.f32 %v1610, %v2450
      %v2467 = vadd.f32 %v1615, %v2451
      %v2468 = vadd.f32 %v1693, %v2450
      %v2469 = vadd.f32 %v1698, %v2451
      %v2470 = vadd.f32 %v1776, %v2450
      %v2471 = vadd.f32 %v1781, %v2451
      %v2472 = vadd.f32 %v1859, %v2452
      %v2473 = vadd.f32 %v1864, %v2453
      %v2474 = vadd.f32 %v1942, %v2452
      %v2475 = vadd.f32 %v1947, %v2453
      %v2476 = vadd.f32 %v2025, %v2452
      %v2477 = vadd.f32 %v2030, %v2453
      %v2478 = vadd.f32 %v2108, %v2452
      %v2479 = vadd.f32 %v2113, %v2453
      %v2480 = vadd.f32 %v2191, %v2454
      %v2481 = vadd.f32 %v2196, %v2455
      %v2482 = vadd.f32 %v2274, %v2454
      %v2483 = vadd.f32 %v2279, %v2455
      %v2484 = vadd.f32 %v2357, %v2454
      %v2485 = vadd.f32 %v2362, %v2455
      %v2486 = vadd.f32 %v2440, %v2454
      %v2487 = vadd.f32 %v2445, %v2455
      %v2488 = vld [vmem:[%s11] sm:$0xff]
      %v2489 = vld [vmem:[%s11 + $0x8] sm:$0xff]
      %v2490 = vld [vmem:[%s11 + $0x10] sm:$0xff]
      %v2491 = vld [vmem:[%s11 + $0x18] sm:$0xff]
      %v2492 = vld [vmem:[%s11 + $0x20] sm:$0xff]
      %v2493 = vld [vmem:[%s11 + $0x28] sm:$0xff]
      %v2494 = vld [vmem:[%s11 + $0x30] sm:$0xff]
      %v2495 = vld [vmem:[%s11 + $0x38] sm:$0xff]
      %v2496 = vadd.f32 %v2456, %v2488
      %v2497 = vadd.f32 %v2457, %v2489
      %v2498 = vadd.f32 %v2458, %v2490
      %v2499 = vadd.f32 %v2459, %v2491
      %v2500 = vadd.f32 %v2460, %v2492
      %v2501 = vadd.f32 %v2461, %v2493
      %v2502 = vadd.f32 %v2462, %v2494
      %v2503 = vadd.f32 %v2463, %v2495
      %v2504 = vadd.f32 %v2464, %v2488
      %v2505 = vadd.f32 %v2465, %v2489
      %v2506 = vadd.f32 %v2466, %v2490
      %v2507 = vadd.f32 %v2467, %v2491
      %v2508 = vadd.f32 %v2468, %v2492
      %v2509 = vadd.f32 %v2469, %v2493
      %v2510 = vadd.f32 %v2470, %v2494
      %v2511 = vadd.f32 %v2471, %v2495
      %v2512 = vadd.f32 %v2472, %v2488
      %v2513 = vadd.f32 %v2473, %v2489
      %v2514 = vadd.f32 %v2474, %v2490
      %v2515 = vadd.f32 %v2475, %v2491
      %v2516 = vadd.f32 %v2476, %v2492
      %v2517 = vadd.f32 %v2477, %v2493
      %v2518 = vadd.f32 %v2478, %v2494
      %v2519 = vadd.f32 %v2479, %v2495
      %v2520 = vadd.f32 %v2480, %v2488
      %v2521 = vadd.f32 %v2481, %v2489
      %v2522 = vadd.f32 %v2482, %v2490
      %v2523 = vadd.f32 %v2483, %v2491
      %v2524 = vadd.f32 %v2484, %v2492
      %v2525 = vadd.f32 %v2485, %v2493
      %v2526 = vadd.f32 %v2486, %v2494
      %v2527 = vadd.f32 %v2487, %v2495
      %vm2528 = vcmask 130048
      %v2529 = vsel %vm2528, %v2496, -inf
      %2530 = vmax.xlane.f32.xlu0 %v2529
      %v2531 = vpop.xlane.xlu0 %2530
      %v2532 = vsel %vm2528, %v2497, -inf
      %2533 = vmax.xlane.f32.xlu0 %v2532
      %v2534 = vpop.xlane.xlu0 %2533
      %v2535 = vsel %vm2528, %v2498, -inf
      %2536 = vmax.xlane.f32.xlu0 %v2535
      %v2537 = vpop.xlane.xlu0 %2536
      %v2538 = vsel %vm2528, %v2499, -inf
      %2539 = vmax.xlane.f32.xlu0 %v2538
      %v2540 = vpop.xlane.xlu0 %2539
      %v2541 = vsel %vm2528, %v2500, -inf
      %2542 = vmax.xlane.f32.xlu0 %v2541
      %v2543 = vpop.xlane.xlu0 %2542
      %v2544 = vsel %vm2528, %v2501, -inf
      %2545 = vmax.xlane.f32.xlu0 %v2544
      %v2546 = vpop.xlane.xlu0 %2545
      %v2547 = vsel %vm2528, %v2502, -inf
      %2548 = vmax.xlane.f32.xlu0 %v2547
      %v2549 = vpop.xlane.xlu0 %2548
      %v2550 = vsel %vm2528, %v2503, -inf
      %2551 = vmax.xlane.f32.xlu0 %v2550
      %v2552 = vpop.xlane.xlu0 %2551
      %v2553 = vsel %vm2528, %v2504, -inf
      %2554 = vmax.xlane.f32.xlu0 %v2553
      %v2555 = vpop.xlane.xlu0 %2554
      %v2556 = vsel %vm2528, %v2505, -inf
      %2557 = vmax.xlane.f32.xlu0 %v2556
      %v2558 = vpop.xlane.xlu0 %2557
      %v2559 = vsel %vm2528, %v2506, -inf
      %2560 = vmax.xlane.f32.xlu0 %v2559
      %v2561 = vpop.xlane.xlu0 %2560
      %v2562 = vsel %vm2528, %v2507, -inf
      %2563 = vmax.xlane.f32.xlu0 %v2562
      %v2564 = vpop.xlane.xlu0 %2563
      %v2565 = vsel %vm2528, %v2508, -inf
      %2566 = vmax.xlane.f32.xlu0 %v2565
      %v2567 = vpop.xlane.xlu0 %2566
      %v2568 = vsel %vm2528, %v2509, -inf
      %2569 = vmax.xlane.f32.xlu0 %v2568
      %v2570 = vpop.xlane.xlu0 %2569
      %v2571 = vsel %vm2528, %v2510, -inf
      %2572 = vmax.xlane.f32.xlu0 %v2571
      %v2573 = vpop.xlane.xlu0 %2572
      %v2574 = vsel %vm2528, %v2511, -inf
      %2575 = vmax.xlane.f32.xlu0 %v2574
      %v2576 = vpop.xlane.xlu0 %2575
      %v2577 = vsel %vm2528, %v2512, -inf
      %2578 = vmax.xlane.f32.xlu0 %v2577
      %v2579 = vpop.xlane.xlu0 %2578
      %v2580 = vsel %vm2528, %v2513, -inf
      %2581 = vmax.xlane.f32.xlu0 %v2580
      %v2582 = vpop.xlane.xlu0 %2581
      %v2583 = vsel %vm2528, %v2514, -inf
      %2584 = vmax.xlane.f32.xlu0 %v2583
      %v2585 = vpop.xlane.xlu0 %2584
      %v2586 = vsel %vm2528, %v2515, -inf
      %2587 = vmax.xlane.f32.xlu0 %v2586
      %v2588 = vpop.xlane.xlu0 %2587
      %v2589 = vsel %vm2528, %v2516, -inf
      %2590 = vmax.xlane.f32.xlu0 %v2589
      %v2591 = vpop.xlane.xlu0 %2590
      %v2592 = vsel %vm2528, %v2517, -inf
      %2593 = vmax.xlane.f32.xlu0 %v2592
      %v2594 = vpop.xlane.xlu0 %2593
      %v2595 = vsel %vm2528, %v2518, -inf
      %2596 = vmax.xlane.f32.xlu0 %v2595
      %v2597 = vpop.xlane.xlu0 %2596
      %v2598 = vsel %vm2528, %v2519, -inf
      %2599 = vmax.xlane.f32.xlu0 %v2598
      %v2600 = vpop.xlane.xlu0 %2599
      %v2601 = vsel %vm2528, %v2520, -inf
      %2602 = vmax.xlane.f32.xlu0 %v2601
      %v2603 = vpop.xlane.xlu0 %2602
      %v2604 = vsel %vm2528, %v2521, -inf
      %2605 = vmax.xlane.f32.xlu0 %v2604
      %v2606 = vpop.xlane.xlu0 %2605
      %v2607 = vsel %vm2528, %v2522, -inf
      %2608 = vmax.xlane.f32.xlu0 %v2607
      %v2609 = vpop.xlane.xlu0 %2608
      %v2610 = vsel %vm2528, %v2523, -inf
      %2611 = vmax.xlane.f32.xlu0 %v2610
      %v2612 = vpop.xlane.xlu0 %2611
      %v2613 = vsel %vm2528, %v2524, -inf
      %2614 = vmax.xlane.f32.xlu0 %v2613
      %v2615 = vpop.xlane.xlu0 %2614
      %v2616 = vsel %vm2528, %v2525, -inf
      %2617 = vmax.xlane.f32.xlu0 %v2616
      %v2618 = vpop.xlane.xlu0 %2617
      %v2619 = vsel %vm2528, %v2526, -inf
      %2620 = vmax.xlane.f32.xlu0 %v2619
      %v2621 = vpop.xlane.xlu0 %2620
      %v2622 = vsel %vm2528, %v2527, -inf
      %2623 = vmax.xlane.f32.xlu0 %v2622
      %v2624 = vpop.xlane.xlu0 %2623
      %v2625 = vsub.f32 %v2496, %v2531
      %v2626 = vsub.f32 %v2497, %v2534
      %v2627 = vsub.f32 %v2498, %v2537
      %v2628 = vsub.f32 %v2499, %v2540
      %v2629 = vsub.f32 %v2500, %v2543
      %v2630 = vsub.f32 %v2501, %v2546
      %v2631 = vsub.f32 %v2502, %v2549
      %v2632 = vsub.f32 %v2503, %v2552
      %v2633 = vsub.f32 %v2504, %v2555
      %v2634 = vsub.f32 %v2505, %v2558
      %v2635 = vsub.f32 %v2506, %v2561
      %v2636 = vsub.f32 %v2507, %v2564
      %v2637 = vsub.f32 %v2508, %v2567
      %v2638 = vsub.f32 %v2509, %v2570
      %v2639 = vsub.f32 %v2510, %v2573
      %v2640 = vsub.f32 %v2511, %v2576
      %v2641 = vsub.f32 %v2512, %v2579
      %v2642 = vsub.f32 %v2513, %v2582
      %v2643 = vsub.f32 %v2514, %v2585
      %v2644 = vsub.f32 %v2515, %v2588
      %v2645 = vsub.f32 %v2516, %v2591
      %v2646 = vsub.f32 %v2517, %v2594
      %v2647 = vsub.f32 %v2518, %v2597
      %v2648 = vsub.f32 %v2519, %v2600
      %v2649 = vsub.f32 %v2520, %v2603
      %v2650 = vsub.f32 %v2521, %v2606
      %v2651 = vsub.f32 %v2522, %v2609
      %v2652 = vsub.f32 %v2523, %v2612
      %v2653 = vsub.f32 %v2524, %v2615
      %v2654 = vsub.f32 %v2525, %v2618
      %v2655 = vsub.f32 %v2526, %v2621
      %v2656 = vsub.f32 %v2527, %v2624
      %v2657 = vmul.f32 %v2625, 1.442695
      %v2658 = vpow.pop %v2657
      %v2659 = vmul.f32 %v2626, 1.442695
      %v2660 = vpow.pop %v2659
      %v2661 = vmul.f32 %v2627, 1.442695
      %v2662 = vpow.pop %v2661
      %v2663 = vmul.f32 %v2628, 1.442695
      %v2664 = vpow.pop %v2663
      %v2665 = vmul.f32 %v2629, 1.442695
      %v2666 = vpow.pop %v2665
      %v2667 = vmul.f32 %v2630, 1.442695
      %v2668 = vpow.pop %v2667
      %v2669 = vmul.f32 %v2631, 1.442695
      %v2670 = vpow.pop %v2669
      %v2671 = vmul.f32 %v2632, 1.442695
      %v2672 = vpow.pop %v2671
      %v2673 = vmul.f32 %v2633, 1.442695
      %v2674 = vpow.pop %v2673
      %v2675 = vmul.f32 %v2634, 1.442695
      %v2676 = vpow.pop %v2675
      %v2677 = vmul.f32 %v2635, 1.442695
      %v2678 = vpow.pop %v2677
      %v2679 = vmul.f32 %v2636, 1.442695
      %v2680 = vpow.pop %v2679
      %v2681 = vmul.f32 %v2637, 1.442695
      %v2682 = vpow.pop %v2681
      %v2683 = vmul.f32 %v2638, 1.442695
      %v2684 = vpow.pop %v2683
      %v2685 = vmul.f32 %v2639, 1.442695
      %v2686 = vpow.pop %v2685
      %v2687 = vmul.f32 %v2640, 1.442695
      %v2688 = vpow.pop %v2687
      %v2689 = vmul.f32 %v2641, 1.442695
      %v2690 = vpow.pop %v2689
      %v2691 = vmul.f32 %v2642, 1.442695
      %v2692 = vpow.pop %v2691
      %v2693 = vmul.f32 %v2643, 1.442695
      %v2694 = vpow.pop %v2693
      %v2695 = vmul.f32 %v2644, 1.442695
      %v2696 = vpow.pop %v2695
      %v2697 = vmul.f32 %v2645, 1.442695
      %v2698 = vpow.pop %v2697
      %v2699 = vmul.f32 %v2646, 1.442695
      %v2700 = vpow.pop %v2699
      %v2701 = vmul.f32 %v2647, 1.442695
      %v2702 = vpow.pop %v2701
      %v2703 = vmul.f32 %v2648, 1.442695
      %v2704 = vpow.pop %v2703
      %v2705 = vmul.f32 %v2649, 1.442695
      %v2706 = vpow.pop %v2705
      %v2707 = vmul.f32 %v2650, 1.442695
      %v2708 = vpow.pop %v2707
      %v2709 = vmul.f32 %v2651, 1.442695
      %v2710 = vpow.pop %v2709
      %v2711 = vmul.f32 %v2652, 1.442695
      %v2712 = vpow.pop %v2711
      %v2713 = vmul.f32 %v2653, 1.442695
      %v2714 = vpow.pop %v2713
      %v2715 = vmul.f32 %v2654, 1.442695
      %v2716 = vpow.pop %v2715
      %v2717 = vmul.f32 %v2655, 1.442695
      %v2718 = vpow.pop %v2717
      %v2719 = vmul.f32 %v2656, 1.442695
      %v2720 = vpow.pop %v2719
      %v2721 = vsel %vm2528, %v2658, 0.0
      %2722 = vadd.xlane.f32.xlu0 %v2721
      %v2723 = vpop.xlane.xlu0 %2722
      %v2724 = vsel %vm2528, %v2660, 0.0
      %2725 = vadd.xlane.f32.xlu0 %v2724
      %v2726 = vpop.xlane.xlu0 %2725
      %v2727 = vsel %vm2528, %v2662, 0.0
      %2728 = vadd.xlane.f32.xlu0 %v2727
      %v2729 = vpop.xlane.xlu0 %2728
      %v2730 = vsel %vm2528, %v2664, 0.0
      %2731 = vadd.xlane.f32.xlu0 %v2730
      %v2732 = vpop.xlane.xlu0 %2731
      %v2733 = vsel %vm2528, %v2666, 0.0
      %2734 = vadd.xlane.f32.xlu0 %v2733
      %v2735 = vpop.xlane.xlu0 %2734
      %v2736 = vsel %vm2528, %v2668, 0.0
      %2737 = vadd.xlane.f32.xlu0 %v2736
      %v2738 = vpop.xlane.xlu0 %2737
      %v2739 = vsel %vm2528, %v2670, 0.0
      %2740 = vadd.xlane.f32.xlu0 %v2739
      %v2741 = vpop.xlane.xlu0 %2740
      %v2742 = vsel %vm2528, %v2672, 0.0
      %2743 = vadd.xlane.f32.xlu0 %v2742
      %v2744 = vpop.xlane.xlu0 %2743
      %v2745 = vsel %vm2528, %v2674, 0.0
      %2746 = vadd.xlane.f32.xlu0 %v2745
      %v2747 = vpop.xlane.xlu0 %2746
      %v2748 = vsel %vm2528, %v2676, 0.0
      %2749 = vadd.xlane.f32.xlu0 %v2748
      %v2750 = vpop.xlane.xlu0 %2749
      %v2751 = vsel %vm2528, %v2678, 0.0
      %2752 = vadd.xlane.f32.xlu0 %v2751
      %v2753 = vpop.xlane.xlu0 %2752
      %v2754 = vsel %vm2528, %v2680, 0.0
      %2755 = vadd.xlane.f32.xlu0 %v2754
      %v2756 = vpop.xlane.xlu0 %2755
      %v2757 = vsel %vm2528, %v2682, 0.0
      %2758 = vadd.xlane.f32.xlu0 %v2757
      %v2759 = vpop.xlane.xlu0 %2758
      %v2760 = vsel %vm2528, %v2684, 0.0
      %2761 = vadd.xlane.f32.xlu0 %v2760
      %v2762 = vpop.xlane.xlu0 %2761
      %v2763 = vsel %vm2528, %v2686, 0.0
      %2764 = vadd.xlane.f32.xlu0 %v2763
      %v2765 = vpop.xlane.xlu0 %2764
      %v2766 = vsel %vm2528, %v2688, 0.0
      %2767 = vadd.xlane.f32.xlu0 %v2766
      %v2768 = vpop.xlane.xlu0 %2767
      %v2769 = vsel %vm2528, %v2690, 0.0
      %2770 = vadd.xlane.f32.xlu0 %v2769
      %v2771 = vpop.xlane.xlu0 %2770
      %v2772 = vsel %vm2528, %v2692, 0.0
      %2773 = vadd.xlane.f32.xlu0 %v2772
      %v2774 = vpop.xlane.xlu0 %2773
      %v2775 = vsel %vm2528, %v2694, 0.0
      %2776 = vadd.xlane.f32.xlu0 %v2775
      %v2777 = vpop.xlane.xlu0 %2776
      %v2778 = vsel %vm2528, %v2696, 0.0
      %2779 = vadd.xlane.f32.xlu0 %v2778
      %v2780 = vpop.xlane.xlu0 %2779
      %v2781 = vsel %vm2528, %v2698, 0.0
      %2782 = vadd.xlane.f32.xlu0 %v2781
      %v2783 = vpop.xlane.xlu0 %2782
      %v2784 = vsel %vm2528, %v2700, 0.0
      %2785 = vadd.xlane.f32.xlu0 %v2784
      %v2786 = vpop.xlane.xlu0 %2785
      %v2787 = vsel %vm2528, %v2702, 0.0
      %2788 = vadd.xlane.f32.xlu0 %v2787
      %v2789 = vpop.xlane.xlu0 %2788
      %v2790 = vsel %vm2528, %v2704, 0.0
      %2791 = vadd.xlane.f32.xlu0 %v2790
      %v2792 = vpop.xlane.xlu0 %2791
      %v2793 = vsel %vm2528, %v2706, 0.0
      %2794 = vadd.xlane.f32.xlu0 %v2793
      %v2795 = vpop.xlane.xlu0 %2794
      %v2796 = vsel %vm2528, %v2708, 0.0
      %2797 = vadd.xlane.f32.xlu0 %v2796
      %v2798 = vpop.xlane.xlu0 %2797
      %v2799 = vsel %vm2528, %v2710, 0.0
      %2800 = vadd.xlane.f32.xlu0 %v2799
      %v2801 = vpop.xlane.xlu0 %2800
      %v2802 = vsel %vm2528, %v2712, 0.0
      %2803 = vadd.xlane.f32.xlu0 %v2802
      %v2804 = vpop.xlane.xlu0 %2803
      %v2805 = vsel %vm2528, %v2714, 0.0
      %2806 = vadd.xlane.f32.xlu0 %v2805
      %v2807 = vpop.xlane.xlu0 %2806
      %v2808 = vsel %vm2528, %v2716, 0.0
      %2809 = vadd.xlane.f32.xlu0 %v2808
      %v2810 = vpop.xlane.xlu0 %2809
      %v2811 = vsel %vm2528, %v2718, 0.0
      %2812 = vadd.xlane.f32.xlu0 %v2811
      %v2813 = vpop.xlane.xlu0 %2812
      %v2814 = vsel %vm2528, %v2720, 0.0
      %2815 = vadd.xlane.f32.xlu0 %v2814
      %v2816 = vpop.xlane.xlu0 %2815
      %v2817 = vrcp.pop %v2723
      %v2818 = vrcp.pop %v2726
      %v2819 = vrcp.pop %v2729
      %v2820 = vrcp.pop %v2732
      %v2821 = vrcp.pop %v2735
      %v2822 = vrcp.pop %v2738
      %v2823 = vrcp.pop %v2741
      %v2824 = vrcp.pop %v2744
      %v2825 = vrcp.pop %v2747
      %v2826 = vrcp.pop %v2750
      %v2827 = vrcp.pop %v2753
      %v2828 = vrcp.pop %v2756
      %v2829 = vrcp.pop %v2759
      %v2830 = vrcp.pop %v2762
      %v2831 = vrcp.pop %v2765
      %v2832 = vrcp.pop %v2768
      %v2833 = vrcp.pop %v2771
      %v2834 = vrcp.pop %v2774
      %v2835 = vrcp.pop %v2777
      %v2836 = vrcp.pop %v2780
      %v2837 = vrcp.pop %v2783
      %v2838 = vrcp.pop %v2786
      %v2839 = vrcp.pop %v2789
      %v2840 = vrcp.pop %v2792
      %v2841 = vrcp.pop %v2795
      %v2842 = vrcp.pop %v2798
      %v2843 = vrcp.pop %v2801
      %v2844 = vrcp.pop %v2804
      %v2845 = vrcp.pop %v2807
      %v2846 = vrcp.pop %v2810
      %v2847 = vrcp.pop %v2813
      %v2848 = vrcp.pop %v2816
      %v2849 = vmul.f32 %v2658, %v2817
      %v2850 = vmul.f32 %v2660, %v2818
      %v2851 = vmul.f32 %v2662, %v2819
      %v2852 = vmul.f32 %v2664, %v2820
      %v2853 = vmul.f32 %v2666, %v2821
      %v2854 = vmul.f32 %v2668, %v2822
      %v2855 = vmul.f32 %v2670, %v2823
      %v2856 = vmul.f32 %v2672, %v2824
      %v2857 = vmul.f32 %v2674, %v2825
      %v2858 = vmul.f32 %v2676, %v2826
      %v2859 = vmul.f32 %v2678, %v2827
      %v2860 = vmul.f32 %v2680, %v2828
      %v2861 = vmul.f32 %v2682, %v2829
      %v2862 = vmul.f32 %v2684, %v2830
      %v2863 = vmul.f32 %v2686, %v2831
      %v2864 = vmul.f32 %v2688, %v2832
      %v2865 = vmul.f32 %v2690, %v2833
      %v2866 = vmul.f32 %v2692, %v2834
      %v2867 = vmul.f32 %v2694, %v2835
      %v2868 = vmul.f32 %v2696, %v2836
      %v2869 = vmul.f32 %v2698, %v2837
      %v2870 = vmul.f32 %v2700, %v2838
      %v2871 = vmul.f32 %v2702, %v2839
      %v2872 = vmul.f32 %v2704, %v2840
      %v2873 = vmul.f32 %v2706, %v2841
      %v2874 = vmul.f32 %v2708, %v2842
      %v2875 = vmul.f32 %v2710, %v2843
      %v2876 = vmul.f32 %v2712, %v2844
      %v2877 = vmul.f32 %v2714, %v2845
      %v2878 = vmul.f32 %v2716, %v2846
      %v2879 = vmul.f32 %v2718, %v2847
      %v2880 = vmul.f32 %v2720, %v2848
      %2881 = vrot.lane.b32.xlu0 %v969, 96
      %v2882 = vpop.permute.xlu0 %2881
      %2883 = vrot.lane.b32.xlu0 %v974, 96
      %v2884 = vpop.permute.xlu0 %2883
      %v2888 = vsel %vm2528, %v2849, 0
      %v2891 = vsel %vm2528, %v2850, 0
      %2893 = vmatprep.subr.mxu0 0.0
      %2894 = vmatpush1.msra.mxu0 %v2882
      %2895 = vmatprep.subr.mxu0 0.0
      %2896 = vmatpush1.msra.mxu0 %v2884
      %2897 = vmatprep.subr.mxu0 0.0
      %2898 = vmatpush1.msra.mxu0 0.0
      %2899 = vmatprep.subr.mxu0 0.0
      %2900 = vmatpush1.msra.mxu0 0.0
      %2901 = vmatprep.subr.mxu0 0.0
      %2902 = vmatpush1.msra.mxu0 0.0
      %2903 = vmatprep.subr.mxu0 0.0
      %2904 = vmatpush1.msra.mxu0 0.0
      %2905 = vmatprep.subr.mxu0 0.0
      %2906 = vmatpush1.msra.mxu0 0.0
      %2907 = vmatprep.subr.mxu0 0.0
      %2908 = vmatpush1.msra.mxu0 0.0
      %2909 = vmatprep.subr.mxu0 0.0
      %2910 = vmatpush1.msra.mxu0 0.0
      %2911 = vmatprep.subr.mxu0 0.0
      %2912 = vmatpush1.msra.mxu0 0.0
      %2913 = vmatprep.subr.mxu0 0.0
      %2914 = vmatpush1.msra.mxu0 0.0
      %2915 = vmatprep.subr.mxu0 0.0
      %2916 = vmatpush1.msra.mxu0 0.0
      %2917 = vmatprep.subr.mxu0 0.0
      %2918 = vmatpush1.msra.mxu0 0.0
      %2919 = vmatprep.subr.mxu0 0.0
      %2920 = vmatpush1.msra.mxu0 0.0
      %2921 = vmatprep.subr.mxu0 0.0
      %2922 = vmatpush1.msra.mxu0 0.0
      %2923 = vmatprep.subr.mxu0 0.0
      %2924 = vmatpush1.msra.mxu0 0.0
      %2925 = vmatprep.subr.mxu0 0.0
      %2926 = vmatpush1.msra.mxu0 0.0
      %2927 = vmatprep.subr.mxu0 0.0
      %2928 = vmatpush1.msra.mxu0 0.0
      %2929 = vmatprep.subr.mxu0 0.0
      %2930 = vmatpush1.msra.mxu0 0.0
      %2931 = vmatprep.subr.mxu0 0.0
      %2932 = vmatpush1.msra.mxu0 0.0
      %2933 = vmatprep.subr.mxu0 0.0
      %2934 = vmatpush1.msra.mxu0 0.0
      %2935 = vmatprep.subr.mxu0 0.0
      %2936 = vmatpush1.msra.mxu0 0.0
      %2937 = vmatprep.subr.mxu0 0.0
      %2938 = vmatpush1.msra.mxu0 0.0
      %2939 = vmatprep.subr.mxu0 0.0
      %2940 = vmatpush1.msra.mxu0 0.0
      %2941 = vmatprep.subr.mxu0 0.0
      %2942 = vmatpush1.msra.mxu0 0.0
      %2943 = vmatprep.subr.mxu0 0.0
      %2944 = vmatpush1.msra.mxu0 0.0
      %2945 = vmatprep.subr.mxu0 0.0
      %2946 = vmatpush1.msra.mxu0 0.0
      %2947 = vmatprep.subr.mxu0 0.0
      %2948 = vmatpush1.msra.mxu0 0.0
      %2949 = vmatprep.subr.mxu0 0.0
      %2950 = vmatpush1.msra.mxu0 0.0
      %2951 = vmatprep.subr.mxu0 0.0
      %2952 = vmatpush1.msra.mxu0 0.0
      %2953 = vmatprep.subr.mxu0 0.0
      %2954 = vmatpush1.msra.mxu0 0.0
      %2955 = vmatprep.subr.mxu0 0.0
      %2956 = vmatpush1.msra.mxu0 0.0
      %2957 = vmatprep.mubr.f32.mxu0 0.0
      %2958 = vmatmul.mubr.f32.gmra.mrb[0].mxu0 %v2888
      %v2959 = vpop.f32.mrb[0].mxu0
      %v2960 = vadd.f32 0.0, %v2959
      %v2961 = vpop.f32.mrb[0].mxu0
      %2962 = vmatprep.mubr.f32.mxu0 0.0
      %2963 = vmatmul.mubr.f32.gmra.mrb[0].mxu0 %v2891
      %v2964 = vpop.f32.mrb[0].mxu0
      %v2965 = vadd.f32 0.0, %v2964
      %v2966 = vpop.f32.mrb[0].mxu0
      %2967 = vdwg.mxu0
      %2968 = vrot.lane.b32.xlu0 %v979, 96
      %v2969 = vpop.permute.xlu0 %2968
      %2970 = vrot.lane.b32.xlu0 %v984, 96
      %v2971 = vpop.permute.xlu0 %2970
      %v2975 = vsel %vm2528, %v2851, 0
      %v2978 = vsel %vm2528, %v2852, 0
      %2980 = vmatprep.subr.mxu0 0.0
      %2981 = vmatpush1.msra.mxu0 %v2969
      %2982 = vmatprep.subr.mxu0 0.0
      %2983 = vmatpush1.msra.mxu0 %v2971
      %2984 = vmatprep.subr.mxu0 0.0
      %2985 = vmatpush1.msra.mxu0 0.0
      %2986 = vmatprep.subr.mxu0 0.0
      %2987 = vmatpush1.msra.mxu0 0.0
      %2988 = vmatprep.subr.mxu0 0.0
      %2989 = vmatpush1.msra.mxu0 0.0
      %2990 = vmatprep.subr.mxu0 0.0
      %2991 = vmatpush1.msra.mxu0 0.0
      %2992 = vmatprep.subr.mxu0 0.0
      %2993 = vmatpush1.msra.mxu0 0.0
      %2994 = vmatprep.subr.mxu0 0.0
      %2995 = vmatpush1.msra.mxu0 0.0
      %2996 = vmatprep.subr.mxu0 0.0
      %2997 = vmatpush1.msra.mxu0 0.0
      %2998 = vmatprep.subr.mxu0 0.0
      %2999 = vmatpush1.msra.mxu0 0.0
      %3000 = vmatprep.subr.mxu0 0.0
      %3001 = vmatpush1.msra.mxu0 0.0
      %3002 = vmatprep.subr.mxu0 0.0
      %3003 = vmatpush1.msra.mxu0 0.0
      %3004 = vmatprep.subr.mxu0 0.0
      %3005 = vmatpush1.msra.mxu0 0.0
      %3006 = vmatprep.subr.mxu0 0.0
      %3007 = vmatpush1.msra.mxu0 0.0
      %3008 = vmatprep.subr.mxu0 0.0
      %3009 = vmatpush1.msra.mxu0 0.0
      %3010 = vmatprep.subr.mxu0 0.0
      %3011 = vmatpush1.msra.mxu0 0.0
      %3012 = vmatprep.subr.mxu0 0.0
      %3013 = vmatpush1.msra.mxu0 0.0
      %3014 = vmatprep.subr.mxu0 0.0
      %3015 = vmatpush1.msra.mxu0 0.0
      %3016 = vmatprep.subr.mxu0 0.0
      %3017 = vmatpush1.msra.mxu0 0.0
      %3018 = vmatprep.subr.mxu0 0.0
      %3019 = vmatpush1.msra.mxu0 0.0
      %3020 = vmatprep.subr.mxu0 0.0
      %3021 = vmatpush1.msra.mxu0 0.0
      %3022 = vmatprep.subr.mxu0 0.0
      %3023 = vmatpush1.msra.mxu0 0.0
      %3024 = vmatprep.subr.mxu0 0.0
      %3025 = vmatpush1.msra.mxu0 0.0
      %3026 = vmatprep.subr.mxu0 0.0
      %3027 = vmatpush1.msra.mxu0 0.0
      %3028 = vmatprep.subr.mxu0 0.0
      %3029 = vmatpush1.msra.mxu0 0.0
      %3030 = vmatprep.subr.mxu0 0.0
      %3031 = vmatpush1.msra.mxu0 0.0
      %3032 = vmatprep.subr.mxu0 0.0
      %3033 = vmatpush1.msra.mxu0 0.0
      %3034 = vmatprep.subr.mxu0 0.0
      %3035 = vmatpush1.msra.mxu0 0.0
      %3036 = vmatprep.subr.mxu0 0.0
      %3037 = vmatpush1.msra.mxu0 0.0
      %3038 = vmatprep.subr.mxu0 0.0
      %3039 = vmatpush1.msra.mxu0 0.0
      %3040 = vmatprep.subr.mxu0 0.0
      %3041 = vmatpush1.msra.mxu0 0.0
      %3042 = vmatprep.subr.mxu0 0.0
      %3043 = vmatpush1.msra.mxu0 0.0
      %3044 = vmatprep.mubr.f32.mxu0 0.0
      %3045 = vmatmul.mubr.f32.gmra.mrb[0].mxu0 %v2975
      %v3046 = vpop.f32.mrb[0].mxu0
      %v3047 = vadd.f32 0.0, %v3046
      %v3048 = vpop.f32.mrb[0].mxu0
      %3049 = vmatprep.mubr.f32.mxu0 0.0
      %3050 = vmatmul.mubr.f32.gmra.mrb[0].mxu0 %v2978
      %v3051 = vpop.f32.mrb[0].mxu0
      %v3052 = vadd.f32 0.0, %v3051
      %v3053 = vpop.f32.mrb[0].mxu0
      %3054 = vdwg.mxu0
      %3055 = vrot.lane.b32.xlu0 %v989, 96
      %v3056 = vpop.permute.xlu0 %3055
      %3057 = vrot.lane.b32.xlu0 %v994, 96
      %v3058 = vpop.permute.xlu0 %3057
      %v3062 = vsel %vm2528, %v2853, 0
      %v3065 = vsel %vm2528, %v2854, 0
      %3067 = vmatprep.subr.mxu0 0.0
      %3068 = vmatpush1.msra.mxu0 %v3056
      %3069 = vmatprep.subr.mxu0 0.0
      %3070 = vmatpush1.msra.mxu0 %v3058
      %3071 = vmatprep.subr.mxu0 0.0
      %3072 = vmatpush1.msra.mxu0 0.0
      %3073 = vmatprep.subr.mxu0 0.0
      %3074 = vmatpush1.msra.mxu0 0.0
      %3075 = vmatprep.subr.mxu0 0.0
      %3076 = vmatpush1.msra.mxu0 0.0
      %3077 = vmatprep.subr.mxu0 0.0
      %3078 = vmatpush1.msra.mxu0 0.0
      %3079 = vmatprep.subr.mxu0 0.0
      %3080 = vmatpush1.msra.mxu0 0.0
      %3081 = vmatprep.subr.mxu0 0.0
      %3082 = vmatpush1.msra.mxu0 0.0
      %3083 = vmatprep.subr.mxu0 0.0
      %3084 = vmatpush1.msra.mxu0 0.0
      %3085 = vmatprep.subr.mxu0 0.0
      %3086 = vmatpush1.msra.mxu0 0.0
      %3087 = vmatprep.subr.mxu0 0.0
      %3088 = vmatpush1.msra.mxu0 0.0
      %3089 = vmatprep.subr.mxu0 0.0
      %3090 = vmatpush1.msra.mxu0 0.0
      %3091 = vmatprep.subr.mxu0 0.0
      %3092 = vmatpush1.msra.mxu0 0.0
      %3093 = vmatprep.subr.mxu0 0.0
      %3094 = vmatpush1.msra.mxu0 0.0
      %3095 = vmatprep.subr.mxu0 0.0
      %3096 = vmatpush1.msra.mxu0 0.0
      %3097 = vmatprep.subr.mxu0 0.0
      %3098 = vmatpush1.msra.mxu0 0.0
      %3099 = vmatprep.subr.mxu0 0.0
      %3100 = vmatpush1.msra.mxu0 0.0
      %3101 = vmatprep.subr.mxu0 0.0
      %3102 = vmatpush1.msra.mxu0 0.0
      %3103 = vmatprep.subr.mxu0 0.0
      %3104 = vmatpush1.msra.mxu0 0.0
      %3105 = vmatprep.subr.mxu0 0.0
      %3106 = vmatpush1.msra.mxu0 0.0
      %3107 = vmatprep.subr.mxu0 0.0
      %3108 = vmatpush1.msra.mxu0 0.0
      %3109 = vmatprep.subr.mxu0 0.0
      %3110 = vmatpush1.msra.mxu0 0.0
      %3111 = vmatprep.subr.mxu0 0.0
      %3112 = vmatpush1.msra.mxu0 0.0
      %3113 = vmatprep.subr.mxu0 0.0
      %3114 = vmatpush1.msra.mxu0 0.0
      %3115 = vmatprep.subr.mxu0 0.0
      %3116 = vmatpush1.msra.mxu0 0.0
      %3117 = vmatprep.subr.mxu0 0.0
      %3118 = vmatpush1.msra.mxu0 0.0
      %3119 = vmatprep.subr.mxu0 0.0
      %3120 = vmatpush1.msra.mxu0 0.0
      %3121 = vmatprep.subr.mxu0 0.0
      %3122 = vmatpush1.msra.mxu0 0.0
      %3123 = vmatprep.subr.mxu0 0.0
      %3124 = vmatpush1.msra.mxu0 0.0
      %3125 = vmatprep.subr.mxu0 0.0
      %3126 = vmatpush1.msra.mxu0 0.0
      %3127 = vmatprep.subr.mxu0 0.0
      %3128 = vmatpush1.msra.mxu0 0.0
      %3129 = vmatprep.subr.mxu0 0.0
      %3130 = vmatpush1.msra.mxu0 0.0
      %3131 = vmatprep.mubr.f32.mxu0 0.0
      %3132 = vmatmul.mubr.f32.gmra.mrb[0].mxu0 %v3062
      %v3133 = vpop.f32.mrb[0].mxu0
      %v3134 = vadd.f32 0.0, %v3133
      %v3135 = vpop.f32.mrb[0].mxu0
      %3136 = vmatprep.mubr.f32.mxu0 0.0
      %3137 = vmatmul.mubr.f32.gmra.mrb[0].mxu0 %v3065
      %v3138 = vpop.f32.mrb[0].mxu0
      %v3139 = vadd.f32 0.0, %v3138
      %v3140 = vpop.f32.mrb[0].mxu0
      %3141 = vdwg.mxu0
      %3142 = vrot.lane.b32.xlu0 %v999, 96
      %v3143 = vpop.permute.xlu0 %3142
      %3144 = vrot.lane.b32.xlu0 %v1004, 96
      %v3145 = vpop.permute.xlu0 %3144
      %v3149 = vsel %vm2528, %v2855, 0
      %v3152 = vsel %vm2528, %v2856, 0
      %3154 = vmatprep.subr.mxu0 0.0
      %3155 = vmatpush1.msra.mxu0 %v3143
      %3156 = vmatprep.subr.mxu0 0.0
      %3157 = vmatpush1.msra.mxu0 %v3145
      %3158 = vmatprep.subr.mxu0 0.0
      %3159 = vmatpush1.msra.mxu0 0.0
      %3160 = vmatprep.subr.mxu0 0.0
      %3161 = vmatpush1.msra.mxu0 0.0
      %3162 = vmatprep.subr.mxu0 0.0
      %3163 = vmatpush1.msra.mxu0 0.0
      %3164 = vmatprep.subr.mxu0 0.0
      %3165 = vmatpush1.msra.mxu0 0.0
      %3166 = vmatprep.subr.mxu0 0.0
      %3167 = vmatpush1.msra.mxu0 0.0
      %3168 = vmatprep.subr.mxu0 0.0
      %3169 = vmatpush1.msra.mxu0 0.0
      %3170 = vmatprep.subr.mxu0 0.0
      %3171 = vmatpush1.msra.mxu0 0.0
      %3172 = vmatprep.subr.mxu0 0.0
      %3173 = vmatpush1.msra.mxu0 0.0
      %3174 = vmatprep.subr.mxu0 0.0
      %3175 = vmatpush1.msra.mxu0 0.0
      %3176 = vmatprep.subr.mxu0 0.0
      %3177 = vmatpush1.msra.mxu0 0.0
      %3178 = vmatprep.subr.mxu0 0.0
      %3179 = vmatpush1.msra.mxu0 0.0
      %3180 = vmatprep.subr.mxu0 0.0
      %3181 = vmatpush1.msra.mxu0 0.0
      %3182 = vmatprep.subr.mxu0 0.0
      %3183 = vmatpush1.msra.mxu0 0.0
      %3184 = vmatprep.subr.mxu0 0.0
      %3185 = vmatpush1.msra.mxu0 0.0
      %3186 = vmatprep.subr.mxu0 0.0
      %3187 = vmatpush1.msra.mxu0 0.0
      %3188 = vmatprep.subr.mxu0 0.0
      %3189 = vmatpush1.msra.mxu0 0.0
      %3190 = vmatprep.subr.mxu0 0.0
      %3191 = vmatpush1.msra.mxu0 0.0
      %3192 = vmatprep.subr.mxu0 0.0
      %3193 = vmatpush1.msra.mxu0 0.0
      %3194 = vmatprep.subr.mxu0 0.0
      %3195 = vmatpush1.msra.mxu0 0.0
      %3196 = vmatprep.subr.mxu0 0.0
      %3197 = vmatpush1.msra.mxu0 0.0
      %3198 = vmatprep.subr.mxu0 0.0
      %3199 = vmatpush1.msra.mxu0 0.0
      %3200 = vmatprep.subr.mxu0 0.0
      %3201 = vmatpush1.msra.mxu0 0.0
      %3202 = vmatprep.subr.mxu0 0.0
      %3203 = vmatpush1.msra.mxu0 0.0
      %3204 = vmatprep.subr.mxu0 0.0
      %3205 = vmatpush1.msra.mxu0 0.0
      %3206 = vmatprep.subr.mxu0 0.0
      %3207 = vmatpush1.msra.mxu0 0.0
      %3208 = vmatprep.subr.mxu0 0.0
      %3209 = vmatpush1.msra.mxu0 0.0
      %3210 = vmatprep.subr.mxu0 0.0
      %3211 = vmatpush1.msra.mxu0 0.0
      %3212 = vmatprep.subr.mxu0 0.0
      %3213 = vmatpush1.msra.mxu0 0.0
      %3214 = vmatprep.subr.mxu0 0.0
      %3215 = vmatpush1.msra.mxu0 0.0
      %3216 = vmatprep.subr.mxu0 0.0
      %3217 = vmatpush1.msra.mxu0 0.0
      %3218 = vmatprep.mubr.f32.mxu0 0.0
      %3219 = vmatmul.mubr.f32.gmra.mrb[0].mxu0 %v3149
      %v3220 = vpop.f32.mrb[0].mxu0
      %v3221 = vadd.f32 0.0, %v3220
      %v3222 = vpop.f32.mrb[0].mxu0
      %3223 = vmatprep.mubr.f32.mxu0 0.0
      %3224 = vmatmul.mubr.f32.gmra.mrb[0].mxu0 %v3152
      %v3225 = vpop.f32.mrb[0].mxu0
      %v3226 = vadd.f32 0.0, %v3225
      %v3227 = vpop.f32.mrb[0].mxu0
      %3228 = vdwg.mxu0
      %3229 = vrot.lane.b32.xlu0 %v1072, 96
      %v3230 = vpop.permute.xlu0 %3229
      %3231 = vrot.lane.b32.xlu0 %v1074, 96
      %v3232 = vpop.permute.xlu0 %3231
      %v3236 = vsel %vm2528, %v2857, 0
      %v3239 = vsel %vm2528, %v2858, 0
      %3241 = vmatprep.subr.mxu0 0.0
      %3242 = vmatpush1.msra.mxu0 %v3230
      %3243 = vmatprep.subr.mxu0 0.0
      %3244 = vmatpush1.msra.mxu0 %v3232
      %3245 = vmatprep.subr.mxu0 0.0
      %3246 = vmatpush1.msra.mxu0 0.0
      %3247 = vmatprep.subr.mxu0 0.0
      %3248 = vmatpush1.msra.mxu0 0.0
      %3249 = vmatprep.subr.mxu0 0.0
      %3250 = vmatpush1.msra.mxu0 0.0
      %3251 = vmatprep.subr.mxu0 0.0
      %3252 = vmatpush1.msra.mxu0 0.0
      %3253 = vmatprep.subr.mxu0 0.0
      %3254 = vmatpush1.msra.mxu0 0.0
      %3255 = vmatprep.subr.mxu0 0.0
      %3256 = vmatpush1.msra.mxu0 0.0
      %3257 = vmatprep.subr.mxu0 0.0
      %3258 = vmatpush1.msra.mxu0 0.0
      %3259 = vmatprep.subr.mxu0 0.0
      %3260 = vmatpush1.msra.mxu0 0.0
      %3261 = vmatprep.subr.mxu0 0.0
      %3262 = vmatpush1.msra.mxu0 0.0
      %3263 = vmatprep.subr.mxu0 0.0
      %3264 = vmatpush1.msra.mxu0 0.0
      %3265 = vmatprep.subr.mxu0 0.0
      %3266 = vmatpush1.msra.mxu0 0.0
      %3267 = vmatprep.subr.mxu0 0.0
      %3268 = vmatpush1.msra.mxu0 0.0
      %3269 = vmatprep.subr.mxu0 0.0
      %3270 = vmatpush1.msra.mxu0 0.0
      %3271 = vmatprep.subr.mxu0 0.0
      %3272 = vmatpush1.msra.mxu0 0.0
      %3273 = vmatprep.subr.mxu0 0.0
      %3274 = vmatpush1.msra.mxu0 0.0
      %3275 = vmatprep.subr.mxu0 0.0
      %3276 = vmatpush1.msra.mxu0 0.0
      %3277 = vmatprep.subr.mxu0 0.0
      %3278 = vmatpush1.msra.mxu0 0.0
      %3279 = vmatprep.subr.mxu0 0.0
      %3280 = vmatpush1.msra.mxu0 0.0
      %3281 = vmatprep.subr.mxu0 0.0
      %3282 = vmatpush1.msra.mxu0 0.0
      %3283 = vmatprep.subr.mxu0 0.0
      %3284 = vmatpush1.msra.mxu0 0.0
      %3285 = vmatprep.subr.mxu0 0.0
      %3286 = vmatpush1.msra.mxu0 0.0
      %3287 = vmatprep.subr.mxu0 0.0
      %3288 = vmatpush1.msra.mxu0 0.0
      %3289 = vmatprep.subr.mxu0 0.0
      %3290 = vmatpush1.msra.mxu0 0.0
      %3291 = vmatprep.subr.mxu0 0.0
      %3292 = vmatpush1.msra.mxu0 0.0
      %3293 = vmatprep.subr.mxu0 0.0
      %3294 = vmatpush1.msra.mxu0 0.0
      %3295 = vmatprep.subr.mxu0 0.0
      %3296 = vmatpush1.msra.mxu0 0.0
      %3297 = vmatprep.subr.mxu0 0.0
      %3298 = vmatpush1.msra.mxu0 0.0
      %3299 = vmatprep.subr.mxu0 0.0
      %3300 = vmatpush1.msra.mxu0 0.0
      %3301 = vmatprep.subr.mxu0 0.0
      %3302 = vmatpush1.msra.mxu0 0.0
      %3303 = vmatprep.subr.mxu0 0.0
      %3304 = vmatpush1.msra.mxu0 0.0
      %3305 = vmatprep.mubr.f32.mxu0 0.0
      %3306 = vmatmul.mubr.f32.gmra.mrb[0].mxu0 %v3236
      %v3307 = vpop.f32.mrb[0].mxu0
      %v3308 = vadd.f32 0.0, %v3307
      %v3309 = vpop.f32.mrb[0].mxu0
      %3310 = vmatprep.mubr.f32.mxu0 0.0
      %3311 = vmatmul.mubr.f32.gmra.mrb[0].mxu0 %v3239
      %v3312 = vpop.f32.mrb[0].mxu0
      %v3313 = vadd.f32 0.0, %v3312
      %v3314 = vpop.f32.mrb[0].mxu0
      %3315 = vdwg.mxu0
      %3316 = vrot.lane.b32.xlu0 %v1076, 96
      %v3317 = vpop.permute.xlu0 %3316
      %3318 = vrot.lane.b32.xlu0 %v1078, 96
      %v3319 = vpop.permute.xlu0 %3318
      %v3323 = vsel %vm2528, %v2859, 0
      %v3326 = vsel %vm2528, %v2860, 0
      %3328 = vmatprep.subr.mxu0 0.0
      %3329 = vmatpush1.msra.mxu0 %v3317
      %3330 = vmatprep.subr.mxu0 0.0
      %3331 = vmatpush1.msra.mxu0 %v3319
      %3332 = vmatprep.subr.mxu0 0.0
      %3333 = vmatpush1.msra.mxu0 0.0
      %3334 = vmatprep.subr.mxu0 0.0
      %3335 = vmatpush1.msra.mxu0 0.0
      %3336 = vmatprep.subr.mxu0 0.0
      %3337 = vmatpush1.msra.mxu0 0.0
      %3338 = vmatprep.subr.mxu0 0.0
      %3339 = vmatpush1.msra.mxu0 0.0
      %3340 = vmatprep.subr.mxu0 0.0
      %3341 = vmatpush1.msra.mxu0 0.0
      %3342 = vmatprep.subr.mxu0 0.0
      %3343 = vmatpush1.msra.mxu0 0.0
      %3344 = vmatprep.subr.mxu0 0.0
      %3345 = vmatpush1.msra.mxu0 0.0
      %3346 = vmatprep.subr.mxu0 0.0
      %3347 = vmatpush1.msra.mxu0 0.0
      %3348 = vmatprep.subr.mxu0 0.0
      %3349 = vmatpush1.msra.mxu0 0.0
      %3350 = vmatprep.subr.mxu0 0.0
      %3351 = vmatpush1.msra.mxu0 0.0
      %3352 = vmatprep.subr.mxu0 0.0
      %3353 = vmatpush1.msra.mxu0 0.0
      %3354 = vmatprep.subr.mxu0 0.0
      %3355 = vmatpush1.msra.mxu0 0.0
      %3356 = vmatprep.subr.mxu0 0.0
      %3357 = vmatpush1.msra.mxu0 0.0
      %3358 = vmatprep.subr.mxu0 0.0
      %3359 = vmatpush1.msra.mxu0 0.0
      %3360 = vmatprep.subr.mxu0 0.0
      %3361 = vmatpush1.msra.mxu0 0.0
      %3362 = vmatprep.subr.mxu0 0.0
      %3363 = vmatpush1.msra.mxu0 0.0
      %3364 = vmatprep.subr.mxu0 0.0
      %3365 = vmatpush1.msra.mxu0 0.0
      %3366 = vmatprep.subr.mxu0 0.0
      %3367 = vmatpush1.msra.mxu0 0.0
      %3368 = vmatprep.subr.mxu0 0.0
      %3369 = vmatpush1.msra.mxu0 0.0
      %3370 = vmatprep.subr.mxu0 0.0
      %3371 = vmatpush1.msra.mxu0 0.0
      %3372 = vmatprep.subr.mxu0 0.0
      %3373 = vmatpush1.msra.mxu0 0.0
      %3374 = vmatprep.subr.mxu0 0.0
      %3375 = vmatpush1.msra.mxu0 0.0
      %3376 = vmatprep.subr.mxu0 0.0
      %3377 = vmatpush1.msra.mxu0 0.0
      %3378 = vmatprep.subr.mxu0 0.0
      %3379 = vmatpush1.msra.mxu0 0.0
      %3380 = vmatprep.subr.mxu0 0.0
      %3381 = vmatpush1.msra.mxu0 0.0
      %3382 = vmatprep.subr.mxu0 0.0
      %3383 = vmatpush1.msra.mxu0 0.0
      %3384 = vmatprep.subr.mxu0 0.0
      %3385 = vmatpush1.msra.mxu0 0.0
      %3386 = vmatprep.subr.mxu0 0.0
      %3387 = vmatpush1.msra.mxu0 0.0
      %3388 = vmatprep.subr.mxu0 0.0
      %3389 = vmatpush1.msra.mxu0 0.0
      %3390 = vmatprep.subr.mxu0 0.0
      %3391 = vmatpush1.msra.mxu0 0.0
      %3392 = vmatprep.mubr.f32.mxu0 0.0
      %3393 = vmatmul.mubr.f32.gmra.mrb[0].mxu0 %v3323
      %v3394 = vpop.f32.mrb[0].mxu0
      %v3395 = vadd.f32 0.0, %v3394
      %v3396 = vpop.f32.mrb[0].mxu0
      %3397 = vmatprep.mubr.f32.mxu0 0.0
      %3398 = vmatmul.mubr.f32.gmra.mrb[0].mxu0 %v3326
      %v3399 = vpop.f32.mrb[0].mxu0
      %v3400 = vadd.f32 0.0, %v3399
      %v3401 = vpop.f32.mrb[0].mxu0
      %3402 = vdwg.mxu0
      %3403 = vrot.lane.b32.xlu0 %v1080, 96
      %v3404 = vpop.permute.xlu0 %3403
      %3405 = vrot.lane.b32.xlu0 %v1082, 96
      %v3406 = vpop.permute.xlu0 %3405
      %v3410 = vsel %vm2528, %v2861, 0
      %v3413 = vsel %vm2528, %v2862, 0
      %3415 = vmatprep.subr.mxu0 0.0
      %3416 = vmatpush1.msra.mxu0 %v3404
      %3417 = vmatprep.subr.mxu0 0.0
      %3418 = vmatpush1.msra.mxu0 %v3406
      %3419 = vmatprep.subr.mxu0 0.0
      %3420 = vmatpush1.msra.mxu0 0.0
      %3421 = vmatprep.subr.mxu0 0.0
      %3422 = vmatpush1.msra.mxu0 0.0
      %3423 = vmatprep.subr.mxu0 0.0
      %3424 = vmatpush1.msra.mxu0 0.0
      %3425 = vmatprep.subr.mxu0 0.0
      %3426 = vmatpush1.msra.mxu0 0.0
      %3427 = vmatprep.subr.mxu0 0.0
      %3428 = vmatpush1.msra.mxu0 0.0
      %3429 = vmatprep.subr.mxu0 0.0
      %3430 = vmatpush1.msra.mxu0 0.0
      %3431 = vmatprep.subr.mxu0 0.0
      %3432 = vmatpush1.msra.mxu0 0.0
      %3433 = vmatprep.subr.mxu0 0.0
      %3434 = vmatpush1.msra.mxu0 0.0
      %3435 = vmatprep.subr.mxu0 0.0
      %3436 = vmatpush1.msra.mxu0 0.0
      %3437 = vmatprep.subr.mxu0 0.0
      %3438 = vmatpush1.msra.mxu0 0.0
      %3439 = vmatprep.subr.mxu0 0.0
      %3440 = vmatpush1.msra.mxu0 0.0
      %3441 = vmatprep.subr.mxu0 0.0
      %3442 = vmatpush1.msra.mxu0 0.0
      %3443 = vmatprep.subr.mxu0 0.0
      %3444 = vmatpush1.msra.mxu0 0.0
      %3445 = vmatprep.subr.mxu0 0.0
      %3446 = vmatpush1.msra.mxu0 0.0
      %3447 = vmatprep.subr.mxu0 0.0
      %3448 = vmatpush1.msra.mxu0 0.0
      %3449 = vmatprep.subr.mxu0 0.0
      %3450 = vmatpush1.msra.mxu0 0.0
      %3451 = vmatprep.subr.mxu0 0.0
      %3452 = vmatpush1.msra.mxu0 0.0
      %3453 = vmatprep.subr.mxu0 0.0
      %3454 = vmatpush1.msra.mxu0 0.0
      %3455 = vmatprep.subr.mxu0 0.0
      %3456 = vmatpush1.msra.mxu0 0.0
      %3457 = vmatprep.subr.mxu0 0.0
      %3458 = vmatpush1.msra.mxu0 0.0
      %3459 = vmatprep.subr.mxu0 0.0
      %3460 = vmatpush1.msra.mxu0 0.0
      %3461 = vmatprep.subr.mxu0 0.0
      %3462 = vmatpush1.msra.mxu0 0.0
      %3463 = vmatprep.subr.mxu0 0.0
      %3464 = vmatpush1.msra.mxu0 0.0
      %3465 = vmatprep.subr.mxu0 0.0
      %3466 = vmatpush1.msra.mxu0 0.0
      %3467 = vmatprep.subr.mxu0 0.0
      %3468 = vmatpush1.msra.mxu0 0.0
      %3469 = vmatprep.subr.mxu0 0.0
      %3470 = vmatpush1.msra.mxu0 0.0
      %3471 = vmatprep.subr.mxu0 0.0
      %3472 = vmatpush1.msra.mxu0 0.0
      %3473 = vmatprep.subr.mxu0 0.0
      %3474 = vmatpush1.msra.mxu0 0.0
      %3475 = vmatprep.subr.mxu0 0.0
      %3476 = vmatpush1.msra.mxu0 0.0
      %3477 = vmatprep.subr.mxu0 0.0
      %3478 = vmatpush1.msra.mxu0 0.0
      %3479 = vmatprep.mubr.f32.mxu0 0.0
      %3480 = vmatmul.mubr.f32.gmra.mrb[0].mxu0 %v3410
      %v3481 = vpop.f32.mrb[0].mxu0
      %v3482 = vadd.f32 0.0, %v3481
      %v3483 = vpop.f32.mrb[0].mxu0
      %3484 = vmatprep.mubr.f32.mxu0 0.0
      %3485 = vmatmul.mubr.f32.gmra.mrb[0].mxu0 %v3413
      %v3486 = vpop.f32.mrb[0].mxu0
      %v3487 = vadd.f32 0.0, %v3486
      %v3488 = vpop.f32.mrb[0].mxu0
      %3489 = vdwg.mxu0
      %3490 = vrot.lane.b32.xlu0 %v1084, 96
      %v3491 = vpop.permute.xlu0 %3490
      %3492 = vrot.lane.b32.xlu0 %v1086, 96
      %v3493 = vpop.permute.xlu0 %3492
      %v3497 = vsel %vm2528, %v2863, 0
      %v3500 = vsel %vm2528, %v2864, 0
      %3502 = vmatprep.subr.mxu0 0.0
      %3503 = vmatpush1.msra.mxu0 %v3491
      %3504 = vmatprep.subr.mxu0 0.0
      %3505 = vmatpush1.msra.mxu0 %v3493
      %3506 = vmatprep.subr.mxu0 0.0
      %3507 = vmatpush1.msra.mxu0 0.0
      %3508 = vmatprep.subr.mxu0 0.0
      %3509 = vmatpush1.msra.mxu0 0.0
      %3510 = vmatprep.subr.mxu0 0.0
      %3511 = vmatpush1.msra.mxu0 0.0
      %3512 = vmatprep.subr.mxu0 0.0
      %3513 = vmatpush1.msra.mxu0 0.0
      %3514 = vmatprep.subr.mxu0 0.0
      %3515 = vmatpush1.msra.mxu0 0.0
      %3516 = vmatprep.subr.mxu0 0.0
      %3517 = vmatpush1.msra.mxu0 0.0
      %3518 = vmatprep.subr.mxu0 0.0
      %3519 = vmatpush1.msra.mxu0 0.0
      %3520 = vmatprep.subr.mxu0 0.0
      %3521 = vmatpush1.msra.mxu0 0.0
      %3522 = vmatprep.subr.mxu0 0.0
      %3523 = vmatpush1.msra.mxu0 0.0
      %3524 = vmatprep.subr.mxu0 0.0
      %3525 = vmatpush1.msra.mxu0 0.0
      %3526 = vmatprep.subr.mxu0 0.0
      %3527 = vmatpush1.msra.mxu0 0.0
      %3528 = vmatprep.subr.mxu0 0.0
      %3529 = vmatpush1.msra.mxu0 0.0
      %3530 = vmatprep.subr.mxu0 0.0
      %3531 = vmatpush1.msra.mxu0 0.0
      %3532 = vmatprep.subr.mxu0 0.0
      %3533 = vmatpush1.msra.mxu0 0.0
      %3534 = vmatprep.subr.mxu0 0.0
      %3535 = vmatpush1.msra.mxu0 0.0
      %3536 = vmatprep.subr.mxu0 0.0
      %3537 = vmatpush1.msra.mxu0 0.0
      %3538 = vmatprep.subr.mxu0 0.0
      %3539 = vmatpush1.msra.mxu0 0.0
      %3540 = vmatprep.subr.mxu0 0.0
      %3541 = vmatpush1.msra.mxu0 0.0
      %3542 = vmatprep.subr.mxu0 0.0
      %3543 = vmatpush1.msra.mxu0 0.0
      %3544 = vmatprep.subr.mxu0 0.0
      %3545 = vmatpush1.msra.mxu0 0.0
      %3546 = vmatprep.subr.mxu0 0.0
      %3547 = vmatpush1.msra.mxu0 0.0
      %3548 = vmatprep.subr.mxu0 0.0
      %3549 = vmatpush1.msra.mxu0 0.0
      %3550 = vmatprep.subr.mxu0 0.0
      %3551 = vmatpush1.msra.mxu0 0.0
      %3552 = vmatprep.subr.mxu0 0.0
      %3553 = vmatpush1.msra.mxu0 0.0
      %3554 = vmatprep.subr.mxu0 0.0
      %3555 = vmatpush1.msra.mxu0 0.0
      %3556 = vmatprep.subr.mxu0 0.0
      %3557 = vmatpush1.msra.mxu0 0.0
      %3558 = vmatprep.subr.mxu0 0.0
      %3559 = vmatpush1.msra.mxu0 0.0
      %3560 = vmatprep.subr.mxu0 0.0
      %3561 = vmatpush1.msra.mxu0 0.0
      %3562 = vmatprep.subr.mxu0 0.0
      %3563 = vmatpush1.msra.mxu0 0.0
      %3564 = vmatprep.subr.mxu0 0.0
      %3565 = vmatpush1.msra.mxu0 0.0
      %3566 = vmatprep.mubr.f32.mxu0 0.0
      %3567 = vmatmul.mubr.f32.gmra.mrb[0].mxu0 %v3497
      %v3568 = vpop.f32.mrb[0].mxu0
      %v3569 = vadd.f32 0.0, %v3568
      %v3570 = vpop.f32.mrb[0].mxu0
      %3571 = vmatprep.mubr.f32.mxu0 0.0
      %3572 = vmatmul.mubr.f32.gmra.mrb[0].mxu0 %v3500
      %v3573 = vpop.f32.mrb[0].mxu0
      %v3574 = vadd.f32 0.0, %v3573
      %v3575 = vpop.f32.mrb[0].mxu0
      %3576 = vdwg.mxu0
      %3577 = vrot.lane.b32.xlu0 %v1088, 96
      %v3578 = vpop.permute.xlu0 %3577
      %3579 = vrot.lane.b32.xlu0 %v1090, 96
      %v3580 = vpop.permute.xlu0 %3579
      %v3584 = vsel %vm2528, %v2865, 0
      %v3587 = vsel %vm2528, %v2866, 0
      %3589 = vmatprep.subr.mxu0 0.0
      %3590 = vmatpush1.msra.mxu0 %v3578
      %3591 = vmatprep.subr.mxu0 0.0
      %3592 = vmatpush1.msra.mxu0 %v3580
      %3593 = vmatprep.subr.mxu0 0.0
      %3594 = vmatpush1.msra.mxu0 0.0
      %3595 = vmatprep.subr.mxu0 0.0
      %3596 = vmatpush1.msra.mxu0 0.0
      %3597 = vmatprep.subr.mxu0 0.0
      %3598 = vmatpush1.msra.mxu0 0.0
      %3599 = vmatprep.subr.mxu0 0.0
      %3600 = vmatpush1.msra.mxu0 0.0
      %3601 = vmatprep.subr.mxu0 0.0
      %3602 = vmatpush1.msra.mxu0 0.0
      %3603 = vmatprep.subr.mxu0 0.0
      %3604 = vmatpush1.msra.mxu0 0.0
      %3605 = vmatprep.subr.mxu0 0.0
      %3606 = vmatpush1.msra.mxu0 0.0
      %3607 = vmatprep.subr.mxu0 0.0
      %3608 = vmatpush1.msra.mxu0 0.0
      %3609 = vmatprep.subr.mxu0 0.0
      %3610 = vmatpush1.msra.mxu0 0.0
      %3611 = vmatprep.subr.mxu0 0.0
      %3612 = vmatpush1.msra.mxu0 0.0
      %3613 = vmatprep.subr.mxu0 0.0
      %3614 = vmatpush1.msra.mxu0 0.0
      %3615 = vmatprep.subr.mxu0 0.0
      %3616 = vmatpush1.msra.mxu0 0.0
      %3617 = vmatprep.subr.mxu0 0.0
      %3618 = vmatpush1.msra.mxu0 0.0
      %3619 = vmatprep.subr.mxu0 0.0
      %3620 = vmatpush1.msra.mxu0 0.0
      %3621 = vmatprep.subr.mxu0 0.0
      %3622 = vmatpush1.msra.mxu0 0.0
      %3623 = vmatprep.subr.mxu0 0.0
      %3624 = vmatpush1.msra.mxu0 0.0
      %3625 = vmatprep.subr.mxu0 0.0
      %3626 = vmatpush1.msra.mxu0 0.0
      %3627 = vmatprep.subr.mxu0 0.0
      %3628 = vmatpush1.msra.mxu0 0.0
      %3629 = vmatprep.subr.mxu0 0.0
      %3630 = vmatpush1.msra.mxu0 0.0
      %3631 = vmatprep.subr.mxu0 0.0
      %3632 = vmatpush1.msra.mxu0 0.0
      %3633 = vmatprep.subr.mxu0 0.0
      %3634 = vmatpush1.msra.mxu0 0.0
      %3635 = vmatprep.subr.mxu0 0.0
      %3636 = vmatpush1.msra.mxu0 0.0
      %3637 = vmatprep.subr.mxu0 0.0
      %3638 = vmatpush1.msra.mxu0 0.0
      %3639 = vmatprep.subr.mxu0 0.0
      %3640 = vmatpush1.msra.mxu0 0.0
      %3641 = vmatprep.subr.mxu0 0.0
      %3642 = vmatpush1.msra.mxu0 0.0
      %3643 = vmatprep.subr.mxu0 0.0
      %3644 = vmatpush1.msra.mxu0 0.0
      %3645 = vmatprep.subr.mxu0 0.0
      %3646 = vmatpush1.msra.mxu0 0.0
      %3647 = vmatprep.subr.mxu0 0.0
      %3648 = vmatpush1.msra.mxu0 0.0
      %3649 = vmatprep.subr.mxu0 0.0
      %3650 = vmatpush1.msra.mxu0 0.0
      %3651 = vmatprep.subr.mxu0 0.0
      %3652 = vmatpush1.msra.mxu0 0.0
      %3653 = vmatprep.mubr.f32.mxu0 0.0
      %3654 = vmatmul.mubr.f32.gmra.mrb[0].mxu0 %v3584
      %v3655 = vpop.f32.mrb[0].mxu0
      %v3656 = vadd.f32 0.0, %v3655
      %v3657 = vpop.f32.mrb[0].mxu0
      %3658 = vmatprep.mubr.f32.mxu0 0.0
      %3659 = vmatmul.mubr.f32.gmra.mrb[0].mxu0 %v3587
      %v3660 = vpop.f32.mrb[0].mxu0
      %v3661 = vadd.f32 0.0, %v3660
      %v3662 = vpop.f32.mrb[0].mxu0
      %3663 = vdwg.mxu0
      %3664 = vrot.lane.b32.xlu0 %v1092, 96
      %v3665 = vpop.permute.xlu0 %3664
      %3666 = vrot.lane.b32.xlu0 %v1094, 96
      %v3667 = vpop.permute.xlu0 %3666
      %v3671 = vsel %vm2528, %v2867, 0
      %v3674 = vsel %vm2528, %v2868, 0
      %3676 = vmatprep.subr.mxu0 0.0
      %3677 = vmatpush1.msra.mxu0 %v3665
      %3678 = vmatprep.subr.mxu0 0.0
      %3679 = vmatpush1.msra.mxu0 %v3667
      %3680 = vmatprep.subr.mxu0 0.0
      %3681 = vmatpush1.msra.mxu0 0.0
      %3682 = vmatprep.subr.mxu0 0.0
      %3683 = vmatpush1.msra.mxu0 0.0
      %3684 = vmatprep.subr.mxu0 0.0
      %3685 = vmatpush1.msra.mxu0 0.0
      %3686 = vmatprep.subr.mxu0 0.0
      %3687 = vmatpush1.msra.mxu0 0.0
      %3688 = vmatprep.subr.mxu0 0.0
      %3689 = vmatpush1.msra.mxu0 0.0
      %3690 = vmatprep.subr.mxu0 0.0
      %3691 = vmatpush1.msra.mxu0 0.0
      %3692 = vmatprep.subr.mxu0 0.0
      %3693 = vmatpush1.msra.mxu0 0.0
      %3694 = vmatprep.subr.mxu0 0.0
      %3695 = vmatpush1.msra.mxu0 0.0
      %3696 = vmatprep.subr.mxu0 0.0
      %3697 = vmatpush1.msra.mxu0 0.0
      %3698 = vmatprep.subr.mxu0 0.0
      %3699 = vmatpush1.msra.mxu0 0.0
      %3700 = vmatprep.subr.mxu0 0.0
      %3701 = vmatpush1.msra.mxu0 0.0
      %3702 = vmatprep.subr.mxu0 0.0
      %3703 = vmatpush1.msra.mxu0 0.0
      %3704 = vmatprep.subr.mxu0 0.0
      %3705 = vmatpush1.msra.mxu0 0.0
      %3706 = vmatprep.subr.mxu0 0.0
      %3707 = vmatpush1.msra.mxu0 0.0
      %3708 = vmatprep.subr.mxu0 0.0
      %3709 = vmatpush1.msra.mxu0 0.0
      %3710 = vmatprep.subr.mxu0 0.0
      %3711 = vmatpush1.msra.mxu0 0.0
      %3712 = vmatprep.subr.mxu0 0.0
      %3713 = vmatpush1.msra.mxu0 0.0
      %3714 = vmatprep.subr.mxu0 0.0
      %3715 = vmatpush1.msra.mxu0 0.0
      %3716 = vmatprep.subr.mxu0 0.0
      %3717 = vmatpush1.msra.mxu0 0.0
      %3718 = vmatprep.subr.mxu0 0.0
      %3719 = vmatpush1.msra.mxu0 0.0
      %3720 = vmatprep.subr.mxu0 0.0
      %3721 = vmatpush1.msra.mxu0 0.0
      %3722 = vmatprep.subr.mxu0 0.0
      %3723 = vmatpush1.msra.mxu0 0.0
      %3724 = vmatprep.subr.mxu0 0.0
      %3725 = vmatpush1.msra.mxu0 0.0
      %3726 = vmatprep.subr.mxu0 0.0
      %3727 = vmatpush1.msra.mxu0 0.0
      %3728 = vmatprep.subr.mxu0 0.0
      %3729 = vmatpush1.msra.mxu0 0.0
      %3730 = vmatprep.subr.mxu0 0.0
      %3731 = vmatpush1.msra.mxu0 0.0
      %3732 = vmatprep.subr.mxu0 0.0
      %3733 = vmatpush1.msra.mxu0 0.0
      %3734 = vmatprep.subr.mxu0 0.0
      %3735 = vmatpush1.msra.mxu0 0.0
      %3736 = vmatprep.subr.mxu0 0.0
      %3737 = vmatpush1.msra.mxu0 0.0
      %3738 = vmatprep.subr.mxu0 0.0
      %3739 = vmatpush1.msra.mxu0 0.0
      %3740 = vmatprep.mubr.f32.mxu0 0.0
      %3741 = vmatmul.mubr.f32.gmra.mrb[0].mxu0 %v3671
      %v3742 = vpop.f32.mrb[0].mxu0
      %v3743 = vadd.f32 0.0, %v3742
      %v3744 = vpop.f32.mrb[0].mxu0
      %3745 = vmatprep.mubr.f32.mxu0 0.0
      %3746 = vmatmul.mubr.f32.gmra.mrb[0].mxu0 %v3674
      %v3747 = vpop.f32.mrb[0].mxu0
      %v3748 = vadd.f32 0.0, %v3747
      %v3749 = vpop.f32.mrb[0].mxu0
      %3750 = vdwg.mxu0
      %3751 = vrot.lane.b32.xlu0 %v1096, 96
      %v3752 = vpop.permute.xlu0 %3751
      %3753 = vrot.lane.b32.xlu0 %v1098, 96
      %v3754 = vpop.permute.xlu0 %3753
      %v3758 = vsel %vm2528, %v2869, 0
      %v3761 = vsel %vm2528, %v2870, 0
      %3763 = vmatprep.subr.mxu0 0.0
      %3764 = vmatpush1.msra.mxu0 %v3752
      %3765 = vmatprep.subr.mxu0 0.0
      %3766 = vmatpush1.msra.mxu0 %v3754
      %3767 = vmatprep.subr.mxu0 0.0
      %3768 = vmatpush1.msra.mxu0 0.0
      %3769 = vmatprep.subr.mxu0 0.0
      %3770 = vmatpush1.msra.mxu0 0.0
      %3771 = vmatprep.subr.mxu0 0.0
      %3772 = vmatpush1.msra.mxu0 0.0
      %3773 = vmatprep.subr.mxu0 0.0
      %3774 = vmatpush1.msra.mxu0 0.0
      %3775 = vmatprep.subr.mxu0 0.0
      %3776 = vmatpush1.msra.mxu0 0.0
      %3777 = vmatprep.subr.mxu0 0.0
      %3778 = vmatpush1.msra.mxu0 0.0
      %3779 = vmatprep.subr.mxu0 0.0
      %3780 = vmatpush1.msra.mxu0 0.0
      %3781 = vmatprep.subr.mxu0 0.0
      %3782 = vmatpush1.msra.mxu0 0.0
      %3783 = vmatprep.subr.mxu0 0.0
      %3784 = vmatpush1.msra.mxu0 0.0
      %3785 = vmatprep.subr.mxu0 0.0
      %3786 = vmatpush1.msra.mxu0 0.0
      %3787 = vmatprep.subr.mxu0 0.0
      %3788 = vmatpush1.msra.mxu0 0.0
      %3789 = vmatprep.subr.mxu0 0.0
      %3790 = vmatpush1.msra.mxu0 0.0
      %3791 = vmatprep.subr.mxu0 0.0
      %3792 = vmatpush1.msra.mxu0 0.0
      %3793 = vmatprep.subr.mxu0 0.0
      %3794 = vmatpush1.msra.mxu0 0.0
      %3795 = vmatprep.subr.mxu0 0.0
      %3796 = vmatpush1.msra.mxu0 0.0
      %3797 = vmatprep.subr.mxu0 0.0
      %3798 = vmatpush1.msra.mxu0 0.0
      %3799 = vmatprep.subr.mxu0 0.0
      %3800 = vmatpush1.msra.mxu0 0.0
      %3801 = vmatprep.subr.mxu0 0.0
      %3802 = vmatpush1.msra.mxu0 0.0
      %3803 = vmatprep.subr.mxu0 0.0
      %3804 = vmatpush1.msra.mxu0 0.0
      %3805 = vmatprep.subr.mxu0 0.0
      %3806 = vmatpush1.msra.mxu0 0.0
      %3807 = vmatprep.subr.mxu0 0.0
      %3808 = vmatpush1.msra.mxu0 0.0
      %3809 = vmatprep.subr.mxu0 0.0
      %3810 = vmatpush1.msra.mxu0 0.0
      %3811 = vmatprep.subr.mxu0 0.0
      %3812 = vmatpush1.msra.mxu0 0.0
      %3813 = vmatprep.subr.mxu0 0.0
      %3814 = vmatpush1.msra.mxu0 0.0
      %3815 = vmatprep.subr.mxu0 0.0
      %3816 = vmatpush1.msra.mxu0 0.0
      %3817 = vmatprep.subr.mxu0 0.0
      %3818 = vmatpush1.msra.mxu0 0.0
      %3819 = vmatprep.subr.mxu0 0.0
      %3820 = vmatpush1.msra.mxu0 0.0
      %3821 = vmatprep.subr.mxu0 0.0
      %3822 = vmatpush1.msra.mxu0 0.0
      %3823 = vmatprep.subr.mxu0 0.0
      %3824 = vmatpush1.msra.mxu0 0.0
      %3825 = vmatprep.subr.mxu0 0.0
      %3826 = vmatpush1.msra.mxu0 0.0
      %3827 = vmatprep.mubr.f32.mxu0 0.0
      %3828 = vmatmul.mubr.f32.gmra.mrb[0].mxu0 %v3758
      %v3829 = vpop.f32.mrb[0].mxu0
      %v3830 = vadd.f32 0.0, %v3829
      %v3831 = vpop.f32.mrb[0].mxu0
      %3832 = vmatprep.mubr.f32.mxu0 0.0
      %3833 = vmatmul.mubr.f32.gmra.mrb[0].mxu0 %v3761
      %v3834 = vpop.f32.mrb[0].mxu0
      %v3835 = vadd.f32 0.0, %v3834
      %v3836 = vpop.f32.mrb[0].mxu0
      %3837 = vdwg.mxu0
      %3838 = vrot.lane.b32.xlu0 %v1100, 96
      %v3839 = vpop.permute.xlu0 %3838
      %3840 = vrot.lane.b32.xlu0 %v1102, 96
      %v3841 = vpop.permute.xlu0 %3840
      %v3845 = vsel %vm2528, %v2871, 0
      %v3848 = vsel %vm2528, %v2872, 0
      %3850 = vmatprep.subr.mxu0 0.0
      %3851 = vmatpush1.msra.mxu0 %v3839
      %3852 = vmatprep.subr.mxu0 0.0
      %3853 = vmatpush1.msra.mxu0 %v3841
      %3854 = vmatprep.subr.mxu0 0.0
      %3855 = vmatpush1.msra.mxu0 0.0
      %3856 = vmatprep.subr.mxu0 0.0
      %3857 = vmatpush1.msra.mxu0 0.0
      %3858 = vmatprep.subr.mxu0 0.0
      %3859 = vmatpush1.msra.mxu0 0.0
      %3860 = vmatprep.subr.mxu0 0.0
      %3861 = vmatpush1.msra.mxu0 0.0
      %3862 = vmatprep.subr.mxu0 0.0
      %3863 = vmatpush1.msra.mxu0 0.0
      %3864 = vmatprep.subr.mxu0 0.0
      %3865 = vmatpush1.msra.mxu0 0.0
      %3866 = vmatprep.subr.mxu0 0.0
      %3867 = vmatpush1.msra.mxu0 0.0
      %3868 = vmatprep.subr.mxu0 0.0
      %3869 = vmatpush1.msra.mxu0 0.0
      %3870 = vmatprep.subr.mxu0 0.0
      %3871 = vmatpush1.msra.mxu0 0.0
      %3872 = vmatprep.subr.mxu0 0.0
      %3873 = vmatpush1.msra.mxu0 0.0
      %3874 = vmatprep.subr.mxu0 0.0
      %3875 = vmatpush1.msra.mxu0 0.0
      %3876 = vmatprep.subr.mxu0 0.0
      %3877 = vmatpush1.msra.mxu0 0.0
      %3878 = vmatprep.subr.mxu0 0.0
      %3879 = vmatpush1.msra.mxu0 0.0
      %3880 = vmatprep.subr.mxu0 0.0
      %3881 = vmatpush1.msra.mxu0 0.0
      %3882 = vmatprep.subr.mxu0 0.0
      %3883 = vmatpush1.msra.mxu0 0.0
      %3884 = vmatprep.subr.mxu0 0.0
      %3885 = vmatpush1.msra.mxu0 0.0
      %3886 = vmatprep.subr.mxu0 0.0
      %3887 = vmatpush1.msra.mxu0 0.0
      %3888 = vmatprep.subr.mxu0 0.0
      %3889 = vmatpush1.msra.mxu0 0.0
      %3890 = vmatprep.subr.mxu0 0.0
      %3891 = vmatpush1.msra.mxu0 0.0
      %3892 = vmatprep.subr.mxu0 0.0
      %3893 = vmatpush1.msra.mxu0 0.0
      %3894 = vmatprep.subr.mxu0 0.0
      %3895 = vmatpush1.msra.mxu0 0.0
      %3896 = vmatprep.subr.mxu0 0.0
      %3897 = vmatpush1.msra.mxu0 0.0
      %3898 = vmatprep.subr.mxu0 0.0
      %3899 = vmatpush1.msra.mxu0 0.0
      %3900 = vmatprep.subr.mxu0 0.0
      %3901 = vmatpush1.msra.mxu0 0.0
      %3902 = vmatprep.subr.mxu0 0.0
      %3903 = vmatpush1.msra.mxu0 0.0
      %3904 = vmatprep.subr.mxu0 0.0
      %3905 = vmatpush1.msra.mxu0 0.0
      %3906 = vmatprep.subr.mxu0 0.0
      %3907 = vmatpush1.msra.mxu0 0.0
      %3908 = vmatprep.subr.mxu0 0.0
      %3909 = vmatpush1.msra.mxu0 0.0
      %3910 = vmatprep.subr.mxu0 0.0
      %3911 = vmatpush1.msra.mxu0 0.0
      %3912 = vmatprep.subr.mxu0 0.0
      %3913 = vmatpush1.msra.mxu0 0.0
      %3914 = vmatprep.mubr.f32.mxu0 0.0
      %3915 = vmatmul.mubr.f32.gmra.mrb[0].mxu0 %v3845
      %v3916 = vpop.f32.mrb[0].mxu0
      %v3917 = vadd.f32 0.0, %v3916
      %v3918 = vpop.f32.mrb[0].mxu0
      %3919 = vmatprep.mubr.f32.mxu0 0.0
      %3920 = vmatmul.mubr.f32.gmra.mrb[0].mxu0 %v3848
      %v3921 = vpop.f32.mrb[0].mxu0
      %v3922 = vadd.f32 0.0, %v3921
      %v3923 = vpop.f32.mrb[0].mxu0
      %3924 = vdwg.mxu0
      %3925 = vrot.lane.b32.xlu0 %v1104, 96
      %v3926 = vpop.permute.xlu0 %3925
      %3927 = vrot.lane.b32.xlu0 %v1106, 96
      %v3928 = vpop.permute.xlu0 %3927
      %v3932 = vsel %vm2528, %v2873, 0
      %v3935 = vsel %vm2528, %v2874, 0
      %3937 = vmatprep.subr.mxu0 0.0
      %3938 = vmatpush1.msra.mxu0 %v3926
      %3939 = vmatprep.subr.mxu0 0.0
      %3940 = vmatpush1.msra.mxu0 %v3928
      %3941 = vmatprep.subr.mxu0 0.0
      %3942 = vmatpush1.msra.mxu0 0.0
      %3943 = vmatprep.subr.mxu0 0.0
      %3944 = vmatpush1.msra.mxu0 0.0
      %3945 = vmatprep.subr.mxu0 0.0
      %3946 = vmatpush1.msra.mxu0 0.0
      %3947 = vmatprep.subr.mxu0 0.0
      %3948 = vmatpush1.msra.mxu0 0.0
      %3949 = vmatprep.subr.mxu0 0.0
      %3950 = vmatpush1.msra.mxu0 0.0
      %3951 = vmatprep.subr.mxu0 0.0
      %3952 = vmatpush1.msra.mxu0 0.0
      %3953 = vmatprep.subr.mxu0 0.0
      %3954 = vmatpush1.msra.mxu0 0.0
      %3955 = vmatprep.subr.mxu0 0.0
      %3956 = vmatpush1.msra.mxu0 0.0
      %3957 = vmatprep.subr.mxu0 0.0
      %3958 = vmatpush1.msra.mxu0 0.0
      %3959 = vmatprep.subr.mxu0 0.0
      %3960 = vmatpush1.msra.mxu0 0.0
      %3961 = vmatprep.subr.mxu0 0.0
      %3962 = vmatpush1.msra.mxu0 0.0
      %3963 = vmatprep.subr.mxu0 0.0
      %3964 = vmatpush1.msra.mxu0 0.0
      %3965 = vmatprep.subr.mxu0 0.0
      %3966 = vmatpush1.msra.mxu0 0.0
      %3967 = vmatprep.subr.mxu0 0.0
      %3968 = vmatpush1.msra.mxu0 0.0
      %3969 = vmatprep.subr.mxu0 0.0
      %3970 = vmatpush1.msra.mxu0 0.0
      %3971 = vmatprep.subr.mxu0 0.0
      %3972 = vmatpush1.msra.mxu0 0.0
      %3973 = vmatprep.subr.mxu0 0.0
      %3974 = vmatpush1.msra.mxu0 0.0
      %3975 = vmatprep.subr.mxu0 0.0
      %3976 = vmatpush1.msra.mxu0 0.0
      %3977 = vmatprep.subr.mxu0 0.0
      %3978 = vmatpush1.msra.mxu0 0.0
      %3979 = vmatprep.subr.mxu0 0.0
      %3980 = vmatpush1.msra.mxu0 0.0
      %3981 = vmatprep.subr.mxu0 0.0
      %3982 = vmatpush1.msra.mxu0 0.0
      %3983 = vmatprep.subr.mxu0 0.0
      %3984 = vmatpush1.msra.mxu0 0.0
      %3985 = vmatprep.subr.mxu0 0.0
      %3986 = vmatpush1.msra.mxu0 0.0
      %3987 = vmatprep.subr.mxu0 0.0
      %3988 = vmatpush1.msra.mxu0 0.0
      %3989 = vmatprep.subr.mxu0 0.0
      %3990 = vmatpush1.msra.mxu0 0.0
      %3991 = vmatprep.subr.mxu0 0.0
      %3992 = vmatpush1.msra.mxu0 0.0
      %3993 = vmatprep.subr.mxu0 0.0
      %3994 = vmatpush1.msra.mxu0 0.0
      %3995 = vmatprep.subr.mxu0 0.0
      %3996 = vmatpush1.msra.mxu0 0.0
      %3997 = vmatprep.subr.mxu0 0.0
      %3998 = vmatpush1.msra.mxu0 0.0
      %3999 = vmatprep.subr.mxu0 0.0
      %4000 = vmatpush1.msra.mxu0 0.0
      %4001 = vmatprep.mubr.f32.mxu0 0.0
      %4002 = vmatmul.mubr.f32.gmra.mrb[0].mxu0 %v3932
      %v4003 = vpop.f32.mrb[0].mxu0
      %v4004 = vadd.f32 0.0, %v4003
      %v4005 = vpop.f32.mrb[0].mxu0
      %4006 = vmatprep.mubr.f32.mxu0 0.0
      %4007 = vmatmul.mubr.f32.gmra.mrb[0].mxu0 %v3935
      %v4008 = vpop.f32.mrb[0].mxu0
      %v4009 = vadd.f32 0.0, %v4008
      %v4010 = vpop.f32.mrb[0].mxu0
      %4011 = vdwg.mxu0
      %4012 = vrot.lane.b32.xlu0 %v1108, 96
      %v4013 = vpop.permute.xlu0 %4012
      %4014 = vrot.lane.b32.xlu0 %v1110, 96
      %v4015 = vpop.permute.xlu0 %4014
      %v4019 = vsel %vm2528, %v2875, 0
      %v4022 = vsel %vm2528, %v2876, 0
      %4024 = vmatprep.subr.mxu0 0.0
      %4025 = vmatpush1.msra.mxu0 %v4013
      %4026 = vmatprep.subr.mxu0 0.0
      %4027 = vmatpush1.msra.mxu0 %v4015
      %4028 = vmatprep.subr.mxu0 0.0
      %4029 = vmatpush1.msra.mxu0 0.0
      %4030 = vmatprep.subr.mxu0 0.0
      %4031 = vmatpush1.msra.mxu0 0.0
      %4032 = vmatprep.subr.mxu0 0.0
      %4033 = vmatpush1.msra.mxu0 0.0
      %4034 = vmatprep.subr.mxu0 0.0
      %4035 = vmatpush1.msra.mxu0 0.0
      %4036 = vmatprep.subr.mxu0 0.0
      %4037 = vmatpush1.msra.mxu0 0.0
      %4038 = vmatprep.subr.mxu0 0.0
      %4039 = vmatpush1.msra.mxu0 0.0
      %4040 = vmatprep.subr.mxu0 0.0
      %4041 = vmatpush1.msra.mxu0 0.0
      %4042 = vmatprep.subr.mxu0 0.0
      %4043 = vmatpush1.msra.mxu0 0.0
      %4044 = vmatprep.subr.mxu0 0.0
      %4045 = vmatpush1.msra.mxu0 0.0
      %4046 = vmatprep.subr.mxu0 0.0
      %4047 = vmatpush1.msra.mxu0 0.0
      %4048 = vmatprep.subr.mxu0 0.0
      %4049 = vmatpush1.msra.mxu0 0.0
      %4050 = vmatprep.subr.mxu0 0.0
      %4051 = vmatpush1.msra.mxu0 0.0
      %4052 = vmatprep.subr.mxu0 0.0
      %4053 = vmatpush1.msra.mxu0 0.0
      %4054 = vmatprep.subr.mxu0 0.0
      %4055 = vmatpush1.msra.mxu0 0.0
      %4056 = vmatprep.subr.mxu0 0.0
      %4057 = vmatpush1.msra.mxu0 0.0
      %4058 = vmatprep.subr.mxu0 0.0
      %4059 = vmatpush1.msra.mxu0 0.0
      %4060 = vmatprep.subr.mxu0 0.0
      %4061 = vmatpush1.msra.mxu0 0.0
      %4062 = vmatprep.subr.mxu0 0.0
      %4063 = vmatpush1.msra.mxu0 0.0
      %4064 = vmatprep.subr.mxu0 0.0
      %4065 = vmatpush1.msra.mxu0 0.0
      %4066 = vmatprep.subr.mxu0 0.0
      %4067 = vmatpush1.msra.mxu0 0.0
      %4068 = vmatprep.subr.mxu0 0.0
      %4069 = vmatpush1.msra.mxu0 0.0
      %4070 = vmatprep.subr.mxu0 0.0
      %4071 = vmatpush1.msra.mxu0 0.0
      %4072 = vmatprep.subr.mxu0 0.0
      %4073 = vmatpush1.msra.mxu0 0.0
      %4074 = vmatprep.subr.mxu0 0.0
      %4075 = vmatpush1.msra.mxu0 0.0
      %4076 = vmatprep.subr.mxu0 0.0
      %4077 = vmatpush1.msra.mxu0 0.0
      %4078 = vmatprep.subr.mxu0 0.0
      %4079 = vmatpush1.msra.mxu0 0.0
      %4080 = vmatprep.subr.mxu0 0.0
      %4081 = vmatpush1.msra.mxu0 0.0
      %4082 = vmatprep.subr.mxu0 0.0
      %4083 = vmatpush1.msra.mxu0 0.0
      %4084 = vmatprep.subr.mxu0 0.0
      %4085 = vmatpush1.msra.mxu0 0.0
      %4086 = vmatprep.subr.mxu0 0.0
      %4087 = vmatpush1.msra.mxu0 0.0
      %4088 = vmatprep.mubr.f32.mxu0 0.0
      %4089 = vmatmul.mubr.f32.gmra.mrb[0].mxu0 %v4019
      %v4090 = vpop.f32.mrb[0].mxu0
      %v4091 = vadd.f32 0.0, %v4090
      %v4092 = vpop.f32.mrb[0].mxu0
      %4093 = vmatprep.mubr.f32.mxu0 0.0
      %4094 = vmatmul.mubr.f32.gmra.mrb[0].mxu0 %v4022
      %v4095 = vpop.f32.mrb[0].mxu0
      %v4096 = vadd.f32 0.0, %v4095
      %v4097 = vpop.f32.mrb[0].mxu0
      %4098 = vdwg.mxu0
      %4099 = vrot.lane.b32.xlu0 %v1112, 96
      %v4100 = vpop.permute.xlu0 %4099
      %4101 = vrot.lane.b32.xlu0 %v1114, 96
      %v4102 = vpop.permute.xlu0 %4101
      %v4106 = vsel %vm2528, %v2877, 0
      %v4109 = vsel %vm2528, %v2878, 0
      %4111 = vmatprep.subr.mxu0 0.0
      %4112 = vmatpush1.msra.mxu0 %v4100
      %4113 = vmatprep.subr.mxu0 0.0
      %4114 = vmatpush1.msra.mxu0 %v4102
      %4115 = vmatprep.subr.mxu0 0.0
      %4116 = vmatpush1.msra.mxu0 0.0
      %4117 = vmatprep.subr.mxu0 0.0
      %4118 = vmatpush1.msra.mxu0 0.0
      %4119 = vmatprep.subr.mxu0 0.0
      %4120 = vmatpush1.msra.mxu0 0.0
      %4121 = vmatprep.subr.mxu0 0.0
      %4122 = vmatpush1.msra.mxu0 0.0
      %4123 = vmatprep.subr.mxu0 0.0
      %4124 = vmatpush1.msra.mxu0 0.0
      %4125 = vmatprep.subr.mxu0 0.0
      %4126 = vmatpush1.msra.mxu0 0.0
      %4127 = vmatprep.subr.mxu0 0.0
      %4128 = vmatpush1.msra.mxu0 0.0
      %4129 = vmatprep.subr.mxu0 0.0
      %4130 = vmatpush1.msra.mxu0 0.0
      %4131 = vmatprep.subr.mxu0 0.0
      %4132 = vmatpush1.msra.mxu0 0.0
      %4133 = vmatprep.subr.mxu0 0.0
      %4134 = vmatpush1.msra.mxu0 0.0
      %4135 = vmatprep.subr.mxu0 0.0
      %4136 = vmatpush1.msra.mxu0 0.0
      %4137 = vmatprep.subr.mxu0 0.0
      %4138 = vmatpush1.msra.mxu0 0.0
      %4139 = vmatprep.subr.mxu0 0.0
      %4140 = vmatpush1.msra.mxu0 0.0
      %4141 = vmatprep.subr.mxu0 0.0
      %4142 = vmatpush1.msra.mxu0 0.0
      %4143 = vmatprep.subr.mxu0 0.0
      %4144 = vmatpush1.msra.mxu0 0.0
      %4145 = vmatprep.subr.mxu0 0.0
      %4146 = vmatpush1.msra.mxu0 0.0
      %4147 = vmatprep.subr.mxu0 0.0
      %4148 = vmatpush1.msra.mxu0 0.0
      %4149 = vmatprep.subr.mxu0 0.0
      %4150 = vmatpush1.msra.mxu0 0.0
      %4151 = vmatprep.subr.mxu0 0.0
      %4152 = vmatpush1.msra.mxu0 0.0
      %4153 = vmatprep.subr.mxu0 0.0
      %4154 = vmatpush1.msra.mxu0 0.0
      %4155 = vmatprep.subr.mxu0 0.0
      %4156 = vmatpush1.msra.mxu0 0.0
      %4157 = vmatprep.subr.mxu0 0.0
      %4158 = vmatpush1.msra.mxu0 0.0
      %4159 = vmatprep.subr.mxu0 0.0
      %4160 = vmatpush1.msra.mxu0 0.0
      %4161 = vmatprep.subr.mxu0 0.0
      %4162 = vmatpush1.msra.mxu0 0.0
      %4163 = vmatprep.subr.mxu0 0.0
      %4164 = vmatpush1.msra.mxu0 0.0
      %4165 = vmatprep.subr.mxu0 0.0
      %4166 = vmatpush1.msra.mxu0 0.0
      %4167 = vmatprep.subr.mxu0 0.0
      %4168 = vmatpush1.msra.mxu0 0.0
      %4169 = vmatprep.subr.mxu0 0.0
      %4170 = vmatpush1.msra.mxu0 0.0
      %4171 = vmatprep.subr.mxu0 0.0
      %4172 = vmatpush1.msra.mxu0 0.0
      %4173 = vmatprep.subr.mxu0 0.0
      %4174 = vmatpush1.msra.mxu0 0.0
      %4175 = vmatprep.mubr.f32.mxu0 0.0
      %4176 = vmatmul.mubr.f32.gmra.mrb[0].mxu0 %v4106
      %v4177 = vpop.f32.mrb[0].mxu0
      %v4178 = vadd.f32 0.0, %v4177
      %v4179 = vpop.f32.mrb[0].mxu0
      %4180 = vmatprep.mubr.f32.mxu0 0.0
      %4181 = vmatmul.mubr.f32.gmra.mrb[0].mxu0 %v4109
      %v4182 = vpop.f32.mrb[0].mxu0
      %v4183 = vadd.f32 0.0, %v4182
      %v4184 = vpop.f32.mrb[0].mxu0
      %4185 = vdwg.mxu0
      %4186 = vrot.lane.b32.xlu0 %v1116, 96
      %v4187 = vpop.permute.xlu0 %4186
      %4188 = vrot.lane.b32.xlu0 %v1118, 96
      %v4189 = vpop.permute.xlu0 %4188
      %v4193 = vsel %vm2528, %v2879, 0
      %v4196 = vsel %vm2528, %v2880, 0
      %4198 = vmatprep.subr.mxu0 0.0
      %4199 = vmatpush1.msra.mxu0 %v4187
      %4200 = vmatprep.subr.mxu0 0.0
      %4201 = vmatpush1.msra.mxu0 %v4189
      %4202 = vmatprep.subr.mxu0 0.0
      %4203 = vmatpush1.msra.mxu0 0.0
      %4204 = vmatprep.subr.mxu0 0.0
      %4205 = vmatpush1.msra.mxu0 0.0
      %4206 = vmatprep.subr.mxu0 0.0
      %4207 = vmatpush1.msra.mxu0 0.0
      %4208 = vmatprep.subr.mxu0 0.0
      %4209 = vmatpush1.msra.mxu0 0.0
      %4210 = vmatprep.subr.mxu0 0.0
      %4211 = vmatpush1.msra.mxu0 0.0
      %4212 = vmatprep.subr.mxu0 0.0
      %4213 = vmatpush1.msra.mxu0 0.0
      %4214 = vmatprep.subr.mxu0 0.0
      %4215 = vmatpush1.msra.mxu0 0.0
      %4216 = vmatprep.subr.mxu0 0.0
      %4217 = vmatpush1.msra.mxu0 0.0
      %4218 = vmatprep.subr.mxu0 0.0
      %4219 = vmatpush1.msra.mxu0 0.0
      %4220 = vmatprep.subr.mxu0 0.0
      %4221 = vmatpush1.msra.mxu0 0.0
      %4222 = vmatprep.subr.mxu0 0.0
      %4223 = vmatpush1.msra.mxu0 0.0
      %4224 = vmatprep.subr.mxu0 0.0
      %4225 = vmatpush1.msra.mxu0 0.0
      %4226 = vmatprep.subr.mxu0 0.0
      %4227 = vmatpush1.msra.mxu0 0.0
      %4228 = vmatprep.subr.mxu0 0.0
      %4229 = vmatpush1.msra.mxu0 0.0
      %4230 = vmatprep.subr.mxu0 0.0
      %4231 = vmatpush1.msra.mxu0 0.0
      %4232 = vmatprep.subr.mxu0 0.0
      %4233 = vmatpush1.msra.mxu0 0.0
      %4234 = vmatprep.subr.mxu0 0.0
      %4235 = vmatpush1.msra.mxu0 0.0
      %4236 = vmatprep.subr.mxu0 0.0
      %4237 = vmatpush1.msra.mxu0 0.0
      %4238 = vmatprep.subr.mxu0 0.0
      %4239 = vmatpush1.msra.mxu0 0.0
      %4240 = vmatprep.subr.mxu0 0.0
      %4241 = vmatpush1.msra.mxu0 0.0
      %4242 = vmatprep.subr.mxu0 0.0
      %4243 = vmatpush1.msra.mxu0 0.0
      %4244 = vmatprep.subr.mxu0 0.0
      %4245 = vmatpush1.msra.mxu0 0.0
      %4246 = vmatprep.subr.mxu0 0.0
      %4247 = vmatpush1.msra.mxu0 0.0
      %4248 = vmatprep.subr.mxu0 0.0
      %4249 = vmatpush1.msra.mxu0 0.0
      %4250 = vmatprep.subr.mxu0 0.0
      %4251 = vmatpush1.msra.mxu0 0.0
      %4252 = vmatprep.subr.mxu0 0.0
      %4253 = vmatpush1.msra.mxu0 0.0
      %4254 = vmatprep.subr.mxu0 0.0
      %4255 = vmatpush1.msra.mxu0 0.0
      %4256 = vmatprep.subr.mxu0 0.0
      %4257 = vmatpush1.msra.mxu0 0.0
      %4258 = vmatprep.subr.mxu0 0.0
      %4259 = vmatpush1.msra.mxu0 0.0
      %4260 = vmatprep.subr.mxu0 0.0
      %4261 = vmatpush1.msra.mxu0 0.0
      %4262 = vmatprep.mubr.f32.mxu0 0.0
      %4263 = vmatmul.mubr.f32.gmra.mrb[0].mxu0 %v4193
      %v4264 = vpop.f32.mrb[0].mxu0
      %v4265 = vadd.f32 0.0, %v4264
      %v4266 = vpop.f32.mrb[0].mxu0
      %4267 = vmatprep.mubr.f32.mxu0 0.0
      %4268 = vmatmul.mubr.f32.gmra.mrb[0].mxu0 %v4196
      %v4269 = vpop.f32.mrb[0].mxu0
      %v4270 = vadd.f32 0.0, %v4269
      %v4271 = vpop.f32.mrb[0].mxu0
      %4272 = vdwg.mxu0
      %4281 = vrot.lane.b32.xlu0 %v3308, 8
      %v4282 = vpop.permute.xlu0 %4281
      %4283 = vrot.lane.b32.xlu0 %v3313, 8
      %v4284 = vpop.permute.xlu0 %4283
      %4285 = vrot.lane.b32.xlu0 %v3395, 8
      %v4286 = vpop.permute.xlu0 %4285
      %4287 = vrot.lane.b32.xlu0 %v3400, 8
      %v4288 = vpop.permute.xlu0 %4287
      %4289 = vrot.lane.b32.xlu0 %v3482, 8
      %v4290 = vpop.permute.xlu0 %4289
      %4291 = vrot.lane.b32.xlu0 %v3487, 8
      %v4292 = vpop.permute.xlu0 %4291
      %4293 = vrot.lane.b32.xlu0 %v3569, 8
      %v4294 = vpop.permute.xlu0 %4293
      %4295 = vrot.lane.b32.xlu0 %v3574, 8
      %v4296 = vpop.permute.xlu0 %4295
      %4313 = vrot.lane.b32.xlu0 %v3656, 16
      %v4314 = vpop.permute.xlu0 %4313
      %4315 = vrot.lane.b32.xlu0 %v3661, 16
      %v4316 = vpop.permute.xlu0 %4315
      %4317 = vrot.lane.b32.xlu0 %v3743, 16
      %v4318 = vpop.permute.xlu0 %4317
      %4319 = vrot.lane.b32.xlu0 %v3748, 16
      %v4320 = vpop.permute.xlu0 %4319
      %4321 = vrot.lane.b32.xlu0 %v3830, 16
      %v4322 = vpop.permute.xlu0 %4321
      %4323 = vrot.lane.b32.xlu0 %v3835, 16
      %v4324 = vpop.permute.xlu0 %4323
      %4325 = vrot.lane.b32.xlu0 %v3917, 16
      %v4326 = vpop.permute.xlu0 %4325
      %4327 = vrot.lane.b32.xlu0 %v3922, 16
      %v4328 = vpop.permute.xlu0 %4327
      %4345 = vrot.lane.b32.xlu0 %v4004, 24
      %v4346 = vpop.permute.xlu0 %4345
      %4347 = vrot.lane.b32.xlu0 %v4009, 24
      %v4348 = vpop.permute.xlu0 %4347
      %4349 = vrot.lane.b32.xlu0 %v4091, 24
      %v4350 = vpop.permute.xlu0 %4349
      %4351 = vrot.lane.b32.xlu0 %v4096, 24
      %v4352 = vpop.permute.xlu0 %4351
      %4353 = vrot.lane.b32.xlu0 %v4178, 24
      %v4354 = vpop.permute.xlu0 %4353
      %4355 = vrot.lane.b32.xlu0 %v4183, 24
      %v4356 = vpop.permute.xlu0 %4355
      %4357 = vrot.lane.b32.xlu0 %v4265, 24
      %v4358 = vpop.permute.xlu0 %4357
      %4359 = vrot.lane.b32.xlu0 %v4270, 24
      %v4360 = vpop.permute.xlu0 %4359
      %v4369 = vsel %vm1119, %v2960, %v4282
      %v4370 = vsel %vm1119, %v2965, %v4284
      %v4371 = vsel %vm1119, %v3047, %v4286
      %v4372 = vsel %vm1119, %v3052, %v4288
      %v4373 = vsel %vm1119, %v3134, %v4290
      %v4374 = vsel %vm1119, %v3139, %v4292
      %v4375 = vsel %vm1119, %v3221, %v4294
      %v4376 = vsel %vm1119, %v3226, %v4296
      %v4377 = vsel %vm2528, %v4369, %v4314
      %v4378 = vsel %vm2528, %v4370, %v4316
      %v4379 = vsel %vm2528, %v4371, %v4318
      %v4380 = vsel %vm2528, %v4372, %v4320
      %v4381 = vsel %vm2528, %v4373, %v4322
      %v4382 = vsel %vm2528, %v4374, %v4324
      %v4383 = vsel %vm2528, %v4375, %v4326
      %v4384 = vsel %vm2528, %v4376, %v4328
      %vm4385 = vcmask 195584
      %v4386 = vsel %vm4385, %v4377, %v4346
      %v4387 = vsel %vm4385, %v4378, %v4348
      %v4388 = vsel %vm4385, %v4379, %v4350
      %v4389 = vsel %vm4385, %v4380, %v4352
      %v4390 = vsel %vm4385, %v4381, %v4354
      %v4391 = vsel %vm4385, %v4382, %v4356
      %v4392 = vsel %vm4385, %v4383, %v4358
      %v4393 = vsel %vm4385, %v4384, %v4360
      %v4394 = vld [vmem:[%s9] sm:$0xff]
      %v4395 = vld [vmem:[%s9 + $0x8] sm:$0xff]
      %v4396 = vld [vmem:[%s9 + $0x10] sm:$0xff]
      %v4397 = vld [vmem:[%s9 + $0x18] sm:$0xff]
      %v4398 = vld [vmem:[%s10] sm:$0x1]
      %v4400 = vlaneseq
      %v4401 = vshrl.u32 %v4400, 7
      %v4402 = vsub.s32 0, %v4401
      %v4403 = vrot.slane %v4398, %v4402
      %v4406 = vsel %vm455, %v4386, 0
      %v4409 = vsel %vm455, %v4387, 0
      %v4412 = vsel %vm455, %v4388, 0
      %v4415 = vsel %vm455, %v4389, 0
      %v4418 = vsel %vm455, %v4390, 0
      %v4421 = vsel %vm455, %v4391, 0
      %v4424 = vsel %vm455, %v4392, 0
      %v4427 = vsel %vm455, %v4393, 0
      %4429 = vmatprep.subr.mxu0 0.0
      %4430 = vmatpush1.msra.mxu0 %v4394
      %4431 = vmatprep.subr.mxu0 0.0
      %4432 = vmatpush1.msra.mxu0 %v4395
      %4433 = vmatprep.subr.mxu0 0.0
      %4434 = vmatpush1.msra.mxu0 %v4396
      %4435 = vmatprep.subr.mxu0 0.0
      %4436 = vmatpush1.msra.mxu0 %v4397
      %4437 = vmatprep.subr.mxu0 0.0
      %4438 = vmatpush1.msra.mxu0 0.0
      %4439 = vmatprep.subr.mxu0 0.0
      %4440 = vmatpush1.msra.mxu0 0.0
      %4441 = vmatprep.subr.mxu0 0.0
      %4442 = vmatpush1.msra.mxu0 0.0
      %4443 = vmatprep.subr.mxu0 0.0
      %4444 = vmatpush1.msra.mxu0 0.0
      %4445 = vmatprep.subr.mxu0 0.0
      %4446 = vmatpush1.msra.mxu0 0.0
      %4447 = vmatprep.subr.mxu0 0.0
      %4448 = vmatpush1.msra.mxu0 0.0
      %4449 = vmatprep.subr.mxu0 0.0
      %4450 = vmatpush1.msra.mxu0 0.0
      %4451 = vmatprep.subr.mxu0 0.0
      %4452 = vmatpush1.msra.mxu0 0.0
      %4453 = vmatprep.subr.mxu0 0.0
      %4454 = vmatpush1.msra.mxu0 0.0
      %4455 = vmatprep.subr.mxu0 0.0
      %4456 = vmatpush1.msra.mxu0 0.0
      %4457 = vmatprep.subr.mxu0 0.0
      %4458 = vmatpush1.msra.mxu0 0.0
      %4459 = vmatprep.subr.mxu0 0.0
      %4460 = vmatpush1.msra.mxu0 0.0
      %4461 = vmatprep.subr.mxu0 0.0
      %4462 = vmatpush1.msra.mxu0 0.0
      %4463 = vmatprep.subr.mxu0 0.0
      %4464 = vmatpush1.msra.mxu0 0.0
      %4465 = vmatprep.subr.mxu0 0.0
      %4466 = vmatpush1.msra.mxu0 0.0
      %4467 = vmatprep.subr.mxu0 0.0
      %4468 = vmatpush1.msra.mxu0 0.0
      %4469 = vmatprep.subr.mxu0 0.0
      %4470 = vmatpush1.msra.mxu0 0.0
      %4471 = vmatprep.subr.mxu0 0.0
      %4472 = vmatpush1.msra.mxu0 0.0
      %4473 = vmatprep.subr.mxu0 0.0
      %4474 = vmatpush1.msra.mxu0 0.0
      %4475 = vmatprep.subr.mxu0 0.0
      %4476 = vmatpush1.msra.mxu0 0.0
      %4477 = vmatprep.subr.mxu0 0.0
      %4478 = vmatpush1.msra.mxu0 0.0
      %4479 = vmatprep.subr.mxu0 0.0
      %4480 = vmatpush1.msra.mxu0 0.0
      %4481 = vmatprep.subr.mxu0 0.0
      %4482 = vmatpush1.msra.mxu0 0.0
      %4483 = vmatprep.subr.mxu0 0.0
      %4484 = vmatpush1.msra.mxu0 0.0
      %4485 = vmatprep.subr.mxu0 0.0
      %4486 = vmatpush1.msra.mxu0 0.0
      %4487 = vmatprep.subr.mxu0 0.0
      %4488 = vmatpush1.msra.mxu0 0.0
      %4489 = vmatprep.subr.mxu0 0.0
      %4490 = vmatpush1.msra.mxu0 0.0
      %4491 = vmatprep.subr.mxu0 0.0
      %4492 = vmatpush1.msra.mxu0 0.0
      %4493 = vmatprep.mubr.f32.mxu0 0.0
      %4494 = vmatmul.mubr.f32.gmra.mrb[0].mxu0 %v4406
      %v4495 = vpop.f32.mrb[0].mxu0
      %v4496 = vadd.f32 %v4403, %v4495
      %v4497 = vpop.f32.mrb[0].mxu0
      %4498 = vmatprep.mubr.f32.mxu0 0.0
      %4499 = vmatmul.mubr.f32.gmra.mrb[0].mxu0 %v4409
      %v4500 = vpop.f32.mrb[0].mxu0
      %v4501 = vadd.f32 %v4403, %v4500
      %v4502 = vpop.f32.mrb[0].mxu0
      %4503 = vmatprep.mubr.f32.mxu0 0.0
      %4504 = vmatmul.mubr.f32.gmra.mrb[0].mxu0 %v4412
      %v4505 = vpop.f32.mrb[0].mxu0
      %v4506 = vadd.f32 %v4403, %v4505
      %v4507 = vpop.f32.mrb[0].mxu0
      %4508 = vmatprep.mubr.f32.mxu0 0.0
      %4509 = vmatmul.mubr.f32.gmra.mrb[0].mxu0 %v4415
      %v4510 = vpop.f32.mrb[0].mxu0
      %v4511 = vadd.f32 %v4403, %v4510
      %v4512 = vpop.f32.mrb[0].mxu0
      %4513 = vmatprep.mubr.f32.mxu0 0.0
      %4514 = vmatmul.mubr.f32.gmra.mrb[0].mxu0 %v4418
      %v4515 = vpop.f32.mrb[0].mxu0
      %v4516 = vadd.f32 %v4403, %v4515
      %v4517 = vpop.f32.mrb[0].mxu0
      %4518 = vmatprep.mubr.f32.mxu0 0.0
      %4519 = vmatmul.mubr.f32.gmra.mrb[0].mxu0 %v4421
      %v4520 = vpop.f32.mrb[0].mxu0
      %v4521 = vadd.f32 %v4403, %v4520
      %v4522 = vpop.f32.mrb[0].mxu0
      %4523 = vmatprep.mubr.f32.mxu0 0.0
      %4524 = vmatmul.mubr.f32.gmra.mrb[0].mxu0 %v4424
      %v4525 = vpop.f32.mrb[0].mxu0
      %v4526 = vadd.f32 %v4403, %v4525
      %v4527 = vpop.f32.mrb[0].mxu0
      %4528 = vmatprep.mubr.f32.mxu0 0.0
      %4529 = vmatmul.mubr.f32.gmra.mrb[0].mxu0 %v4427
      %v4530 = vpop.f32.mrb[0].mxu0
      %v4531 = vadd.f32 %v4403, %v4530
      %v4532 = vpop.f32.mrb[0].mxu0
      %4533 = vdwg.mxu0
      %v4534 = vadd.f32 %v447, %v4496
      %v4535 = vadd.f32 %v448, %v4501
      %v4536 = vadd.f32 %v449, %v4506
      %v4537 = vadd.f32 %v450, %v4511
      %v4538 = vadd.f32 %v451, %v4516
      %v4539 = vadd.f32 %v452, %v4521
      %v4540 = vadd.f32 %v453, %v4526
      %v4541 = vadd.f32 %v454, %v4531
      %4542 = vst.msk [vmem:[%s445] sm:$0xff] %vm455, %v4534
      %4543 = vst.msk [vmem:[%s445 + $0x8] sm:$0xff] %vm455, %v4535
      %4544 = vst.msk [vmem:[%s445 + $0x10] sm:$0xff] %vm455, %v4536
      %4545 = vst.msk [vmem:[%s445 + $0x18] sm:$0xff] %vm455, %v4537
      %4546 = vst.msk [vmem:[%s445 + $0x20] sm:$0xff] %vm455, %v4538
      %4547 = vst.msk [vmem:[%s445 + $0x28] sm:$0xff] %vm455, %v4539
      %4548 = vst.msk [vmem:[%s445 + $0x30] sm:$0xff] %vm455, %v4540
      %4549 = vst.msk [vmem:[%s445 + $0x38] sm:$0xff] %vm455, %v4541
      %s4550 = smul.u32 4, %s23
      %p4551 = scmp.lt.s32.totalorder %s4550, 7
      %s4552 = scalar_select %p4551, %s4550, 7
      %s4553 = smul.addr %s4552, 2
      %s4554 = smul.addr %s4553, 8
      %s4555 = scalar_lea.vmem %s12, %s4554
      // Predicated region
      $region69: #{swin_block_pallas.2} parent=67 // pred_check
        %p4556 = pneg %p303
      $region70: #{swin_block_pallas.2} parent=67 // pred_check_branch
        %4558 = sbr.rel (%p4556) target = $region72
      $region71: #{swin_block_pallas.2} parent=67 // pred_region
        %s4559 = smul.u32 4, %s23
      $region72: #{swin_block_pallas.2} parent=67 // pred_fallthru
        _
    $region68: #{swin_block_pallas.2} parent=5 // pred_fallthru
      _
    %p4560 = scmp.le.s32.totalorder 2, %s18
    // Predicated region
    $region73: #{swin_block_pallas.2} parent=5 // pred_check
      %p4561 = pneg %p4560
    $region74: #{swin_block_pallas.2} parent=5 // pred_check_branch
      %4563 = sbr.rel (%p4561) target = $region76
    $region75: #{swin_block_pallas.2} parent=5 // pred_region
      %s4564 = ssub.s32 %s18, 2
      // Predicated region
      $region77: #{swin_block_pallas.2} parent=75 // pred_check
        %p4565 = pneg %p309
      $region78: #{swin_block_pallas.2} parent=75 // pred_check_branch
        %4567 = sbr.rel (%p4565) target = $region80
      $region79: #{swin_block_pallas.2} parent=75 // pred_region
        %s4568 = smul.u32 4, %s24
        %p4569 = scmp.lt.s32.totalorder %s4568, 7
        %s4570 = scalar_select %p4569, %s4568, 7
        %s4571 = smul.addr %s4570, 2
        %s4572 = smul.addr %s4571, 8
        %s4573 = scalar_lea.vmem %s12, %s4572
      $region80: #{swin_block_pallas.2} parent=75 // pred_fallthru
        _
    $region76: #{swin_block_pallas.2} parent=5 // pred_fallthru
      _
  $region6: #{swin_block_pallas.2} parent=0 // loop_footer
    %s22 = sadd.s32 1, %s18
  $region7: #{swin_block_pallas.2} parent=0 // loop_footer_branch
    %17 = sbr.rel target = $region3
  $region8: #{swin_block_pallas.2} parent=0 // loop_exit
    _

</llo_original>
